<compile_context>
chip_gen: v5e
topology: v5e:2x2
jax: 0.10.0
libtpu: 0.0.40
codegen_flags: <defaults>
</compile_context>

<pallas_src>
import jax
import jax.numpy as jnp
from jax.experimental import pallas as pl
from jax.experimental.pallas import tpu as pltpu

EPS = 1e-5


def conv1x1_bn_kernel(x_ref, w_ref, gamma_ref, beta_ref, o_ref):
    # x_ref:(TK, M)  w_ref:(Cout, TK)  gamma/beta:(Cout, 1)  o_ref:(Cout, M) f32
    k = pl.program_id(0)

    @pl.when(k == 0)
    def _():
        o_ref[...] = jnp.zeros_like(o_ref)

    # 1x1 conv == matmul on the MXU; the f32 output block is the resident
    # accumulator across the Cin-reduction grid axis (index_map is constant).
    o_ref[...] += jnp.dot(w_ref[...], x_ref[...],
                          preferred_element_type=jnp.float32)

    @pl.when(k == pl.num_programs(0) - 1)
    def _():
        y = o_ref[...]
        inv_m = 1.0 / y.shape[1]
        # One-pass batch stats per channel (row): mean and E[y^2] (XLU reduce).
        mean = jnp.sum(y, axis=1, keepdims=True) * inv_m
        mean_sq = jnp.sum(y * y, axis=1, keepdims=True) * inv_m
        var = mean_sq - mean * mean            # biased variance (training-mode BN)
        scale = jax.lax.rsqrt(var + EPS) * gamma_ref[...]   # rsqrt -> EUP slot
        o_ref[...] = (y - mean) * scale + beta_ref[...]


def conv2d_batchnorm(x_nchw, w_oihw, gamma, beta, *, tk=256):
    N, Cin, H, W = x_nchw.shape
    Cout = w_oihw.shape[0]
    M = N * H * W
    assert Cin % tk == 0, (Cin, tk)
    assert Cout % 8 == 0, Cout

    # (Cin, M): pure reshape for the module's N == 1 case (no transpose traffic).
    if N == 1:
        x_mat = x_nchw.reshape(Cin, M)
    else:
        x_mat = jnp.transpose(x_nchw, (1, 0, 2, 3)).reshape(Cin, M)
    # 1x1 conv weight (Cout, Cin, 1, 1) -> (Cout, Cin), used directly as LHS.
    w_mat = w_oihw.reshape(Cout, Cin)

    out_mat = pl.pallas_call(
        conv1x1_bn_kernel,
        out_shape=jax.ShapeDtypeStruct((Cout, M), jnp.float32),
        grid_spec=pltpu.PrefetchScalarGridSpec(
            num_scalar_prefetch=0,
            grid=(Cin // tk,),                                  # Cin reduction only
            in_specs=[
                pl.BlockSpec((tk, M), lambda k: (k, 0)),        # X: Cin tile, full M
                pl.BlockSpec((Cout, tk), lambda k: (0, k)),     # W: full Cout, Cin tile
                pl.BlockSpec((Cout, 1), lambda k: (0, 0)),      # gamma
                pl.BlockSpec((Cout, 1), lambda k: (0, 0)),      # beta
            ],
            # Constant block index across the grid => output stays resident in
            # VMEM and doubles as the f32 accumulator; written to HBM once.
            out_specs=pl.BlockSpec((Cout, M), lambda k: (0, 0)),
        ),
        compiler_params=pltpu.CompilerParams(
            dimension_semantics=("arbitrary",),
        ),
    )(x_mat, w_mat, gamma.reshape(Cout, 1), beta.reshape(Cout, 1))

    out_mat = out_mat.astype(x_nchw.dtype)
    # (Cout, M) -> NCHW (pure reshape for N == 1).
    if N == 1:
        return out_mat.reshape(1, Cout, H, W)
    return jnp.transpose(out_mat.reshape(Cout, N, H, W), (1, 0, 2, 3))


def reference(x_nchw, w_oihw, gamma, beta):
    # plain-JAX reference (different compute path): 1x1 conv + training-mode BN
    N, Cin, H, W = x_nchw.shape
    Cout = w_oihw.shape[0]
    x_mat = jnp.transpose(x_nchw, (0, 2, 3, 1)).reshape(-1, Cin)
    y = x_mat @ w_oihw.reshape(Cout, Cin).T
    mean = y.mean(axis=0, keepdims=True)
    var = ((y - mean) ** 2).mean(axis=0, keepdims=True)
    y = (y - mean) / jnp.sqrt(var + EPS) * gamma + beta
    return jnp.transpose(y.reshape(N, H, W, Cout), (0, 3, 1, 2))


if __name__ == "__main__":
    key = jax.random.PRNGKey(0)
    k_x, k_w, k_g, k_b = jax.random.split(key, 4)

    N, Cin, H, W = 1, 1280, 28, 28
    Cout = 256

    x = jax.random.normal(k_x, (N, Cin, H, W), dtype=jnp.float32)
    # Conv2d weight (Cout, Cin, 1, 1), bias=False
    w = jax.random.normal(k_w, (Cout, Cin, 1, 1), dtype=jnp.float32) * 0.02
    # BatchNorm2d affine params (deterministic, non-trivial)
    gamma = 1.0 + 0.1 * jax.random.normal(k_g, (Cout,), dtype=jnp.float32)
    beta = 0.1 * jax.random.normal(k_b, (Cout,), dtype=jnp.float32)

    # TODO(synk): running_mean/running_var buffer updates (momentum=0.1) are a
    # training-side buffer mutation and are not part of the returned tensor.
    out = conv2d_batchnorm(x, w, gamma, beta)
    out = jax.block_until_ready(out)

    ref = jax.block_until_ready(reference(x, w, gamma, beta))
    assert out.shape == (N, Cout, H, W), out.shape
    assert jnp.allclose(out, ref, atol=2e-3, rtol=2e-3), float(jnp.abs(out - ref).max())

    print("KERNEL_OK")
</pallas_src>

<mosaic_0001>
module attributes {stable_mosaic.version = 11 : i64} {
  func.func @conv1x1_bn_kernel(%arg0: i32, %arg1: memref<256x784xf32, #tpu.memory_space<vmem>>, %arg2: memref<256x256xf32, #tpu.memory_space<vmem>>, %arg3: memref<256x1xf32, #tpu.memory_space<vmem>>, %arg4: memref<256x1xf32, #tpu.memory_space<vmem>>, %arg5: memref<256x784xf32, #tpu.memory_space<vmem>>) attributes {dimension_semantics = [#tpu.dimension_semantics<arbitrary>], iteration_bounds = array<i64: 5>, scalar_prefetch = 0 : i64, scratch_operands = 0 : i64, tpu.core_type = #tpu.core_type<tc>, window_params = [{transform_indices = @transform_0, window_bounds = array<i64: 256, 784>}, {transform_indices = @transform_1, window_bounds = array<i64: 256, 256>}, {pipeline_mode = #tpu.pipeline_mode<synchronous>, transform_indices = @transform_2, window_bounds = array<i64: 256, 1>}, {pipeline_mode = #tpu.pipeline_mode<synchronous>, transform_indices = @transform_3, window_bounds = array<i64: 256, 1>}, {pipeline_mode = #tpu.pipeline_mode<synchronous>, transform_indices = @transform_4, window_bounds = array<i64: 256, 784>}]} {
    %c0_i32 = arith.constant 0 : i32
    %0 = arith.cmpi eq, %arg0, %c0_i32 : i32
    %1 = arith.extui %0 : i1 to i32
    %c0_i32_0 = arith.constant 0 : i32
    %2 = arith.cmpi ne, %1, %c0_i32_0 : i32
    scf.if %2 {
      %cst_9 = arith.constant 0.000000e+00 : f32
      %12 = vector.broadcast %cst_9 : f32 to vector<256x784xf32>
      %c0_10 = arith.constant 0 : index
      %c0_11 = arith.constant 0 : index
      %13 = vector.load %arg5[%c0_10, %c0_11] : memref<256x784xf32, #tpu.memory_space<vmem>>, vector<256x784xf32>
      tpu.vector_store %arg5[%c0_10, %c0_11], %12 {strides = array<i32>} : memref<256x784xf32, #tpu.memory_space<vmem>>, vector<256x784xf32>,
    } else {
    }
    %c0 = arith.constant 0 : index
    %c0_1 = arith.constant 0 : index
    %3 = vector.load %arg5[%c0, %c0_1] : memref<256x784xf32, #tpu.memory_space<vmem>>, vector<256x784xf32>
    %c0_2 = arith.constant 0 : index
    %c0_3 = arith.constant 0 : index
    %4 = vector.load %arg2[%c0_2, %c0_3] : memref<256x256xf32, #tpu.memory_space<vmem>>, vector<256x256xf32>
    %c0_4 = arith.constant 0 : index
    %c0_5 = arith.constant 0 : index
    %5 = vector.load %arg1[%c0_4, %c0_5] : memref<256x784xf32, #tpu.memory_space<vmem>>, vector<256x784xf32>
    %cst = arith.constant dense<0.000000e+00> : vector<256x784xf32>
    %6 = tpu.matmul %4, %5, %cst {dimension_numbers = #tpu.dot_dimension_numbers<[1], [0], [0], [1], [0, 0, 1, 1], [], []>} : vector<256x256xf32>, vector<256x784xf32>, vector<256x784xf32> -> vector<256x784xf32>
    %7 = arith.addf %3, %6 : vector<256x784xf32>
    %c0_6 = arith.constant 0 : index
    %c0_7 = arith.constant 0 : index
    %8 = vector.load %arg5[%c0_6, %c0_7] : memref<256x784xf32, #tpu.memory_space<vmem>>, vector<256x784xf32>
    tpu.vector_store %arg5[%c0_6, %c0_7], %7 {strides = array<i32>} : memref<256x784xf32, #tpu.memory_space<vmem>>, vector<256x784xf32>,
    %c4_i32 = arith.constant 4 : i32
    %9 = arith.cmpi eq, %arg0, %c4_i32 : i32
    %10 = arith.extui %9 : i1 to i32
    %c0_i32_8 = arith.constant 0 : i32
    %11 = arith.cmpi ne, %10, %c0_i32_8 : i32
    scf.if %11 {
      %c0_9 = arith.constant 0 : index
      %c0_10 = arith.constant 0 : index
      %12 = vector.load %arg5[%c0_9, %c0_10] : memref<256x784xf32, #tpu.memory_space<vmem>>, vector<256x784xf32>
      %cst_11 = arith.constant dense<0.000000e+00> : vector<256xf32>
      %13 = vector.multi_reduction <add>, %12, %cst_11 [1] : vector<256x784xf32> to vector<256xf32>
      %14 = vector.shape_cast %13 : vector<256xf32> to vector<256x1xf32>
      %cst_12 = arith.constant 0.00127551018 : f32
      %15 = vector.broadcast %cst_12 : f32 to vector<256x1xf32>
      %16 = arith.mulf %14, %15 : vector<256x1xf32>
      %17 = arith.mulf %12, %12 : vector<256x784xf32>
      %cst_13 = arith.constant dense<0.000000e+00> : vector<256xf32>
      %18 = vector.multi_reduction <add>, %17, %cst_13 [1] : vector<256x784xf32> to vector<256xf32>
      %19 = vector.shape_cast %18 : vector<256xf32> to vector<256x1xf32>
      %cst_14 = arith.constant 0.00127551018 : f32
      %20 = vector.broadcast %cst_14 : f32 to vector<256x1xf32>
      %21 = arith.mulf %19, %20 : vector<256x1xf32>
      %22 = arith.mulf %16, %16 : vector<256x1xf32>
      %23 = arith.subf %21, %22 : vector<256x1xf32>
      %cst_15 = arith.constant 9.99999974E-6 : f32
      %24 = vector.broadcast %cst_15 : f32 to vector<256x1xf32>
      %25 = arith.addf %23, %24 : vector<256x1xf32>
      %26 = math.rsqrt %25 : vector<256x1xf32>
      %c0_16 = arith.constant 0 : index
      %c0_17 = arith.constant 0 : index
      %27 = vector.load %arg3[%c0_16, %c0_17] : memref<256x1xf32, #tpu.memory_space<vmem>>, vector<256x1xf32>
      %28 = arith.mulf %26, %27 : vector<256x1xf32>
      %29 = vector.broadcast %16 : vector<256x1xf32> to vector<256x784xf32>
      %30 = arith.subf %12, %29 : vector<256x784xf32>
      %31 = vector.broadcast %28 : vector<256x1xf32> to vector<256x784xf32>
      %32 = arith.mulf %30, %31 : vector<256x784xf32>
      %c0_18 = arith.constant 0 : index
      %c0_19 = arith.constant 0 : index
      %33 = vector.load %arg4[%c0_18, %c0_19] : memref<256x1xf32, #tpu.memory_space<vmem>>, vector<256x1xf32>
      %34 = vector.broadcast %33 : vector<256x1xf32> to vector<256x784xf32>
      %35 = arith.addf %32, %34 : vector<256x784xf32>
      %c0_20 = arith.constant 0 : index
      %c0_21 = arith.constant 0 : index
      %36 = vector.load %arg5[%c0_20, %c0_21] : memref<256x784xf32, #tpu.memory_space<vmem>>, vector<256x784xf32>
      tpu.vector_store %arg5[%c0_20, %c0_21], %35 {strides = array<i32>} : memref<256x784xf32, #tpu.memory_space<vmem>>, vector<256x784xf32>,
    } else {
    }
    return
  }
  func.func @transform_0(%arg0: i32) -> (i32, i32) {
    %c0_i32 = arith.constant 0 : i32
    %c0_i32_0 = arith.constant 0 : i32
    return %arg0, %c0_i32 : i32, i32
  }
  func.func @transform_1(%arg0: i32) -> (i32, i32) {
    %c0_i32 = arith.constant 0 : i32
    %c0_i32_0 = arith.constant 0 : i32
    return %c0_i32, %arg0 : i32, i32
  }
  func.func @transform_2(%arg0: i32) -> (i32, i32) {
    %c0_i32 = arith.constant 0 : i32
    %c0_i32_0 = arith.constant 0 : i32
    %c0_i32_1 = arith.constant 0 : i32
    return %c0_i32, %c0_i32_0 : i32, i32
  }
  func.func @transform_3(%arg0: i32) -> (i32, i32) {
    %c0_i32 = arith.constant 0 : i32
    %c0_i32_0 = arith.constant 0 : i32
    %c0_i32_1 = arith.constant 0 : i32
    return %c0_i32, %c0_i32_0 : i32, i32
  }
  func.func @transform_4(%arg0: i32) -> (i32, i32) {
    %c0_i32 = arith.constant 0 : i32
    %c0_i32_0 = arith.constant 0 : i32
    %c0_i32_1 = arith.constant 0 : i32
    return %c0_i32, %c0_i32_0 : i32, i32
  }
}

</mosaic_0001>

<llo_original>
// kernel: tpu_custom_call.1
$region0: #{tpu_custom_call.1}
  #allocation0 [shape = 'u32[]', space=smem, size = 0x4, offset = 0x4, fixed_abs, tag = 'smem constant byte address 0x4 - core index']
  #allocation1 [shape = 'u32[72,128]{1,0:T(1,128)}', space=vmem, size = 0x9000, scoped, tag = 'internal scratch']
  %s0 = inlined_call_operand.vmem [shape: f32[1280,784], index: 0, kind: input, shape index: {}]
  %s1 = inlined_call_operand.vmem [shape: f32[256,1280], index: 1, kind: input, shape index: {}]
  %s2 = inlined_call_operand.vmem [shape: f32[256,1], index: 2, kind: input, shape index: {}]
  %s3 = inlined_call_operand.vmem [shape: f32[256,1], index: 3, kind: input, shape index: {}]
  %s4 = inlined_call_operand.vmem [shape: f32[256,784], index: 4, kind: output, shape index: {}]
  %s5 = sld [smem:[#allocation0]]
  $region80: #{tpu_custom_call.1} parent=0
    _
  %s7 = ssub.s32 1, %s5
  %s8 = scalar_select 0, %s7, %s5
  $region1: #{tpu_custom_call.1} parent=0
    #allocation2 [shape = 'u8[524288]{0}', space=vmem, size = 0x80000, scoped, tag = 'input window, operand 1']
    loop: start=0, step=1, limit=7
    $region2: #{tpu_custom_call.1} parent=1 // loop_pre_header
      _
    $region3: #{tpu_custom_call.1} parent=1 // loop_header
      %s10 = sphi 0, %s14
      %p11 = scmp.ge.s32.totalorder %s10, 7
      %s20 = sphi 0, %s22
      %s23 = sphi 0, %s20
      %s24 = sphi 0, %s23
      %s40 = sphi 0, %s24
      %s46 = sphi 0, %s48
      %s49 = sphi 0, %s46
      %s50 = sphi 0, %s49
      %s66 = sphi 0, %s50
      %s70 = sphi 0, %s70
      %s72 = sphi 0, %s70
      %s73 = sphi 0, %s72
      %s87 = sphi 0, %s73
      %s91 = sphi 0, %s91
      %s93 = sphi 0, %s91
      %s94 = sphi 0, %s93
      %s108 = sphi 0, %s94
      %s112 = sphi 0, %s112
      %s114 = sphi 0, %s112
      %s115 = sphi 0, %s114
      %s129 = sphi 0, %s115
    $region4: #{tpu_custom_call.1} parent=1 // loop_header_branch
      %13 = sbr.rel (%p11) target = $region8
    $region5: #{tpu_custom_call.1} parent=1 // loop_body
      %s15 = ssub.s32 %s10, 1
      %s16 = ssub.s32 %s10, 2
      %s17 = sadd.s32 %s10, 1
      %s18 = ssub.s32 %s10, %s17
      %p19 = scmp.eq.s32.totalorder %s18, 0
      %s21 = sadd.s32 %s20, 1
      %s22 = scalar_select %p19, %s20, %s21
      %p25 = pneg %p19
      %p26 = scmp.eq.s32.totalorder %s10, 4
      %p27 = por %p25, %p26
      %p28 = scmp.ne.s32.totalorder %s20, %s23
      %p29 = scmp.eq.s32.totalorder %s10, 0
      %p30 = por %p28, %p29
      %p31 = scmp.ne.s32.totalorder %s20, %s23
      %p32 = scmp.eq.s32.totalorder %s15, 4
      %p33 = por %p31, %p32
      %p34 = scmp.ne.s32.totalorder %s23, %s24
      %p35 = scmp.eq.s32.totalorder %s15, 0
      %p36 = por %p34, %p35
      %p37 = scmp.ne.s32.totalorder %s23, %s24
      %p38 = scmp.eq.s32.totalorder %s16, 4
      %p39 = por %p37, %p38
      %p41 = scmp.ne.s32.totalorder %s24, %s40
      %p42 = scmp.eq.s32.totalorder %s16, 0
      %p43 = por %p41, %p42
      %s44 = ssub.s32 %s10, %s17
      %p45 = scmp.eq.s32.totalorder %s44, 0
      %s47 = sadd.s32 %s46, 1
      %s48 = scalar_select %p45, %s46, %s47
      %p51 = pneg %p45
      %p52 = scmp.eq.s32.totalorder %s10, 4
      %p53 = por %p51, %p52
      %p54 = scmp.ne.s32.totalorder %s46, %s49
      %p55 = scmp.eq.s32.totalorder %s10, 0
      %p56 = por %p54, %p55
      %p57 = scmp.ne.s32.totalorder %s46, %s49
      %p58 = scmp.eq.s32.totalorder %s15, 4
      %p59 = por %p57, %p58
      %p60 = scmp.ne.s32.totalorder %s49, %s50
      %p61 = scmp.eq.s32.totalorder %s15, 0
      %p62 = por %p60, %p61
      %p63 = scmp.ne.s32.totalorder %s49, %s50
      %p64 = scmp.eq.s32.totalorder %s16, 4
      %p65 = por %p63, %p64
      %p67 = scmp.ne.s32.totalorder %s50, %s66
      %p68 = scmp.eq.s32.totalorder %s16, 0
      %p69 = por %p67, %p68
      %s71 = sadd.s32 %s70, 1
      %p74 = scmp.eq.s32.totalorder %s10, 4
      %p75 = scmp.ne.s32.totalorder %s70, %s72
      %p76 = scmp.eq.s32.totalorder %s10, 0
      %p77 = por %p75, %p76
      %p78 = scmp.ne.s32.totalorder %s70, %s72
      %p79 = scmp.eq.s32.totalorder %s15, 4
      %p80 = por %p78, %p79
      %p81 = scmp.ne.s32.totalorder %s72, %s73
      %p82 = scmp.eq.s32.totalorder %s15, 0
      %p83 = por %p81, %p82
      %p84 = scmp.ne.s32.totalorder %s72, %s73
      %p85 = scmp.eq.s32.totalorder %s16, 4
      %p86 = por %p84, %p85
      %p88 = scmp.ne.s32.totalorder %s73, %s87
      %p89 = scmp.eq.s32.totalorder %s16, 0
      %p90 = por %p88, %p89
      %s92 = sadd.s32 %s91, 1
      %p95 = scmp.eq.s32.totalorder %s10, 4
      %p96 = scmp.ne.s32.totalorder %s91, %s93
      %p97 = scmp.eq.s32.totalorder %s10, 0
      %p98 = por %p96, %p97
      %p99 = scmp.ne.s32.totalorder %s91, %s93
      %p100 = scmp.eq.s32.totalorder %s15, 4
      %p101 = por %p99, %p100
      %p102 = scmp.ne.s32.totalorder %s93, %s94
      %p103 = scmp.eq.s32.totalorder %s15, 0
      %p104 = por %p102, %p103
      %p105 = scmp.ne.s32.totalorder %s93, %s94
      %p106 = scmp.eq.s32.totalorder %s16, 4
      %p107 = por %p105, %p106
      %p109 = scmp.ne.s32.totalorder %s94, %s108
      %p110 = scmp.eq.s32.totalorder %s16, 0
      %p111 = por %p109, %p110
      %s113 = sadd.s32 %s112, 1
      %p116 = scmp.eq.s32.totalorder %s10, 4
      %p117 = scmp.ne.s32.totalorder %s112, %s114
      %p118 = scmp.eq.s32.totalorder %s10, 0
      %p119 = por %p117, %p118
      %p120 = scmp.ne.s32.totalorder %s112, %s114
      %p121 = scmp.eq.s32.totalorder %s15, 4
      %p122 = por %p120, %p121
      %p123 = scmp.ne.s32.totalorder %s114, %s115
      %p124 = scmp.eq.s32.totalorder %s15, 0
      %p125 = por %p123, %p124
      %p126 = scmp.ne.s32.totalorder %s114, %s115
      %p127 = scmp.eq.s32.totalorder %s16, 4
      %p128 = por %p126, %p127
      %p130 = scmp.ne.s32.totalorder %s115, %s129
      %p131 = scmp.eq.s32.totalorder %s16, 0
      %p132 = por %p130, %p131
      %p133 = scmp.le.s32.totalorder 1, %s10
      %p134 = scmp.lt.s32.totalorder %s10, 6
      %p135 = pnand %p133, %p134
      %p136 = pneg %p135
      // Predicated region
      $region9: #{tpu_custom_call.1} parent=5 // pred_check
        _
      $region10: #{tpu_custom_call.1} parent=5 // pred_check_branch
        %138 = sbr.rel (%p135) target = $region12
      $region11: #{tpu_custom_call.1} parent=5 // pred_region
        %s139 = ssub.s32 %s10, 1
        // Predicated region
        $region13: #{tpu_custom_call.1} parent=11 // pred_check
          %p140 = pneg %p83
        $region14: #{tpu_custom_call.1} parent=11 // pred_check_branch
          %142 = sbr.rel (%p140) target = $region16
        $region15: #{tpu_custom_call.1} parent=11 // pred_region
          _
        $region16: #{tpu_custom_call.1} parent=11 // pred_fallthru
          _
        // Predicated region
        $region17: #{tpu_custom_call.1} parent=11 // pred_check
          %p143 = pneg %p104
        $region18: #{tpu_custom_call.1} parent=11 // pred_check_branch
          %145 = sbr.rel (%p143) target = $region20
        $region19: #{tpu_custom_call.1} parent=11 // pred_region
          _
        $region20: #{tpu_custom_call.1} parent=11 // pred_fallthru
          _
      $region12: #{tpu_custom_call.1} parent=5 // pred_fallthru
        _
      %p146 = scmp.lt.s32.totalorder %s10, 5
      // Predicated region
      $region21: #{tpu_custom_call.1} parent=5 // pred_check
        %p147 = pneg %p146
      $region22: #{tpu_custom_call.1} parent=5 // pred_check_branch
        %149 = sbr.rel (%p147) target = $region24
      $region23: #{tpu_custom_call.1} parent=5 // pred_region
        // Predicated region
        $region25: #{tpu_custom_call.1} parent=23 // pred_check
          %p150 = pneg %p30
        $region26: #{tpu_custom_call.1} parent=23 // pred_check_branch
          %152 = sbr.rel (%p150) target = $region28
        $region27: #{tpu_custom_call.1} parent=23 // pred_region
          %s153 = smul.u32 32, %s10
          %p154 = scmp.lt.s32.totalorder %s153, 159
          %s155 = scalar_select %p154, %s153, 159
          %s156 = smul.addr %s155, 7
          %s157 = smul.addr %s156, 8
          %s158 = scalar_lea.vmem %s0, %s157
          %s159 = smul.u32 32, %s10
        $region28: #{tpu_custom_call.1} parent=23 // pred_fallthru
          _
        // Predicated region
        $region29: #{tpu_custom_call.1} parent=23 // pred_check
          %p160 = pneg %p56
        $region30: #{tpu_custom_call.1} parent=23 // pred_check_branch
          %162 = sbr.rel (%p160) target = $region32
        $region31: #{tpu_custom_call.1} parent=23 // pred_region
          %s163 = sand.u32 %s46, 1
          %s164 = sand.u32 %s46, 1
          %s165 = smul.addr %s164, 512
          %s166 = scalar_lea.vmem [#allocation2], %s165
          %s167 = smul.u32 2, %s10
          %s168 = smul.addr %s167, 8
          %s169 = scalar_lea.vmem %s1, %s168
          // Predicated region
          $region33: #{tpu_custom_call.1} parent=31 // pred_check
            _
          $region34: #{tpu_custom_call.1} parent=31 // pred_check_branch
            %171 = sbr.rel (0) target = $region36
          $region35: #{tpu_custom_call.1} parent=31 // pred_region
            // Predicated region
            $region37: #{tpu_custom_call.1} parent=35 // pred_check
              _
            $region38: #{tpu_custom_call.1} parent=35 // pred_check_branch
              %173 = sbr.rel (0) target = $region40
            $region39: #{tpu_custom_call.1} parent=35 // pred_region
              loop: start=0, step=1, limit=1
              $region41: #{tpu_custom_call.1} parent=39 // loop_pre_header
                _
              $region42: #{tpu_custom_call.1} parent=39 // loop_header
                %s175 = sphi 0, %s179
                %p176 = scmp.ge.s32.totalorder %s175, 1
                %s180 = sphi %s169, %s169
                %s181 = sphi %s166, %s166
              $region43: #{tpu_custom_call.1} parent=39 // loop_header_branch
                %178 = sbr.rel (%p176) target = $region47
              $region44: #{tpu_custom_call.1} parent=39 // loop_body
                %v182 = vld [vmem:[%s180] sm:$0xff]
                %183 = vst [vmem:[%s181] sm:$0xff] %v182
                %v184 = vld [vmem:[%s180 + $0x8] sm:$0xff]
                %185 = vst [vmem:[%s181 + $0x8] sm:$0xff] %v184
                %v186 = vld [vmem:[%s180 + $0x50] sm:$0xff]
                %187 = vst [vmem:[%s181 + $0x10] sm:$0xff] %v186
                %v188 = vld [vmem:[%s180 + $0x58] sm:$0xff]
                %189 = vst [vmem:[%s181 + $0x18] sm:$0xff] %v188
                %v190 = vld [vmem:[%s180 + $0xa0] sm:$0xff]
                %191 = vst [vmem:[%s181 + $0x20] sm:$0xff] %v190
                %v192 = vld [vmem:[%s180 + $0xa8] sm:$0xff]
                %193 = vst [vmem:[%s181 + $0x28] sm:$0xff] %v192
                %v194 = vld [vmem:[%s180 + $0xf0] sm:$0xff]
                %195 = vst [vmem:[%s181 + $0x30] sm:$0xff] %v194
                %v196 = vld [vmem:[%s180 + $0xf8] sm:$0xff]
                %197 = vst [vmem:[%s181 + $0x38] sm:$0xff] %v196
                %v198 = vld [vmem:[%s180 + $0x140] sm:$0xff]
                %199 = vst [vmem:[%s181 + $0x40] sm:$0xff] %v198
                %v200 = vld [vmem:[%s180 + $0x148] sm:$0xff]
                %201 = vst [vmem:[%s181 + $0x48] sm:$0xff] %v200
                %v202 = vld [vmem:[%s180 + $0x190] sm:$0xff]
                %203 = vst [vmem:[%s181 + $0x50] sm:$0xff] %v202
                %v204 = vld [vmem:[%s180 + $0x198] sm:$0xff]
                %205 = vst [vmem:[%s181 + $0x58] sm:$0xff] %v204
                %v206 = vld [vmem:[%s180 + $0x1e0] sm:$0xff]
                %207 = vst [vmem:[%s181 + $0x60] sm:$0xff] %v206
                %v208 = vld [vmem:[%s180 + $0x1e8] sm:$0xff]
                %209 = vst [vmem:[%s181 + $0x68] sm:$0xff] %v208
                %v210 = vld [vmem:[%s180 + $0x230] sm:$0xff]
                %211 = vst [vmem:[%s181 + $0x70] sm:$0xff] %v210
                %v212 = vld [vmem:[%s180 + $0x238] sm:$0xff]
                %213 = vst [vmem:[%s181 + $0x78] sm:$0xff] %v212
                %v214 = vld [vmem:[%s180 + $0x280] sm:$0xff]
                %215 = vst [vmem:[%s181 + $0x80] sm:$0xff] %v214
                %v216 = vld [vmem:[%s180 + $0x288] sm:$0xff]
                %217 = vst [vmem:[%s181 + $0x88] sm:$0xff] %v216
                %v218 = vld [vmem:[%s180 + $0x2d0] sm:$0xff]
                %219 = vst [vmem:[%s181 + $0x90] sm:$0xff] %v218
                %v220 = vld [vmem:[%s180 + $0x2d8] sm:$0xff]
                %221 = vst [vmem:[%s181 + $0x98] sm:$0xff] %v220
                %v222 = vld [vmem:[%s180 + $0x320] sm:$0xff]
                %223 = vst [vmem:[%s181 + $0xa0] sm:$0xff] %v222
                %v224 = vld [vmem:[%s180 + $0x328] sm:$0xff]
                %225 = vst [vmem:[%s181 + $0xa8] sm:$0xff] %v224
                %v226 = vld [vmem:[%s180 + $0x370] sm:$0xff]
                %227 = vst [vmem:[%s181 + $0xb0] sm:$0xff] %v226
                %v228 = vld [vmem:[%s180 + $0x378] sm:$0xff]
                %229 = vst [vmem:[%s181 + $0xb8] sm:$0xff] %v228
                %v230 = vld [vmem:[%s180 + $0x3c0] sm:$0xff]
                %231 = vst [vmem:[%s181 + $0xc0] sm:$0xff] %v230
                %v232 = vld [vmem:[%s180 + $0x3c8] sm:$0xff]
                %233 = vst [vmem:[%s181 + $0xc8] sm:$0xff] %v232
                %v234 = vld [vmem:[%s180 + $0x410] sm:$0xff]
                %235 = vst [vmem:[%s181 + $0xd0] sm:$0xff] %v234
                %v236 = vld [vmem:[%s180 + $0x418] sm:$0xff]
                %237 = vst [vmem:[%s181 + $0xd8] sm:$0xff] %v236
                %v238 = vld [vmem:[%s180 + $0x460] sm:$0xff]
                %239 = vst [vmem:[%s181 + $0xe0] sm:$0xff] %v238
                %v240 = vld [vmem:[%s180 + $0x468] sm:$0xff]
                %241 = vst [vmem:[%s181 + $0xe8] sm:$0xff] %v240
                %v242 = vld [vmem:[%s180 + $0x4b0] sm:$0xff]
                %243 = vst [vmem:[%s181 + $0xf0] sm:$0xff] %v242
                %v244 = vld [vmem:[%s180 + $0x4b8] sm:$0xff]
                %245 = vst [vmem:[%s181 + $0xf8] sm:$0xff] %v244
                %v246 = vld [vmem:[%s180 + $0x500] sm:$0xff]
                %247 = vst [vmem:[%s181 + $0x100] sm:$0xff] %v246
                %v248 = vld [vmem:[%s180 + $0x508] sm:$0xff]
                %249 = vst [vmem:[%s181 + $0x108] sm:$0xff] %v248
                %v250 = vld [vmem:[%s180 + $0x550] sm:$0xff]
                %251 = vst [vmem:[%s181 + $0x110] sm:$0xff] %v250
                %v252 = vld [vmem:[%s180 + $0x558] sm:$0xff]
                %253 = vst [vmem:[%s181 + $0x118] sm:$0xff] %v252
                %v254 = vld [vmem:[%s180 + $0x5a0] sm:$0xff]
                %255 = vst [vmem:[%s181 + $0x120] sm:$0xff] %v254
                %v256 = vld [vmem:[%s180 + $0x5a8] sm:$0xff]
                %257 = vst [vmem:[%s181 + $0x128] sm:$0xff] %v256
                %v258 = vld [vmem:[%s180 + $0x5f0] sm:$0xff]
                %259 = vst [vmem:[%s181 + $0x130] sm:$0xff] %v258
                %v260 = vld [vmem:[%s180 + $0x5f8] sm:$0xff]
                %261 = vst [vmem:[%s181 + $0x138] sm:$0xff] %v260
                %v262 = vld [vmem:[%s180 + $0x640] sm:$0xff]
                %263 = vst [vmem:[%s181 + $0x140] sm:$0xff] %v262
                %v264 = vld [vmem:[%s180 + $0x648] sm:$0xff]
                %265 = vst [vmem:[%s181 + $0x148] sm:$0xff] %v264
                %v266 = vld [vmem:[%s180 + $0x690] sm:$0xff]
                %267 = vst [vmem:[%s181 + $0x150] sm:$0xff] %v266
                %v268 = vld [vmem:[%s180 + $0x698] sm:$0xff]
                %269 = vst [vmem:[%s181 + $0x158] sm:$0xff] %v268
                %v270 = vld [vmem:[%s180 + $0x6e0] sm:$0xff]
                %271 = vst [vmem:[%s181 + $0x160] sm:$0xff] %v270
                %v272 = vld [vmem:[%s180 + $0x6e8] sm:$0xff]
                %273 = vst [vmem:[%s181 + $0x168] sm:$0xff] %v272
                %v274 = vld [vmem:[%s180 + $0x730] sm:$0xff]
                %275 = vst [vmem:[%s181 + $0x170] sm:$0xff] %v274
                %v276 = vld [vmem:[%s180 + $0x738] sm:$0xff]
                %277 = vst [vmem:[%s181 + $0x178] sm:$0xff] %v276
                %v278 = vld [vmem:[%s180 + $0x780] sm:$0xff]
                %279 = vst [vmem:[%s181 + $0x180] sm:$0xff] %v278
                %v280 = vld [vmem:[%s180 + $0x788] sm:$0xff]
                %281 = vst [vmem:[%s181 + $0x188] sm:$0xff] %v280
                %v282 = vld [vmem:[%s180 + $0x7d0] sm:$0xff]
                %283 = vst [vmem:[%s181 + $0x190] sm:$0xff] %v282
                %v284 = vld [vmem:[%s180 + $0x7d8] sm:$0xff]
                %285 = vst [vmem:[%s181 + $0x198] sm:$0xff] %v284
                %v286 = vld [vmem:[%s180 + $0x820] sm:$0xff]
                %287 = vst [vmem:[%s181 + $0x1a0] sm:$0xff] %v286
                %v288 = vld [vmem:[%s180 + $0x828] sm:$0xff]
                %289 = vst [vmem:[%s181 + $0x1a8] sm:$0xff] %v288
                %v290 = vld [vmem:[%s180 + $0x870] sm:$0xff]
                %291 = vst [vmem:[%s181 + $0x1b0] sm:$0xff] %v290
                %v292 = vld [vmem:[%s180 + $0x878] sm:$0xff]
                %293 = vst [vmem:[%s181 + $0x1b8] sm:$0xff] %v292
                %v294 = vld [vmem:[%s180 + $0x8c0] sm:$0xff]
                %295 = vst [vmem:[%s181 + $0x1c0] sm:$0xff] %v294
                %v296 = vld [vmem:[%s180 + $0x8c8] sm:$0xff]
                %297 = vst [vmem:[%s181 + $0x1c8] sm:$0xff] %v296
                %v298 = vld [vmem:[%s180 + $0x910] sm:$0xff]
                %299 = vst [vmem:[%s181 + $0x1d0] sm:$0xff] %v298
                %v300 = vld [vmem:[%s180 + $0x918] sm:$0xff]
                %301 = vst [vmem:[%s181 + $0x1d8] sm:$0xff] %v300
                %v302 = vld [vmem:[%s180 + $0x960] sm:$0xff]
                %303 = vst [vmem:[%s181 + $0x1e0] sm:$0xff] %v302
                %v304 = vld [vmem:[%s180 + $0x968] sm:$0xff]
                %305 = vst [vmem:[%s181 + $0x1e8] sm:$0xff] %v304
                %v306 = vld [vmem:[%s180 + $0x9b0] sm:$0xff]
                %307 = vst [vmem:[%s181 + $0x1f0] sm:$0xff] %v306
                %v308 = vld [vmem:[%s180 + $0x9b8] sm:$0xff]
                %309 = vst [vmem:[%s181 + $0x1f8] sm:$0xff] %v308
              $region45: #{tpu_custom_call.1} parent=39 // loop_footer
                %s179 = sadd.s32 1, %s175
              $region46: #{tpu_custom_call.1} parent=39 // loop_footer_branch
                %174 = sbr.rel target = $region42
              $region47: #{tpu_custom_call.1} parent=39 // loop_exit
                _
            $region40: #{tpu_custom_call.1} parent=35 // pred_fallthru
              _
            // Predicated region
            $region48: #{tpu_custom_call.1} parent=35 // pred_check
              _
            $region49: #{tpu_custom_call.1} parent=35 // pred_check_branch
              %311 = sbr.rel target = $region51
            $region50: #{tpu_custom_call.1} parent=35 // pred_region
              _
            $region51: #{tpu_custom_call.1} parent=35 // pred_fallthru
              _
          $region36: #{tpu_custom_call.1} parent=31 // pred_fallthru
            _
          %312 = vnop
        $region32: #{tpu_custom_call.1} parent=23 // pred_fallthru
          _
      $region24: #{tpu_custom_call.1} parent=5 // pred_fallthru
        _
      %p313 = scmp.le.s32.totalorder 1, %s10
      %p314 = scmp.lt.s32.totalorder %s10, 6
      %p315 = pnand %p313, %p314
      %p316 = pneg %p315
      // Predicated region
      $region52: #{tpu_custom_call.1} parent=5 // pred_check
        _
      $region53: #{tpu_custom_call.1} parent=5 // pred_check_branch
        %318 = sbr.rel (%p315) target = $region55
      $region54: #{tpu_custom_call.1} parent=5 // pred_region
        %s319 = ssub.s32 %s10, 1
        %s320 = sand.u32 %s49, 1
        %s321 = sand.u32 %s49, 1
        %s322 = smul.addr %s321, 512
        %s323 = scalar_lea.vmem [#allocation2], %s322
        // Predicated region
        $region56: #{tpu_custom_call.1} parent=54 // pred_check
          %p324 = pneg %p62
        $region57: #{tpu_custom_call.1} parent=54 // pred_check_branch
          %326 = sbr.rel (%p324) target = $region59
        $region58: #{tpu_custom_call.1} parent=54 // pred_region
          _
        $region59: #{tpu_custom_call.1} parent=54 // pred_fallthru
          _
        %s327 = smul.u32 32, %s15
        %p328 = scmp.lt.s32.totalorder %s327, 159
        %s329 = scalar_select %p328, %s327, 159
        %s330 = smul.addr %s329, 7
        %s331 = smul.addr %s330, 8
        %s332 = scalar_lea.vmem %s0, %s331
        %p333 = pneg %p36
        %p334 = pneg %p33
        %s335 = sand.u32 %s49, 1
        %s336 = sand.u32 %s49, 1
        %s337 = smul.addr %s336, 512
        %s338 = scalar_lea.vmem [#allocation2], %s337
        %p339 = pneg %p62
        %p340 = pneg %p59
        %p341 = pneg %p83
        %p342 = pneg %p80
        %p343 = pneg %p104
        %p344 = pneg %p101
        %p345 = pneg %p125
        %p346 = pneg %p122
        %s347 = smul.u32 32, %s15
        %p348 = scmp.lt.s32.totalorder %s347, 159
        %s349 = scalar_select %p348, %s347, 159
        %s350 = smul.addr %s349, 7
        %s351 = smul.addr %s350, 8
        %s352 = scalar_lea.vmem %s0, %s351
        %s353 = smul.u32 32, %s15
        %s354 = smul.u32 2, %s15
        %p355 = scmp.eq.s32.totalorder %s15, 0
        // Predicated region
        $region60: #{tpu_custom_call.1} parent=54 // pred_check
          %p356 = pneg %p355
        $region61: #{tpu_custom_call.1} parent=54 // pred_check_branch
          %358 = sbr.rel (%p356) target = $region63
        $region62: #{tpu_custom_call.1} parent=54 // pred_region
          %359 = vst [vmem:[%s4] sm:$0xff] 0.0
          %360 = vst [vmem:[%s4 + $0x8] sm:$0xff] 0.0
          %361 = vst [vmem:[%s4 + $0x10] sm:$0xff] 0.0
          %362 = vst [vmem:[%s4 + $0x18] sm:$0xff] 0.0
          %363 = vst [vmem:[%s4 + $0x20] sm:$0xff] 0.0
          %364 = vst [vmem:[%s4 + $0x28] sm:$0xff] 0.0
          %vm365 = vcmask 130048
          %366 = vst.msk [vmem:[%s4 + $0x30] sm:$0xff] %vm365, 0.0
          %367 = vst [vmem:[%s4 + $0x38] sm:$0xff] 0.0
          %368 = vst [vmem:[%s4 + $0x40] sm:$0xff] 0.0
          %369 = vst [vmem:[%s4 + $0x48] sm:$0xff] 0.0
          %370 = vst [vmem:[%s4 + $0x50] sm:$0xff] 0.0
          %371 = vst [vmem:[%s4 + $0x58] sm:$0xff] 0.0
          %372 = vst [vmem:[%s4 + $0x60] sm:$0xff] 0.0
          %373 = vst.msk [vmem:[%s4 + $0x68] sm:$0xff] %vm365, 0.0
          %374 = vst [vmem:[%s4 + $0x70] sm:$0xff] 0.0
          %375 = vst [vmem:[%s4 + $0x78] sm:$0xff] 0.0
          %376 = vst [vmem:[%s4 + $0x80] sm:$0xff] 0.0
          %377 = vst [vmem:[%s4 + $0x88] sm:$0xff] 0.0
          %378 = vst [vmem:[%s4 + $0x90] sm:$0xff] 0.0
          %379 = vst [vmem:[%s4 + $0x98] sm:$0xff] 0.0
          %380 = vst.msk [vmem:[%s4 + $0xa0] sm:$0xff] %vm365, 0.0
          %381 = vst [vmem:[%s4 + $0xa8] sm:$0xff] 0.0
          %382 = vst [vmem:[%s4 + $0xb0] sm:$0xff] 0.0
          %383 = vst [vmem:[%s4 + $0xb8] sm:$0xff] 0.0
          %384 = vst [vmem:[%s4 + $0xc0] sm:$0xff] 0.0
          %385 = vst [vmem:[%s4 + $0xc8] sm:$0xff] 0.0
          %386 = vst [vmem:[%s4 + $0xd0] sm:$0xff] 0.0
          %387 = vst.msk [vmem:[%s4 + $0xd8] sm:$0xff] %vm365, 0.0
          %388 = vst [vmem:[%s4 + $0xe0] sm:$0xff] 0.0
          %389 = vst [vmem:[%s4 + $0xe8] sm:$0xff] 0.0
          %390 = vst [vmem:[%s4 + $0xf0] sm:$0xff] 0.0
          %391 = vst [vmem:[%s4 + $0xf8] sm:$0xff] 0.0
          %392 = vst [vmem:[%s4 + $0x100] sm:$0xff] 0.0
          %393 = vst [vmem:[%s4 + $0x108] sm:$0xff] 0.0
          %394 = vst.msk [vmem:[%s4 + $0x110] sm:$0xff] %vm365, 0.0
          %395 = vst [vmem:[%s4 + $0x118] sm:$0xff] 0.0
          %396 = vst [vmem:[%s4 + $0x120] sm:$0xff] 0.0
          %397 = vst [vmem:[%s4 + $0x128] sm:$0xff] 0.0
          %398 = vst [vmem:[%s4 + $0x130] sm:$0xff] 0.0
          %399 = vst [vmem:[%s4 + $0x138] sm:$0xff] 0.0
          %400 = vst [vmem:[%s4 + $0x140] sm:$0xff] 0.0
          %401 = vst.msk [vmem:[%s4 + $0x148] sm:$0xff] %vm365, 0.0
          %402 = vst [vmem:[%s4 + $0x150] sm:$0xff] 0.0
          %403 = vst [vmem:[%s4 + $0x158] sm:$0xff] 0.0
          %404 = vst [vmem:[%s4 + $0x160] sm:$0xff] 0.0
          %405 = vst [vmem:[%s4 + $0x168] sm:$0xff] 0.0
          %406 = vst [vmem:[%s4 + $0x170] sm:$0xff] 0.0
          %407 = vst [vmem:[%s4 + $0x178] sm:$0xff] 0.0
          %408 = vst.msk [vmem:[%s4 + $0x180] sm:$0xff] %vm365, 0.0
          %409 = vst [vmem:[%s4 + $0x188] sm:$0xff] 0.0
          %410 = vst [vmem:[%s4 + $0x190] sm:$0xff] 0.0
          %411 = vst [vmem:[%s4 + $0x198] sm:$0xff] 0.0
          %412 = vst [vmem:[%s4 + $0x1a0] sm:$0xff] 0.0
          %413 = vst [vmem:[%s4 + $0x1a8] sm:$0xff] 0.0
          %414 = vst [vmem:[%s4 + $0x1b0] sm:$0xff] 0.0
          %415 = vst.msk [vmem:[%s4 + $0x1b8] sm:$0xff] %vm365, 0.0
          %416 = vst [vmem:[%s4 + $0x1c0] sm:$0xff] 0.0
          %417 = vst [vmem:[%s4 + $0x1c8] sm:$0xff] 0.0
          %418 = vst [vmem:[%s4 + $0x1d0] sm:$0xff] 0.0
          %419 = vst [vmem:[%s4 + $0x1d8] sm:$0xff] 0.0
          %420 = vst [vmem:[%s4 + $0x1e0] sm:$0xff] 0.0
          %421 = vst [vmem:[%s4 + $0x1e8] sm:$0xff] 0.0
          %422 = vst.msk [vmem:[%s4 + $0x1f0] sm:$0xff] %vm365, 0.0
          %423 = vst [vmem:[%s4 + $0x1f8] sm:$0xff] 0.0
          %424 = vst [vmem:[%s4 + $0x200] sm:$0xff] 0.0
          %425 = vst [vmem:[%s4 + $0x208] sm:$0xff] 0.0
          %426 = vst [vmem:[%s4 + $0x210] sm:$0xff] 0.0
          %427 = vst [vmem:[%s4 + $0x218] sm:$0xff] 0.0
          %428 = vst [vmem:[%s4 + $0x220] sm:$0xff] 0.0
          %429 = vst.msk [vmem:[%s4 + $0x228] sm:$0xff] %vm365, 0.0
          %430 = vst [vmem:[%s4 + $0x230] sm:$0xff] 0.0
          %431 = vst [vmem:[%s4 + $0x238] sm:$0xff] 0.0
          %432 = vst [vmem:[%s4 + $0x240] sm:$0xff] 0.0
          %433 = vst [vmem:[%s4 + $0x248] sm:$0xff] 0.0
          %434 = vst [vmem:[%s4 + $0x250] sm:$0xff] 0.0
          %435 = vst [vmem:[%s4 + $0x258] sm:$0xff] 0.0
          %436 = vst.msk [vmem:[%s4 + $0x260] sm:$0xff] %vm365, 0.0
          %437 = vst [vmem:[%s4 + $0x268] sm:$0xff] 0.0
          %438 = vst [vmem:[%s4 + $0x270] sm:$0xff] 0.0
          %439 = vst [vmem:[%s4 + $0x278] sm:$0xff] 0.0
          %440 = vst [vmem:[%s4 + $0x280] sm:$0xff] 0.0
          %441 = vst [vmem:[%s4 + $0x288] sm:$0xff] 0.0
          %442 = vst [vmem:[%s4 + $0x290] sm:$0xff] 0.0
          %443 = vst.msk [vmem:[%s4 + $0x298] sm:$0xff] %vm365, 0.0
          %444 = vst [vmem:[%s4 + $0x2a0] sm:$0xff] 0.0
          %445 = vst [vmem:[%s4 + $0x2a8] sm:$0xff] 0.0
          %446 = vst [vmem:[%s4 + $0x2b0] sm:$0xff] 0.0
          %447 = vst [vmem:[%s4 + $0x2b8] sm:$0xff] 0.0
          %448 = vst [vmem:[%s4 + $0x2c0] sm:$0xff] 0.0
          %449 = vst [vmem:[%s4 + $0x2c8] sm:$0xff] 0.0
          %450 = vst.msk [vmem:[%s4 + $0x2d0] sm:$0xff] %vm365, 0.0
          %451 = vst [vmem:[%s4 + $0x2d8] sm:$0xff] 0.0
          %452 = vst [vmem:[%s4 + $0x2e0] sm:$0xff] 0.0
          %453 = vst [vmem:[%s4 + $0x2e8] sm:$0xff] 0.0
          %454 = vst [vmem:[%s4 + $0x2f0] sm:$0xff] 0.0
          %455 = vst [vmem:[%s4 + $0x2f8] sm:$0xff] 0.0
          %456 = vst [vmem:[%s4 + $0x300] sm:$0xff] 0.0
          %457 = vst.msk [vmem:[%s4 + $0x308] sm:$0xff] %vm365, 0.0
          %458 = vst [vmem:[%s4 + $0x310] sm:$0xff] 0.0
          %459 = vst [vmem:[%s4 + $0x318] sm:$0xff] 0.0
          %460 = vst [vmem:[%s4 + $0x320] sm:$0xff] 0.0
          %461 = vst [vmem:[%s4 + $0x328] sm:$0xff] 0.0
          %462 = vst [vmem:[%s4 + $0x330] sm:$0xff] 0.0
          %463 = vst [vmem:[%s4 + $0x338] sm:$0xff] 0.0
          %464 = vst.msk [vmem:[%s4 + $0x340] sm:$0xff] %vm365, 0.0
          %465 = vst [vmem:[%s4 + $0x348] sm:$0xff] 0.0
          %466 = vst [vmem:[%s4 + $0x350] sm:$0xff] 0.0
          %467 = vst [vmem:[%s4 + $0x358] sm:$0xff] 0.0
          %468 = vst [vmem:[%s4 + $0x360] sm:$0xff] 0.0
          %469 = vst [vmem:[%s4 + $0x368] sm:$0xff] 0.0
          %470 = vst [vmem:[%s4 + $0x370] sm:$0xff] 0.0
          %471 = vst.msk [vmem:[%s4 + $0x378] sm:$0xff] %vm365, 0.0
          %472 = vst [vmem:[%s4 + $0x380] sm:$0xff] 0.0
          %473 = vst [vmem:[%s4 + $0x388] sm:$0xff] 0.0
          %474 = vst [vmem:[%s4 + $0x390] sm:$0xff] 0.0
          %475 = vst [vmem:[%s4 + $0x398] sm:$0xff] 0.0
          %476 = vst [vmem:[%s4 + $0x3a0] sm:$0xff] 0.0
          %477 = vst [vmem:[%s4 + $0x3a8] sm:$0xff] 0.0
          %478 = vst.msk [vmem:[%s4 + $0x3b0] sm:$0xff] %vm365, 0.0
          %479 = vst [vmem:[%s4 + $0x3b8] sm:$0xff] 0.0
          %480 = vst [vmem:[%s4 + $0x3c0] sm:$0xff] 0.0
          %481 = vst [vmem:[%s4 + $0x3c8] sm:$0xff] 0.0
          %482 = vst [vmem:[%s4 + $0x3d0] sm:$0xff] 0.0
          %483 = vst [vmem:[%s4 + $0x3d8] sm:$0xff] 0.0
          %484 = vst [vmem:[%s4 + $0x3e0] sm:$0xff] 0.0
          %485 = vst.msk [vmem:[%s4 + $0x3e8] sm:$0xff] %vm365, 0.0
          %486 = vst [vmem:[%s4 + $0x3f0] sm:$0xff] 0.0
          %487 = vst [vmem:[%s4 + $0x3f8] sm:$0xff] 0.0
          %488 = vst [vmem:[%s4 + $0x400] sm:$0xff] 0.0
          %489 = vst [vmem:[%s4 + $0x408] sm:$0xff] 0.0
          %490 = vst [vmem:[%s4 + $0x410] sm:$0xff] 0.0
          %491 = vst [vmem:[%s4 + $0x418] sm:$0xff] 0.0
          %492 = vst.msk [vmem:[%s4 + $0x420] sm:$0xff] %vm365, 0.0
          %493 = vst [vmem:[%s4 + $0x428] sm:$0xff] 0.0
          %494 = vst [vmem:[%s4 + $0x430] sm:$0xff] 0.0
          %495 = vst [vmem:[%s4 + $0x438] sm:$0xff] 0.0
          %496 = vst [vmem:[%s4 + $0x440] sm:$0xff] 0.0
          %497 = vst [vmem:[%s4 + $0x448] sm:$0xff] 0.0
          %498 = vst [vmem:[%s4 + $0x450] sm:$0xff] 0.0
          %499 = vst.msk [vmem:[%s4 + $0x458] sm:$0xff] %vm365, 0.0
          %500 = vst [vmem:[%s4 + $0x460] sm:$0xff] 0.0
          %501 = vst [vmem:[%s4 + $0x468] sm:$0xff] 0.0
          %502 = vst [vmem:[%s4 + $0x470] sm:$0xff] 0.0
          %503 = vst [vmem:[%s4 + $0x478] sm:$0xff] 0.0
          %504 = vst [vmem:[%s4 + $0x480] sm:$0xff] 0.0
          %505 = vst [vmem:[%s4 + $0x488] sm:$0xff] 0.0
          %506 = vst.msk [vmem:[%s4 + $0x490] sm:$0xff] %vm365, 0.0
          %507 = vst [vmem:[%s4 + $0x498] sm:$0xff] 0.0
          %508 = vst [vmem:[%s4 + $0x4a0] sm:$0xff] 0.0
          %509 = vst [vmem:[%s4 + $0x4a8] sm:$0xff] 0.0
          %510 = vst [vmem:[%s4 + $0x4b0] sm:$0xff] 0.0
          %511 = vst [vmem:[%s4 + $0x4b8] sm:$0xff] 0.0
          %512 = vst [vmem:[%s4 + $0x4c0] sm:$0xff] 0.0
          %513 = vst.msk [vmem:[%s4 + $0x4c8] sm:$0xff] %vm365, 0.0
          %514 = vst [vmem:[%s4 + $0x4d0] sm:$0xff] 0.0
          %515 = vst [vmem:[%s4 + $0x4d8] sm:$0xff] 0.0
          %516 = vst [vmem:[%s4 + $0x4e0] sm:$0xff] 0.0
          %517 = vst [vmem:[%s4 + $0x4e8] sm:$0xff] 0.0
          %518 = vst [vmem:[%s4 + $0x4f0] sm:$0xff] 0.0
          %519 = vst [vmem:[%s4 + $0x4f8] sm:$0xff] 0.0
          %520 = vst.msk [vmem:[%s4 + $0x500] sm:$0xff] %vm365, 0.0
          %521 = vst [vmem:[%s4 + $0x508] sm:$0xff] 0.0
          %522 = vst [vmem:[%s4 + $0x510] sm:$0xff] 0.0
          %523 = vst [vmem:[%s4 + $0x518] sm:$0xff] 0.0
          %524 = vst [vmem:[%s4 + $0x520] sm:$0xff] 0.0
          %525 = vst [vmem:[%s4 + $0x528] sm:$0xff] 0.0
          %526 = vst [vmem:[%s4 + $0x530] sm:$0xff] 0.0
          %527 = vst.msk [vmem:[%s4 + $0x538] sm:$0xff] %vm365, 0.0
          %528 = vst [vmem:[%s4 + $0x540] sm:$0xff] 0.0
          %529 = vst [vmem:[%s4 + $0x548] sm:$0xff] 0.0
          %530 = vst [vmem:[%s4 + $0x550] sm:$0xff] 0.0
          %531 = vst [vmem:[%s4 + $0x558] sm:$0xff] 0.0
          %532 = vst [vmem:[%s4 + $0x560] sm:$0xff] 0.0
          %533 = vst [vmem:[%s4 + $0x568] sm:$0xff] 0.0
          %534 = vst.msk [vmem:[%s4 + $0x570] sm:$0xff] %vm365, 0.0
          %535 = vst [vmem:[%s4 + $0x578] sm:$0xff] 0.0
          %536 = vst [vmem:[%s4 + $0x580] sm:$0xff] 0.0
          %537 = vst [vmem:[%s4 + $0x588] sm:$0xff] 0.0
          %538 = vst [vmem:[%s4 + $0x590] sm:$0xff] 0.0
          %539 = vst [vmem:[%s4 + $0x598] sm:$0xff] 0.0
          %540 = vst [vmem:[%s4 + $0x5a0] sm:$0xff] 0.0
          %541 = vst.msk [vmem:[%s4 + $0x5a8] sm:$0xff] %vm365, 0.0
          %542 = vst [vmem:[%s4 + $0x5b0] sm:$0xff] 0.0
          %543 = vst [vmem:[%s4 + $0x5b8] sm:$0xff] 0.0
          %544 = vst [vmem:[%s4 + $0x5c0] sm:$0xff] 0.0
          %545 = vst [vmem:[%s4 + $0x5c8] sm:$0xff] 0.0
          %546 = vst [vmem:[%s4 + $0x5d0] sm:$0xff] 0.0
          %547 = vst [vmem:[%s4 + $0x5d8] sm:$0xff] 0.0
          %548 = vst.msk [vmem:[%s4 + $0x5e0] sm:$0xff] %vm365, 0.0
          %549 = vst [vmem:[%s4 + $0x5e8] sm:$0xff] 0.0
          %550 = vst [vmem:[%s4 + $0x5f0] sm:$0xff] 0.0
          %551 = vst [vmem:[%s4 + $0x5f8] sm:$0xff] 0.0
          %552 = vst [vmem:[%s4 + $0x600] sm:$0xff] 0.0
          %553 = vst [vmem:[%s4 + $0x608] sm:$0xff] 0.0
          %554 = vst [vmem:[%s4 + $0x610] sm:$0xff] 0.0
          %555 = vst.msk [vmem:[%s4 + $0x618] sm:$0xff] %vm365, 0.0
          %556 = vst [vmem:[%s4 + $0x620] sm:$0xff] 0.0
          %557 = vst [vmem:[%s4 + $0x628] sm:$0xff] 0.0
          %558 = vst [vmem:[%s4 + $0x630] sm:$0xff] 0.0
          %559 = vst [vmem:[%s4 + $0x638] sm:$0xff] 0.0
          %560 = vst [vmem:[%s4 + $0x640] sm:$0xff] 0.0
          %561 = vst [vmem:[%s4 + $0x648] sm:$0xff] 0.0
          %562 = vst.msk [vmem:[%s4 + $0x650] sm:$0xff] %vm365, 0.0
          %563 = vst [vmem:[%s4 + $0x658] sm:$0xff] 0.0
          %564 = vst [vmem:[%s4 + $0x660] sm:$0xff] 0.0
          %565 = vst [vmem:[%s4 + $0x668] sm:$0xff] 0.0
          %566 = vst [vmem:[%s4 + $0x670] sm:$0xff] 0.0
          %567 = vst [vmem:[%s4 + $0x678] sm:$0xff] 0.0
          %568 = vst [vmem:[%s4 + $0x680] sm:$0xff] 0.0
          %569 = vst.msk [vmem:[%s4 + $0x688] sm:$0xff] %vm365, 0.0
          %570 = vst [vmem:[%s4 + $0x690] sm:$0xff] 0.0
          %571 = vst [vmem:[%s4 + $0x698] sm:$0xff] 0.0
          %572 = vst [vmem:[%s4 + $0x6a0] sm:$0xff] 0.0
          %573 = vst [vmem:[%s4 + $0x6a8] sm:$0xff] 0.0
          %574 = vst [vmem:[%s4 + $0x6b0] sm:$0xff] 0.0
          %575 = vst [vmem:[%s4 + $0x6b8] sm:$0xff] 0.0
          %576 = vst.msk [vmem:[%s4 + $0x6c0] sm:$0xff] %vm365, 0.0
          %577 = vst [vmem:[%s4 + $0x6c8] sm:$0xff] 0.0
          %578 = vst [vmem:[%s4 + $0x6d0] sm:$0xff] 0.0
          %579 = vst [vmem:[%s4 + $0x6d8] sm:$0xff] 0.0
          %580 = vst [vmem:[%s4 + $0x6e0] sm:$0xff] 0.0
          %581 = vst [vmem:[%s4 + $0x6e8] sm:$0xff] 0.0
          %582 = vst [vmem:[%s4 + $0x6f0] sm:$0xff] 0.0
          %583 = vst.msk [vmem:[%s4 + $0x6f8] sm:$0xff] %vm365, 0.0
        $region63: #{tpu_custom_call.1} parent=54 // pred_fallthru
          _
        %v584 = vld [vmem:[%s4] sm:$0xff]
        %v585 = vld [vmem:[%s4 + $0x8] sm:$0xff]
        %v586 = vld [vmem:[%s4 + $0x10] sm:$0xff]
        %v587 = vld [vmem:[%s4 + $0x18] sm:$0xff]
        %v588 = vld [vmem:[%s4 + $0x20] sm:$0xff]
        %v589 = vld [vmem:[%s4 + $0x28] sm:$0xff]
        %v590 = vld [vmem:[%s4 + $0x30] sm:$0xff]
        %v591 = vld [vmem:[%s4 + $0x38] sm:$0xff]
        %v592 = vld [vmem:[%s4 + $0x40] sm:$0xff]
        %v593 = vld [vmem:[%s4 + $0x48] sm:$0xff]
        %v594 = vld [vmem:[%s4 + $0x50] sm:$0xff]
        %v595 = vld [vmem:[%s4 + $0x58] sm:$0xff]
        %v596 = vld [vmem:[%s4 + $0x60] sm:$0xff]
        %v597 = vld [vmem:[%s4 + $0x68] sm:$0xff]
        %v598 = vld [vmem:[%s4 + $0x70] sm:$0xff]
        %v599 = vld [vmem:[%s4 + $0x78] sm:$0xff]
        %v600 = vld [vmem:[%s4 + $0x80] sm:$0xff]
        %v601 = vld [vmem:[%s4 + $0x88] sm:$0xff]
        %v602 = vld [vmem:[%s4 + $0x90] sm:$0xff]
        %v603 = vld [vmem:[%s4 + $0x98] sm:$0xff]
        %v604 = vld [vmem:[%s4 + $0xa0] sm:$0xff]
        %v605 = vld [vmem:[%s4 + $0xa8] sm:$0xff]
        %v606 = vld [vmem:[%s4 + $0xb0] sm:$0xff]
        %v607 = vld [vmem:[%s4 + $0xb8] sm:$0xff]
        %v608 = vld [vmem:[%s4 + $0xc0] sm:$0xff]
        %v609 = vld [vmem:[%s4 + $0xc8] sm:$0xff]
        %v610 = vld [vmem:[%s4 + $0xd0] sm:$0xff]
        %v611 = vld [vmem:[%s4 + $0xd8] sm:$0xff]
        %v612 = vld [vmem:[%s4 + $0xe0] sm:$0xff]
        %v613 = vld [vmem:[%s4 + $0xe8] sm:$0xff]
        %v614 = vld [vmem:[%s4 + $0xf0] sm:$0xff]
        %v615 = vld [vmem:[%s4 + $0xf8] sm:$0xff]
        %v616 = vld [vmem:[%s4 + $0x100] sm:$0xff]
        %v617 = vld [vmem:[%s4 + $0x108] sm:$0xff]
        %v618 = vld [vmem:[%s4 + $0x110] sm:$0xff]
        %v619 = vld [vmem:[%s4 + $0x118] sm:$0xff]
        %v620 = vld [vmem:[%s4 + $0x120] sm:$0xff]
        %v621 = vld [vmem:[%s4 + $0x128] sm:$0xff]
        %v622 = vld [vmem:[%s4 + $0x130] sm:$0xff]
        %v623 = vld [vmem:[%s4 + $0x138] sm:$0xff]
        %v624 = vld [vmem:[%s4 + $0x140] sm:$0xff]
        %v625 = vld [vmem:[%s4 + $0x148] sm:$0xff]
        %v626 = vld [vmem:[%s4 + $0x150] sm:$0xff]
        %v627 = vld [vmem:[%s4 + $0x158] sm:$0xff]
        %v628 = vld [vmem:[%s4 + $0x160] sm:$0xff]
        %v629 = vld [vmem:[%s4 + $0x168] sm:$0xff]
        %v630 = vld [vmem:[%s4 + $0x170] sm:$0xff]
        %v631 = vld [vmem:[%s4 + $0x178] sm:$0xff]
        %v632 = vld [vmem:[%s4 + $0x180] sm:$0xff]
        %v633 = vld [vmem:[%s4 + $0x188] sm:$0xff]
        %v634 = vld [vmem:[%s4 + $0x190] sm:$0xff]
        %v635 = vld [vmem:[%s4 + $0x198] sm:$0xff]
        %v636 = vld [vmem:[%s4 + $0x1a0] sm:$0xff]
        %v637 = vld [vmem:[%s4 + $0x1a8] sm:$0xff]
        %v638 = vld [vmem:[%s4 + $0x1b0] sm:$0xff]
        %v639 = vld [vmem:[%s4 + $0x1b8] sm:$0xff]
        %v640 = vld [vmem:[%s4 + $0x1c0] sm:$0xff]
        %v641 = vld [vmem:[%s4 + $0x1c8] sm:$0xff]
        %v642 = vld [vmem:[%s4 + $0x1d0] sm:$0xff]
        %v643 = vld [vmem:[%s4 + $0x1d8] sm:$0xff]
        %v644 = vld [vmem:[%s4 + $0x1e0] sm:$0xff]
        %v645 = vld [vmem:[%s4 + $0x1e8] sm:$0xff]
        %v646 = vld [vmem:[%s4 + $0x1f0] sm:$0xff]
        %v647 = vld [vmem:[%s4 + $0x1f8] sm:$0xff]
        %v648 = vld [vmem:[%s4 + $0x200] sm:$0xff]
        %v649 = vld [vmem:[%s4 + $0x208] sm:$0xff]
        %v650 = vld [vmem:[%s4 + $0x210] sm:$0xff]
        %v651 = vld [vmem:[%s4 + $0x218] sm:$0xff]
        %v652 = vld [vmem:[%s4 + $0x220] sm:$0xff]
        %v653 = vld [vmem:[%s4 + $0x228] sm:$0xff]
        %v654 = vld [vmem:[%s4 + $0x230] sm:$0xff]
        %v655 = vld [vmem:[%s4 + $0x238] sm:$0xff]
        %v656 = vld [vmem:[%s4 + $0x240] sm:$0xff]
        %v657 = vld [vmem:[%s4 + $0x248] sm:$0xff]
        %v658 = vld [vmem:[%s4 + $0x250] sm:$0xff]
        %v659 = vld [vmem:[%s4 + $0x258] sm:$0xff]
        %v660 = vld [vmem:[%s4 + $0x260] sm:$0xff]
        %v661 = vld [vmem:[%s4 + $0x268] sm:$0xff]
        %v662 = vld [vmem:[%s4 + $0x270] sm:$0xff]
        %v663 = vld [vmem:[%s4 + $0x278] sm:$0xff]
        %v664 = vld [vmem:[%s4 + $0x280] sm:$0xff]
        %v665 = vld [vmem:[%s4 + $0x288] sm:$0xff]
        %v666 = vld [vmem:[%s4 + $0x290] sm:$0xff]
        %v667 = vld [vmem:[%s4 + $0x298] sm:$0xff]
        %v668 = vld [vmem:[%s4 + $0x2a0] sm:$0xff]
        %v669 = vld [vmem:[%s4 + $0x2a8] sm:$0xff]
        %v670 = vld [vmem:[%s4 + $0x2b0] sm:$0xff]
        %v671 = vld [vmem:[%s4 + $0x2b8] sm:$0xff]
        %v672 = vld [vmem:[%s4 + $0x2c0] sm:$0xff]
        %v673 = vld [vmem:[%s4 + $0x2c8] sm:$0xff]
        %v674 = vld [vmem:[%s4 + $0x2d0] sm:$0xff]
        %v675 = vld [vmem:[%s4 + $0x2d8] sm:$0xff]
        %v676 = vld [vmem:[%s4 + $0x2e0] sm:$0xff]
        %v677 = vld [vmem:[%s4 + $0x2e8] sm:$0xff]
        %v678 = vld [vmem:[%s4 + $0x2f0] sm:$0xff]
        %v679 = vld [vmem:[%s4 + $0x2f8] sm:$0xff]
        %v680 = vld [vmem:[%s4 + $0x300] sm:$0xff]
        %v681 = vld [vmem:[%s4 + $0x308] sm:$0xff]
        %v682 = vld [vmem:[%s4 + $0x310] sm:$0xff]
        %v683 = vld [vmem:[%s4 + $0x318] sm:$0xff]
        %v684 = vld [vmem:[%s4 + $0x320] sm:$0xff]
        %v685 = vld [vmem:[%s4 + $0x328] sm:$0xff]
        %v686 = vld [vmem:[%s4 + $0x330] sm:$0xff]
        %v687 = vld [vmem:[%s4 + $0x338] sm:$0xff]
        %v688 = vld [vmem:[%s4 + $0x340] sm:$0xff]
        %v689 = vld [vmem:[%s4 + $0x348] sm:$0xff]
        %v690 = vld [vmem:[%s4 + $0x350] sm:$0xff]
        %v691 = vld [vmem:[%s4 + $0x358] sm:$0xff]
        %v692 = vld [vmem:[%s4 + $0x360] sm:$0xff]
        %v693 = vld [vmem:[%s4 + $0x368] sm:$0xff]
        %v694 = vld [vmem:[%s4 + $0x370] sm:$0xff]
        %v695 = vld [vmem:[%s4 + $0x378] sm:$0xff]
        %v696 = vld [vmem:[%s4 + $0x380] sm:$0xff]
        %v697 = vld [vmem:[%s4 + $0x388] sm:$0xff]
        %v698 = vld [vmem:[%s4 + $0x390] sm:$0xff]
        %v699 = vld [vmem:[%s4 + $0x398] sm:$0xff]
        %v700 = vld [vmem:[%s4 + $0x3a0] sm:$0xff]
        %v701 = vld [vmem:[%s4 + $0x3a8] sm:$0xff]
        %v702 = vld [vmem:[%s4 + $0x3b0] sm:$0xff]
        %v703 = vld [vmem:[%s4 + $0x3b8] sm:$0xff]
        %v704 = vld [vmem:[%s4 + $0x3c0] sm:$0xff]
        %v705 = vld [vmem:[%s4 + $0x3c8] sm:$0xff]
        %v706 = vld [vmem:[%s4 + $0x3d0] sm:$0xff]
        %v707 = vld [vmem:[%s4 + $0x3d8] sm:$0xff]
        %v708 = vld [vmem:[%s4 + $0x3e0] sm:$0xff]
        %v709 = vld [vmem:[%s4 + $0x3e8] sm:$0xff]
        %v710 = vld [vmem:[%s4 + $0x3f0] sm:$0xff]
        %v711 = vld [vmem:[%s4 + $0x3f8] sm:$0xff]
        %v712 = vld [vmem:[%s4 + $0x400] sm:$0xff]
        %v713 = vld [vmem:[%s4 + $0x408] sm:$0xff]
        %v714 = vld [vmem:[%s4 + $0x410] sm:$0xff]
        %v715 = vld [vmem:[%s4 + $0x418] sm:$0xff]
        %v716 = vld [vmem:[%s4 + $0x420] sm:$0xff]
        %v717 = vld [vmem:[%s4 + $0x428] sm:$0xff]
        %v718 = vld [vmem:[%s4 + $0x430] sm:$0xff]
        %v719 = vld [vmem:[%s4 + $0x438] sm:$0xff]
        %v720 = vld [vmem:[%s4 + $0x440] sm:$0xff]
        %v721 = vld [vmem:[%s4 + $0x448] sm:$0xff]
        %v722 = vld [vmem:[%s4 + $0x450] sm:$0xff]
        %v723 = vld [vmem:[%s4 + $0x458] sm:$0xff]
        %v724 = vld [vmem:[%s4 + $0x460] sm:$0xff]
        %v725 = vld [vmem:[%s4 + $0x468] sm:$0xff]
        %v726 = vld [vmem:[%s4 + $0x470] sm:$0xff]
        %v727 = vld [vmem:[%s4 + $0x478] sm:$0xff]
        %v728 = vld [vmem:[%s4 + $0x480] sm:$0xff]
        %v729 = vld [vmem:[%s4 + $0x488] sm:$0xff]
        %v730 = vld [vmem:[%s4 + $0x490] sm:$0xff]
        %v731 = vld [vmem:[%s4 + $0x498] sm:$0xff]
        %v732 = vld [vmem:[%s4 + $0x4a0] sm:$0xff]
        %v733 = vld [vmem:[%s4 + $0x4a8] sm:$0xff]
        %v734 = vld [vmem:[%s4 + $0x4b0] sm:$0xff]
        %v735 = vld [vmem:[%s4 + $0x4b8] sm:$0xff]
        %v736 = vld [vmem:[%s4 + $0x4c0] sm:$0xff]
        %v737 = vld [vmem:[%s4 + $0x4c8] sm:$0xff]
        %v738 = vld [vmem:[%s4 + $0x4d0] sm:$0xff]
        %v739 = vld [vmem:[%s4 + $0x4d8] sm:$0xff]
        %v740 = vld [vmem:[%s4 + $0x4e0] sm:$0xff]
        %v741 = vld [vmem:[%s4 + $0x4e8] sm:$0xff]
        %v742 = vld [vmem:[%s4 + $0x4f0] sm:$0xff]
        %v743 = vld [vmem:[%s4 + $0x4f8] sm:$0xff]
        %v744 = vld [vmem:[%s4 + $0x500] sm:$0xff]
        %v745 = vld [vmem:[%s4 + $0x508] sm:$0xff]
        %v746 = vld [vmem:[%s4 + $0x510] sm:$0xff]
        %v747 = vld [vmem:[%s4 + $0x518] sm:$0xff]
        %v748 = vld [vmem:[%s4 + $0x520] sm:$0xff]
        %v749 = vld [vmem:[%s4 + $0x528] sm:$0xff]
        %v750 = vld [vmem:[%s4 + $0x530] sm:$0xff]
        %v751 = vld [vmem:[%s4 + $0x538] sm:$0xff]
        %v752 = vld [vmem:[%s4 + $0x540] sm:$0xff]
        %v753 = vld [vmem:[%s4 + $0x548] sm:$0xff]
        %v754 = vld [vmem:[%s4 + $0x550] sm:$0xff]
        %v755 = vld [vmem:[%s4 + $0x558] sm:$0xff]
        %v756 = vld [vmem:[%s4 + $0x560] sm:$0xff]
        %v757 = vld [vmem:[%s4 + $0x568] sm:$0xff]
        %v758 = vld [vmem:[%s4 + $0x570] sm:$0xff]
        %v759 = vld [vmem:[%s4 + $0x578] sm:$0xff]
        %v760 = vld [vmem:[%s4 + $0x580] sm:$0xff]
        %v761 = vld [vmem:[%s4 + $0x588] sm:$0xff]
        %v762 = vld [vmem:[%s4 + $0x590] sm:$0xff]
        %v763 = vld [vmem:[%s4 + $0x598] sm:$0xff]
        %v764 = vld [vmem:[%s4 + $0x5a0] sm:$0xff]
        %v765 = vld [vmem:[%s4 + $0x5a8] sm:$0xff]
        %v766 = vld [vmem:[%s4 + $0x5b0] sm:$0xff]
        %v767 = vld [vmem:[%s4 + $0x5b8] sm:$0xff]
        %v768 = vld [vmem:[%s4 + $0x5c0] sm:$0xff]
        %v769 = vld [vmem:[%s4 + $0x5c8] sm:$0xff]
        %v770 = vld [vmem:[%s4 + $0x5d0] sm:$0xff]
        %v771 = vld [vmem:[%s4 + $0x5d8] sm:$0xff]
        %v772 = vld [vmem:[%s4 + $0x5e0] sm:$0xff]
        %v773 = vld [vmem:[%s4 + $0x5e8] sm:$0xff]
        %v774 = vld [vmem:[%s4 + $0x5f0] sm:$0xff]
        %v775 = vld [vmem:[%s4 + $0x5f8] sm:$0xff]
        %v776 = vld [vmem:[%s4 + $0x600] sm:$0xff]
        %v777 = vld [vmem:[%s4 + $0x608] sm:$0xff]
        %v778 = vld [vmem:[%s4 + $0x610] sm:$0xff]
        %v779 = vld [vmem:[%s4 + $0x618] sm:$0xff]
        %v780 = vld [vmem:[%s4 + $0x620] sm:$0xff]
        %v781 = vld [vmem:[%s4 + $0x628] sm:$0xff]
        %v782 = vld [vmem:[%s4 + $0x630] sm:$0xff]
        %v783 = vld [vmem:[%s4 + $0x638] sm:$0xff]
        %v784 = vld [vmem:[%s4 + $0x640] sm:$0xff]
        %v785 = vld [vmem:[%s4 + $0x648] sm:$0xff]
        %v786 = vld [vmem:[%s4 + $0x650] sm:$0xff]
        %v787 = vld [vmem:[%s4 + $0x658] sm:$0xff]
        %v788 = vld [vmem:[%s4 + $0x660] sm:$0xff]
        %v789 = vld [vmem:[%s4 + $0x668] sm:$0xff]
        %v790 = vld [vmem:[%s4 + $0x670] sm:$0xff]
        %v791 = vld [vmem:[%s4 + $0x678] sm:$0xff]
        %v792 = vld [vmem:[%s4 + $0x680] sm:$0xff]
        %v793 = vld [vmem:[%s4 + $0x688] sm:$0xff]
        %v794 = vld [vmem:[%s4 + $0x690] sm:$0xff]
        %v795 = vld [vmem:[%s4 + $0x698] sm:$0xff]
        %v796 = vld [vmem:[%s4 + $0x6a0] sm:$0xff]
        %v797 = vld [vmem:[%s4 + $0x6a8] sm:$0xff]
        %v798 = vld [vmem:[%s4 + $0x6b0] sm:$0xff]
        %v799 = vld [vmem:[%s4 + $0x6b8] sm:$0xff]
        %v800 = vld [vmem:[%s4 + $0x6c0] sm:$0xff]
        %v801 = vld [vmem:[%s4 + $0x6c8] sm:$0xff]
        %v802 = vld [vmem:[%s4 + $0x6d0] sm:$0xff]
        %v803 = vld [vmem:[%s4 + $0x6d8] sm:$0xff]
        %v804 = vld [vmem:[%s4 + $0x6e0] sm:$0xff]
        %v805 = vld [vmem:[%s4 + $0x6e8] sm:$0xff]
        %v806 = vld [vmem:[%s4 + $0x6f0] sm:$0xff]
        %v807 = vld [vmem:[%s4 + $0x6f8] sm:$0xff]
        %v808 = vld [vmem:[%s323] sm:$0xff]
        %v809 = vld [vmem:[%s323 + $0x8] sm:$0xff]
        %v810 = vld [vmem:[%s323 + $0x10] sm:$0xff]
        %v811 = vld [vmem:[%s323 + $0x18] sm:$0xff]
        %v812 = vld [vmem:[%s323 + $0x20] sm:$0xff]
        %v813 = vld [vmem:[%s323 + $0x28] sm:$0xff]
        %v814 = vld [vmem:[%s323 + $0x30] sm:$0xff]
        %v815 = vld [vmem:[%s323 + $0x38] sm:$0xff]
        %v816 = vld [vmem:[%s323 + $0x40] sm:$0xff]
        %v817 = vld [vmem:[%s323 + $0x48] sm:$0xff]
        %v818 = vld [vmem:[%s323 + $0x50] sm:$0xff]
        %v819 = vld [vmem:[%s323 + $0x58] sm:$0xff]
        %v820 = vld [vmem:[%s323 + $0x60] sm:$0xff]
        %v821 = vld [vmem:[%s323 + $0x68] sm:$0xff]
        %v822 = vld [vmem:[%s323 + $0x70] sm:$0xff]
        %v823 = vld [vmem:[%s323 + $0x78] sm:$0xff]
        %v824 = vld [vmem:[%s323 + $0x80] sm:$0xff]
        %v825 = vld [vmem:[%s323 + $0x88] sm:$0xff]
        %v826 = vld [vmem:[%s323 + $0x90] sm:$0xff]
        %v827 = vld [vmem:[%s323 + $0x98] sm:$0xff]
        %v828 = vld [vmem:[%s323 + $0xa0] sm:$0xff]
        %v829 = vld [vmem:[%s323 + $0xa8] sm:$0xff]
        %v830 = vld [vmem:[%s323 + $0xb0] sm:$0xff]
        %v831 = vld [vmem:[%s323 + $0xb8] sm:$0xff]
        %v832 = vld [vmem:[%s323 + $0xc0] sm:$0xff]
        %v833 = vld [vmem:[%s323 + $0xc8] sm:$0xff]
        %v834 = vld [vmem:[%s323 + $0xd0] sm:$0xff]
        %v835 = vld [vmem:[%s323 + $0xd8] sm:$0xff]
        %v836 = vld [vmem:[%s323 + $0xe0] sm:$0xff]
        %v837 = vld [vmem:[%s323 + $0xe8] sm:$0xff]
        %v838 = vld [vmem:[%s323 + $0xf0] sm:$0xff]
        %v839 = vld [vmem:[%s323 + $0xf8] sm:$0xff]
        %v840 = vld [vmem:[%s323 + $0x100] sm:$0xff]
        %v841 = vld [vmem:[%s323 + $0x108] sm:$0xff]
        %v842 = vld [vmem:[%s323 + $0x110] sm:$0xff]
        %v843 = vld [vmem:[%s323 + $0x118] sm:$0xff]
        %v844 = vld [vmem:[%s323 + $0x120] sm:$0xff]
        %v845 = vld [vmem:[%s323 + $0x128] sm:$0xff]
        %v846 = vld [vmem:[%s323 + $0x130] sm:$0xff]
        %v847 = vld [vmem:[%s323 + $0x138] sm:$0xff]
        %v848 = vld [vmem:[%s323 + $0x140] sm:$0xff]
        %v849 = vld [vmem:[%s323 + $0x148] sm:$0xff]
        %v850 = vld [vmem:[%s323 + $0x150] sm:$0xff]
        %v851 = vld [vmem:[%s323 + $0x158] sm:$0xff]
        %v852 = vld [vmem:[%s323 + $0x160] sm:$0xff]
        %v853 = vld [vmem:[%s323 + $0x168] sm:$0xff]
        %v854 = vld [vmem:[%s323 + $0x170] sm:$0xff]
        %v855 = vld [vmem:[%s323 + $0x178] sm:$0xff]
        %v856 = vld [vmem:[%s323 + $0x180] sm:$0xff]
        %v857 = vld [vmem:[%s323 + $0x188] sm:$0xff]
        %v858 = vld [vmem:[%s323 + $0x190] sm:$0xff]
        %v859 = vld [vmem:[%s323 + $0x198] sm:$0xff]
        %v860 = vld [vmem:[%s323 + $0x1a0] sm:$0xff]
        %v861 = vld [vmem:[%s323 + $0x1a8] sm:$0xff]
        %v862 = vld [vmem:[%s323 + $0x1b0] sm:$0xff]
        %v863 = vld [vmem:[%s323 + $0x1b8] sm:$0xff]
        %v864 = vld [vmem:[%s323 + $0x1c0] sm:$0xff]
        %v865 = vld [vmem:[%s323 + $0x1c8] sm:$0xff]
        %v866 = vld [vmem:[%s323 + $0x1d0] sm:$0xff]
        %v867 = vld [vmem:[%s323 + $0x1d8] sm:$0xff]
        %v868 = vld [vmem:[%s323 + $0x1e0] sm:$0xff]
        %v869 = vld [vmem:[%s323 + $0x1e8] sm:$0xff]
        %v870 = vld [vmem:[%s323 + $0x1f0] sm:$0xff]
        %v871 = vld [vmem:[%s323 + $0x1f8] sm:$0xff]
        %v872 = vld [vmem:[%s352] sm:$0xff]
        %v873 = vld [vmem:[%s352 + $0x8] sm:$0xff]
        %v874 = vld [vmem:[%s352 + $0x10] sm:$0xff]
        %v875 = vld [vmem:[%s352 + $0x18] sm:$0xff]
        %v876 = vld [vmem:[%s352 + $0x20] sm:$0xff]
        %v877 = vld [vmem:[%s352 + $0x28] sm:$0xff]
        %v878 = vld [vmem:[%s352 + $0x30] sm:$0xff]
        %v879 = vld [vmem:[%s352 + $0x38] sm:$0xff]
        %v880 = vld [vmem:[%s352 + $0x40] sm:$0xff]
        %v881 = vld [vmem:[%s352 + $0x48] sm:$0xff]
        %v882 = vld [vmem:[%s352 + $0x50] sm:$0xff]
        %v883 = vld [vmem:[%s352 + $0x58] sm:$0xff]
        %v884 = vld [vmem:[%s352 + $0x60] sm:$0xff]
        %v885 = vld [vmem:[%s352 + $0x68] sm:$0xff]
        %v886 = vld [vmem:[%s352 + $0x70] sm:$0xff]
        %v887 = vld [vmem:[%s352 + $0x78] sm:$0xff]
        %v888 = vld [vmem:[%s352 + $0x80] sm:$0xff]
        %v889 = vld [vmem:[%s352 + $0x88] sm:$0xff]
        %v890 = vld [vmem:[%s352 + $0x90] sm:$0xff]
        %v891 = vld [vmem:[%s352 + $0x98] sm:$0xff]
        %v892 = vld [vmem:[%s352 + $0xa0] sm:$0xff]
        %v893 = vld [vmem:[%s352 + $0xa8] sm:$0xff]
        %v894 = vld [vmem:[%s352 + $0xb0] sm:$0xff]
        %v895 = vld [vmem:[%s352 + $0xb8] sm:$0xff]
        %v896 = vld [vmem:[%s352 + $0xc0] sm:$0xff]
        %v897 = vld [vmem:[%s352 + $0xc8] sm:$0xff]
        %v898 = vld [vmem:[%s352 + $0xd0] sm:$0xff]
        %v899 = vld [vmem:[%s352 + $0xd8] sm:$0xff]
        %v900 = vld [vmem:[%s352 + $0xe0] sm:$0xff]
        %v901 = vld [vmem:[%s352 + $0xe8] sm:$0xff]
        %v902 = vld [vmem:[%s352 + $0xf0] sm:$0xff]
        %v903 = vld [vmem:[%s352 + $0xf8] sm:$0xff]
        %v904 = vld [vmem:[%s352 + $0x100] sm:$0xff]
        %v905 = vld [vmem:[%s352 + $0x108] sm:$0xff]
        %v906 = vld [vmem:[%s352 + $0x110] sm:$0xff]
        %v907 = vld [vmem:[%s352 + $0x118] sm:$0xff]
        %v908 = vld [vmem:[%s352 + $0x120] sm:$0xff]
        %v909 = vld [vmem:[%s352 + $0x128] sm:$0xff]
        %v910 = vld [vmem:[%s352 + $0x130] sm:$0xff]
        %v911 = vld [vmem:[%s352 + $0x138] sm:$0xff]
        %v912 = vld [vmem:[%s352 + $0x140] sm:$0xff]
        %v913 = vld [vmem:[%s352 + $0x148] sm:$0xff]
        %v914 = vld [vmem:[%s352 + $0x150] sm:$0xff]
        %v915 = vld [vmem:[%s352 + $0x158] sm:$0xff]
        %v916 = vld [vmem:[%s352 + $0x160] sm:$0xff]
        %v917 = vld [vmem:[%s352 + $0x168] sm:$0xff]
        %v918 = vld [vmem:[%s352 + $0x170] sm:$0xff]
        %v919 = vld [vmem:[%s352 + $0x178] sm:$0xff]
        %v920 = vld [vmem:[%s352 + $0x180] sm:$0xff]
        %v921 = vld [vmem:[%s352 + $0x188] sm:$0xff]
        %v922 = vld [vmem:[%s352 + $0x190] sm:$0xff]
        %v923 = vld [vmem:[%s352 + $0x198] sm:$0xff]
        %v924 = vld [vmem:[%s352 + $0x1a0] sm:$0xff]
        %v925 = vld [vmem:[%s352 + $0x1a8] sm:$0xff]
        %v926 = vld [vmem:[%s352 + $0x1b0] sm:$0xff]
        %v927 = vld [vmem:[%s352 + $0x1b8] sm:$0xff]
        %v928 = vld [vmem:[%s352 + $0x1c0] sm:$0xff]
        %v929 = vld [vmem:[%s352 + $0x1c8] sm:$0xff]
        %v930 = vld [vmem:[%s352 + $0x1d0] sm:$0xff]
        %v931 = vld [vmem:[%s352 + $0x1d8] sm:$0xff]
        %v932 = vld [vmem:[%s352 + $0x1e0] sm:$0xff]
        %v933 = vld [vmem:[%s352 + $0x1e8] sm:$0xff]
        %v934 = vld [vmem:[%s352 + $0x1f0] sm:$0xff]
        %v935 = vld [vmem:[%s352 + $0x1f8] sm:$0xff]
        %v936 = vld [vmem:[%s352 + $0x200] sm:$0xff]
        %v937 = vld [vmem:[%s352 + $0x208] sm:$0xff]
        %v938 = vld [vmem:[%s352 + $0x210] sm:$0xff]
        %v939 = vld [vmem:[%s352 + $0x218] sm:$0xff]
        %v940 = vld [vmem:[%s352 + $0x220] sm:$0xff]
        %v941 = vld [vmem:[%s352 + $0x228] sm:$0xff]
        %v942 = vld [vmem:[%s352 + $0x230] sm:$0xff]
        %v943 = vld [vmem:[%s352 + $0x238] sm:$0xff]
        %v944 = vld [vmem:[%s352 + $0x240] sm:$0xff]
        %v945 = vld [vmem:[%s352 + $0x248] sm:$0xff]
        %v946 = vld [vmem:[%s352 + $0x250] sm:$0xff]
        %v947 = vld [vmem:[%s352 + $0x258] sm:$0xff]
        %v948 = vld [vmem:[%s352 + $0x260] sm:$0xff]
        %v949 = vld [vmem:[%s352 + $0x268] sm:$0xff]
        %v950 = vld [vmem:[%s352 + $0x270] sm:$0xff]
        %v951 = vld [vmem:[%s352 + $0x278] sm:$0xff]
        %v952 = vld [vmem:[%s352 + $0x280] sm:$0xff]
        %v953 = vld [vmem:[%s352 + $0x288] sm:$0xff]
        %v954 = vld [vmem:[%s352 + $0x290] sm:$0xff]
        %v955 = vld [vmem:[%s352 + $0x298] sm:$0xff]
        %v956 = vld [vmem:[%s352 + $0x2a0] sm:$0xff]
        %v957 = vld [vmem:[%s352 + $0x2a8] sm:$0xff]
        %v958 = vld [vmem:[%s352 + $0x2b0] sm:$0xff]
        %v959 = vld [vmem:[%s352 + $0x2b8] sm:$0xff]
        %v960 = vld [vmem:[%s352 + $0x2c0] sm:$0xff]
        %v961 = vld [vmem:[%s352 + $0x2c8] sm:$0xff]
        %v962 = vld [vmem:[%s352 + $0x2d0] sm:$0xff]
        %v963 = vld [vmem:[%s352 + $0x2d8] sm:$0xff]
        %v964 = vld [vmem:[%s352 + $0x2e0] sm:$0xff]
        %v965 = vld [vmem:[%s352 + $0x2e8] sm:$0xff]
        %v966 = vld [vmem:[%s352 + $0x2f0] sm:$0xff]
        %v967 = vld [vmem:[%s352 + $0x2f8] sm:$0xff]
        %v968 = vld [vmem:[%s352 + $0x300] sm:$0xff]
        %v969 = vld [vmem:[%s352 + $0x308] sm:$0xff]
        %v970 = vld [vmem:[%s352 + $0x310] sm:$0xff]
        %v971 = vld [vmem:[%s352 + $0x318] sm:$0xff]
        %v972 = vld [vmem:[%s352 + $0x320] sm:$0xff]
        %v973 = vld [vmem:[%s352 + $0x328] sm:$0xff]
        %v974 = vld [vmem:[%s352 + $0x330] sm:$0xff]
        %v975 = vld [vmem:[%s352 + $0x338] sm:$0xff]
        %v976 = vld [vmem:[%s352 + $0x340] sm:$0xff]
        %v977 = vld [vmem:[%s352 + $0x348] sm:$0xff]
        %v978 = vld [vmem:[%s352 + $0x350] sm:$0xff]
        %v979 = vld [vmem:[%s352 + $0x358] sm:$0xff]
        %v980 = vld [vmem:[%s352 + $0x360] sm:$0xff]
        %v981 = vld [vmem:[%s352 + $0x368] sm:$0xff]
        %v982 = vld [vmem:[%s352 + $0x370] sm:$0xff]
        %v983 = vld [vmem:[%s352 + $0x378] sm:$0xff]
        %v984 = vld [vmem:[%s352 + $0x380] sm:$0xff]
        %v985 = vld [vmem:[%s352 + $0x388] sm:$0xff]
        %v986 = vld [vmem:[%s352 + $0x390] sm:$0xff]
        %v987 = vld [vmem:[%s352 + $0x398] sm:$0xff]
        %v988 = vld [vmem:[%s352 + $0x3a0] sm:$0xff]
        %v989 = vld [vmem:[%s352 + $0x3a8] sm:$0xff]
        %v990 = vld [vmem:[%s352 + $0x3b0] sm:$0xff]
        %v991 = vld [vmem:[%s352 + $0x3b8] sm:$0xff]
        %v992 = vld [vmem:[%s352 + $0x3c0] sm:$0xff]
        %v993 = vld [vmem:[%s352 + $0x3c8] sm:$0xff]
        %v994 = vld [vmem:[%s352 + $0x3d0] sm:$0xff]
        %v995 = vld [vmem:[%s352 + $0x3d8] sm:$0xff]
        %v996 = vld [vmem:[%s352 + $0x3e0] sm:$0xff]
        %v997 = vld [vmem:[%s352 + $0x3e8] sm:$0xff]
        %v998 = vld [vmem:[%s352 + $0x3f0] sm:$0xff]
        %v999 = vld [vmem:[%s352 + $0x3f8] sm:$0xff]
        %v1000 = vld [vmem:[%s352 + $0x400] sm:$0xff]
        %v1001 = vld [vmem:[%s352 + $0x408] sm:$0xff]
        %v1002 = vld [vmem:[%s352 + $0x410] sm:$0xff]
        %v1003 = vld [vmem:[%s352 + $0x418] sm:$0xff]
        %v1004 = vld [vmem:[%s352 + $0x420] sm:$0xff]
        %v1005 = vld [vmem:[%s352 + $0x428] sm:$0xff]
        %v1006 = vld [vmem:[%s352 + $0x430] sm:$0xff]
        %v1007 = vld [vmem:[%s352 + $0x438] sm:$0xff]
        %v1008 = vld [vmem:[%s352 + $0x440] sm:$0xff]
        %v1009 = vld [vmem:[%s352 + $0x448] sm:$0xff]
        %v1010 = vld [vmem:[%s352 + $0x450] sm:$0xff]
        %v1011 = vld [vmem:[%s352 + $0x458] sm:$0xff]
        %v1012 = vld [vmem:[%s352 + $0x460] sm:$0xff]
        %v1013 = vld [vmem:[%s352 + $0x468] sm:$0xff]
        %v1014 = vld [vmem:[%s352 + $0x470] sm:$0xff]
        %v1015 = vld [vmem:[%s352 + $0x478] sm:$0xff]
        %v1016 = vld [vmem:[%s352 + $0x480] sm:$0xff]
        %v1017 = vld [vmem:[%s352 + $0x488] sm:$0xff]
        %v1018 = vld [vmem:[%s352 + $0x490] sm:$0xff]
        %v1019 = vld [vmem:[%s352 + $0x498] sm:$0xff]
        %v1020 = vld [vmem:[%s352 + $0x4a0] sm:$0xff]
        %v1021 = vld [vmem:[%s352 + $0x4a8] sm:$0xff]
        %v1022 = vld [vmem:[%s352 + $0x4b0] sm:$0xff]
        %v1023 = vld [vmem:[%s352 + $0x4b8] sm:$0xff]
        %v1024 = vld [vmem:[%s352 + $0x4c0] sm:$0xff]
        %v1025 = vld [vmem:[%s352 + $0x4c8] sm:$0xff]
        %v1026 = vld [vmem:[%s352 + $0x4d0] sm:$0xff]
        %v1027 = vld [vmem:[%s352 + $0x4d8] sm:$0xff]
        %v1028 = vld [vmem:[%s352 + $0x4e0] sm:$0xff]
        %v1029 = vld [vmem:[%s352 + $0x4e8] sm:$0xff]
        %v1030 = vld [vmem:[%s352 + $0x4f0] sm:$0xff]
        %v1031 = vld [vmem:[%s352 + $0x4f8] sm:$0xff]
        %v1032 = vld [vmem:[%s352 + $0x500] sm:$0xff]
        %v1033 = vld [vmem:[%s352 + $0x508] sm:$0xff]
        %v1034 = vld [vmem:[%s352 + $0x510] sm:$0xff]
        %v1035 = vld [vmem:[%s352 + $0x518] sm:$0xff]
        %v1036 = vld [vmem:[%s352 + $0x520] sm:$0xff]
        %v1037 = vld [vmem:[%s352 + $0x528] sm:$0xff]
        %v1038 = vld [vmem:[%s352 + $0x530] sm:$0xff]
        %v1039 = vld [vmem:[%s352 + $0x538] sm:$0xff]
        %v1040 = vld [vmem:[%s352 + $0x540] sm:$0xff]
        %v1041 = vld [vmem:[%s352 + $0x548] sm:$0xff]
        %v1042 = vld [vmem:[%s352 + $0x550] sm:$0xff]
        %v1043 = vld [vmem:[%s352 + $0x558] sm:$0xff]
        %v1044 = vld [vmem:[%s352 + $0x560] sm:$0xff]
        %v1045 = vld [vmem:[%s352 + $0x568] sm:$0xff]
        %v1046 = vld [vmem:[%s352 + $0x570] sm:$0xff]
        %v1047 = vld [vmem:[%s352 + $0x578] sm:$0xff]
        %v1048 = vld [vmem:[%s352 + $0x580] sm:$0xff]
        %v1049 = vld [vmem:[%s352 + $0x588] sm:$0xff]
        %v1050 = vld [vmem:[%s352 + $0x590] sm:$0xff]
        %v1051 = vld [vmem:[%s352 + $0x598] sm:$0xff]
        %v1052 = vld [vmem:[%s352 + $0x5a0] sm:$0xff]
        %v1053 = vld [vmem:[%s352 + $0x5a8] sm:$0xff]
        %v1054 = vld [vmem:[%s352 + $0x5b0] sm:$0xff]
        %v1055 = vld [vmem:[%s352 + $0x5b8] sm:$0xff]
        %v1056 = vld [vmem:[%s352 + $0x5c0] sm:$0xff]
        %v1057 = vld [vmem:[%s352 + $0x5c8] sm:$0xff]
        %v1058 = vld [vmem:[%s352 + $0x5d0] sm:$0xff]
        %v1059 = vld [vmem:[%s352 + $0x5d8] sm:$0xff]
        %v1060 = vld [vmem:[%s352 + $0x5e0] sm:$0xff]
        %v1061 = vld [vmem:[%s352 + $0x5e8] sm:$0xff]
        %v1062 = vld [vmem:[%s352 + $0x5f0] sm:$0xff]
        %v1063 = vld [vmem:[%s352 + $0x5f8] sm:$0xff]
        %v1064 = vld [vmem:[%s352 + $0x600] sm:$0xff]
        %v1065 = vld [vmem:[%s352 + $0x608] sm:$0xff]
        %v1066 = vld [vmem:[%s352 + $0x610] sm:$0xff]
        %v1067 = vld [vmem:[%s352 + $0x618] sm:$0xff]
        %v1068 = vld [vmem:[%s352 + $0x620] sm:$0xff]
        %v1069 = vld [vmem:[%s352 + $0x628] sm:$0xff]
        %v1070 = vld [vmem:[%s352 + $0x630] sm:$0xff]
        %v1071 = vld [vmem:[%s352 + $0x638] sm:$0xff]
        %v1072 = vld [vmem:[%s352 + $0x640] sm:$0xff]
        %v1073 = vld [vmem:[%s352 + $0x648] sm:$0xff]
        %v1074 = vld [vmem:[%s352 + $0x650] sm:$0xff]
        %v1075 = vld [vmem:[%s352 + $0x658] sm:$0xff]
        %v1076 = vld [vmem:[%s352 + $0x660] sm:$0xff]
        %v1077 = vld [vmem:[%s352 + $0x668] sm:$0xff]
        %v1078 = vld [vmem:[%s352 + $0x670] sm:$0xff]
        %v1079 = vld [vmem:[%s352 + $0x678] sm:$0xff]
        %v1080 = vld [vmem:[%s352 + $0x680] sm:$0xff]
        %v1081 = vld [vmem:[%s352 + $0x688] sm:$0xff]
        %v1082 = vld [vmem:[%s352 + $0x690] sm:$0xff]
        %v1083 = vld [vmem:[%s352 + $0x698] sm:$0xff]
        %v1084 = vld [vmem:[%s352 + $0x6a0] sm:$0xff]
        %v1085 = vld [vmem:[%s352 + $0x6a8] sm:$0xff]
        %v1086 = vld [vmem:[%s352 + $0x6b0] sm:$0xff]
        %v1087 = vld [vmem:[%s352 + $0x6b8] sm:$0xff]
        %v1088 = vld [vmem:[%s352 + $0x6c0] sm:$0xff]
        %v1089 = vld [vmem:[%s352 + $0x6c8] sm:$0xff]
        %v1090 = vld [vmem:[%s352 + $0x6d0] sm:$0xff]
        %v1091 = vld [vmem:[%s352 + $0x6d8] sm:$0xff]
        %v1092 = vld [vmem:[%s352 + $0x6e0] sm:$0xff]
        %v1093 = vld [vmem:[%s352 + $0x6e8] sm:$0xff]
        %v1094 = vld [vmem:[%s352 + $0x6f0] sm:$0xff]
        %v1095 = vld [vmem:[%s352 + $0x6f8] sm:$0xff]
        %1096 = vmatpush.msra.mxu0 %v977
        %1097 = vmatpush.msra.mxu0 %v970
        %1098 = vmatpush.msra.mxu0 %v963
        %1099 = vmatpush.msra.mxu0 %v956
        %1100 = vmatpush.msra.mxu0 %v949
        %1101 = vmatpush.msra.mxu0 %v942
        %1102 = vmatpush.msra.mxu0 %v935
        %1103 = vmatpush.msra.mxu0 %v928
        %1104 = vmatpush.msra.mxu0 %v921
        %1105 = vmatpush.msra.mxu0 %v914
        %1106 = vmatpush.msra.mxu0 %v907
        %1107 = vmatpush.msra.mxu0 %v900
        %1108 = vmatpush.msra.mxu0 %v893
        %1109 = vmatpush.msra.mxu0 %v886
        %1110 = vmatpush.msra.mxu0 %v879
        %1111 = vmatpush.msra.mxu0 %v872
        %1112 = vmatmul.f32.gmra.mxu0 %v808
        %v1113 = vpop.f32.mrf.mxu0
        %v1114 = vadd.f32 0.0, %v1113
        %1115 = vmatmul.f32.gmra.mxu0 %v810
        %v1116 = vpop.f32.mrf.mxu0
        %v1117 = vadd.f32 0.0, %v1116
        %1118 = vmatmul.f32.gmra.mxu0 %v812
        %v1119 = vpop.f32.mrf.mxu0
        %v1120 = vadd.f32 0.0, %v1119
        %1121 = vmatmul.f32.gmra.mxu0 %v814
        %v1122 = vpop.f32.mrf.mxu0
        %v1123 = vadd.f32 0.0, %v1122
        %1124 = vmatmul.f32.gmra.mxu0 %v816
        %v1125 = vpop.f32.mrf.mxu0
        %v1126 = vadd.f32 0.0, %v1125
        %1127 = vmatmul.f32.gmra.mxu0 %v818
        %v1128 = vpop.f32.mrf.mxu0
        %v1129 = vadd.f32 0.0, %v1128
        %1130 = vmatmul.f32.gmra.mxu0 %v820
        %v1131 = vpop.f32.mrf.mxu0
        %v1132 = vadd.f32 0.0, %v1131
        %1133 = vmatmul.f32.gmra.mxu0 %v822
        %v1134 = vpop.f32.mrf.mxu0
        %v1135 = vadd.f32 0.0, %v1134
        %1136 = vmatmul.f32.gmra.mxu0 %v824
        %v1137 = vpop.f32.mrf.mxu0
        %v1138 = vadd.f32 0.0, %v1137
        %1139 = vmatmul.f32.gmra.mxu0 %v826
        %v1140 = vpop.f32.mrf.mxu0
        %v1141 = vadd.f32 0.0, %v1140
        %1142 = vmatmul.f32.gmra.mxu0 %v828
        %v1143 = vpop.f32.mrf.mxu0
        %v1144 = vadd.f32 0.0, %v1143
        %1145 = vmatmul.f32.gmra.mxu0 %v830
        %v1146 = vpop.f32.mrf.mxu0
        %v1147 = vadd.f32 0.0, %v1146
        %1148 = vmatmul.f32.gmra.mxu0 %v832
        %v1149 = vpop.f32.mrf.mxu0
        %v1150 = vadd.f32 0.0, %v1149
        %1151 = vmatmul.f32.gmra.mxu0 %v834
        %v1152 = vpop.f32.mrf.mxu0
        %v1153 = vadd.f32 0.0, %v1152
        %1154 = vmatmul.f32.gmra.mxu0 %v836
        %v1155 = vpop.f32.mrf.mxu0
        %v1156 = vadd.f32 0.0, %v1155
        %1157 = vmatmul.f32.gmra.mxu0 %v838
        %v1158 = vpop.f32.mrf.mxu0
        %v1159 = vadd.f32 0.0, %v1158
        %1160 = vmatmul.f32.gmra.mxu0 %v840
        %v1161 = vpop.f32.mrf.mxu0
        %v1162 = vadd.f32 0.0, %v1161
        %1163 = vmatmul.f32.gmra.mxu0 %v842
        %v1164 = vpop.f32.mrf.mxu0
        %v1165 = vadd.f32 0.0, %v1164
        %1166 = vmatmul.f32.gmra.mxu0 %v844
        %v1167 = vpop.f32.mrf.mxu0
        %v1168 = vadd.f32 0.0, %v1167
        %1169 = vmatmul.f32.gmra.mxu0 %v846
        %v1170 = vpop.f32.mrf.mxu0
        %v1171 = vadd.f32 0.0, %v1170
        %1172 = vmatmul.f32.gmra.mxu0 %v848
        %v1173 = vpop.f32.mrf.mxu0
        %v1174 = vadd.f32 0.0, %v1173
        %1175 = vmatmul.f32.gmra.mxu0 %v850
        %v1176 = vpop.f32.mrf.mxu0
        %v1177 = vadd.f32 0.0, %v1176
        %1178 = vmatmul.f32.gmra.mxu0 %v852
        %v1179 = vpop.f32.mrf.mxu0
        %v1180 = vadd.f32 0.0, %v1179
        %1181 = vmatmul.f32.gmra.mxu0 %v854
        %v1182 = vpop.f32.mrf.mxu0
        %v1183 = vadd.f32 0.0, %v1182
        %1184 = vmatmul.f32.gmra.mxu0 %v856
        %v1185 = vpop.f32.mrf.mxu0
        %v1186 = vadd.f32 0.0, %v1185
        %1187 = vmatmul.f32.gmra.mxu0 %v858
        %v1188 = vpop.f32.mrf.mxu0
        %v1189 = vadd.f32 0.0, %v1188
        %1190 = vmatmul.f32.gmra.mxu0 %v860
        %v1191 = vpop.f32.mrf.mxu0
        %v1192 = vadd.f32 0.0, %v1191
        %1193 = vmatmul.f32.gmra.mxu0 %v862
        %v1194 = vpop.f32.mrf.mxu0
        %v1195 = vadd.f32 0.0, %v1194
        %1196 = vmatmul.f32.gmra.mxu0 %v864
        %v1197 = vpop.f32.mrf.mxu0
        %v1198 = vadd.f32 0.0, %v1197
        %1199 = vmatmul.f32.gmra.mxu0 %v866
        %v1200 = vpop.f32.mrf.mxu0
        %v1201 = vadd.f32 0.0, %v1200
        %1202 = vmatmul.f32.gmra.mxu0 %v868
        %v1203 = vpop.f32.mrf.mxu0
        %v1204 = vadd.f32 0.0, %v1203
        %1205 = vmatmul.f32.gmra.mxu0 %v870
        %v1206 = vpop.f32.mrf.mxu0
        %v1207 = vadd.f32 0.0, %v1206
        %1208 = vdwg.mxu0
        %1209 = vmatpush.msra.mxu0 %v1089
        %1210 = vmatpush.msra.mxu0 %v1082
        %1211 = vmatpush.msra.mxu0 %v1075
        %1212 = vmatpush.msra.mxu0 %v1068
        %1213 = vmatpush.msra.mxu0 %v1061
        %1214 = vmatpush.msra.mxu0 %v1054
        %1215 = vmatpush.msra.mxu0 %v1047
        %1216 = vmatpush.msra.mxu0 %v1040
        %1217 = vmatpush.msra.mxu0 %v1033
        %1218 = vmatpush.msra.mxu0 %v1026
        %1219 = vmatpush.msra.mxu0 %v1019
        %1220 = vmatpush.msra.mxu0 %v1012
        %1221 = vmatpush.msra.mxu0 %v1005
        %1222 = vmatpush.msra.mxu0 %v998
        %1223 = vmatpush.msra.mxu0 %v991
        %1224 = vmatpush.msra.mxu0 %v984
        %1225 = vmatmul.f32.gmra.mxu0 %v809
        %v1226 = vpop.f32.mrf.mxu0
        %v1227 = vadd.f32 %v1114, %v1226
        %1228 = vmatmul.f32.gmra.mxu0 %v811
        %v1229 = vpop.f32.mrf.mxu0
        %v1230 = vadd.f32 %v1117, %v1229
        %1231 = vmatmul.f32.gmra.mxu0 %v813
        %v1232 = vpop.f32.mrf.mxu0
        %v1233 = vadd.f32 %v1120, %v1232
        %1234 = vmatmul.f32.gmra.mxu0 %v815
        %v1235 = vpop.f32.mrf.mxu0
        %v1236 = vadd.f32 %v1123, %v1235
        %1237 = vmatmul.f32.gmra.mxu0 %v817
        %v1238 = vpop.f32.mrf.mxu0
        %v1239 = vadd.f32 %v1126, %v1238
        %1240 = vmatmul.f32.gmra.mxu0 %v819
        %v1241 = vpop.f32.mrf.mxu0
        %v1242 = vadd.f32 %v1129, %v1241
        %1243 = vmatmul.f32.gmra.mxu0 %v821
        %v1244 = vpop.f32.mrf.mxu0
        %v1245 = vadd.f32 %v1132, %v1244
        %1246 = vmatmul.f32.gmra.mxu0 %v823
        %v1247 = vpop.f32.mrf.mxu0
        %v1248 = vadd.f32 %v1135, %v1247
        %1249 = vmatmul.f32.gmra.mxu0 %v825
        %v1250 = vpop.f32.mrf.mxu0
        %v1251 = vadd.f32 %v1138, %v1250
        %1252 = vmatmul.f32.gmra.mxu0 %v827
        %v1253 = vpop.f32.mrf.mxu0
        %v1254 = vadd.f32 %v1141, %v1253
        %1255 = vmatmul.f32.gmra.mxu0 %v829
        %v1256 = vpop.f32.mrf.mxu0
        %v1257 = vadd.f32 %v1144, %v1256
        %1258 = vmatmul.f32.gmra.mxu0 %v831
        %v1259 = vpop.f32.mrf.mxu0
        %v1260 = vadd.f32 %v1147, %v1259
        %1261 = vmatmul.f32.gmra.mxu0 %v833
        %v1262 = vpop.f32.mrf.mxu0
        %v1263 = vadd.f32 %v1150, %v1262
        %1264 = vmatmul.f32.gmra.mxu0 %v835
        %v1265 = vpop.f32.mrf.mxu0
        %v1266 = vadd.f32 %v1153, %v1265
        %1267 = vmatmul.f32.gmra.mxu0 %v837
        %v1268 = vpop.f32.mrf.mxu0
        %v1269 = vadd.f32 %v1156, %v1268
        %1270 = vmatmul.f32.gmra.mxu0 %v839
        %v1271 = vpop.f32.mrf.mxu0
        %v1272 = vadd.f32 %v1159, %v1271
        %1273 = vmatmul.f32.gmra.mxu0 %v841
        %v1274 = vpop.f32.mrf.mxu0
        %v1275 = vadd.f32 %v1162, %v1274
        %1276 = vmatmul.f32.gmra.mxu0 %v843
        %v1277 = vpop.f32.mrf.mxu0
        %v1278 = vadd.f32 %v1165, %v1277
        %1279 = vmatmul.f32.gmra.mxu0 %v845
        %v1280 = vpop.f32.mrf.mxu0
        %v1281 = vadd.f32 %v1168, %v1280
        %1282 = vmatmul.f32.gmra.mxu0 %v847
        %v1283 = vpop.f32.mrf.mxu0
        %v1284 = vadd.f32 %v1171, %v1283
        %1285 = vmatmul.f32.gmra.mxu0 %v849
        %v1286 = vpop.f32.mrf.mxu0
        %v1287 = vadd.f32 %v1174, %v1286
        %1288 = vmatmul.f32.gmra.mxu0 %v851
        %v1289 = vpop.f32.mrf.mxu0
        %v1290 = vadd.f32 %v1177, %v1289
        %1291 = vmatmul.f32.gmra.mxu0 %v853
        %v1292 = vpop.f32.mrf.mxu0
        %v1293 = vadd.f32 %v1180, %v1292
        %1294 = vmatmul.f32.gmra.mxu0 %v855
        %v1295 = vpop.f32.mrf.mxu0
        %v1296 = vadd.f32 %v1183, %v1295
        %1297 = vmatmul.f32.gmra.mxu0 %v857
        %v1298 = vpop.f32.mrf.mxu0
        %v1299 = vadd.f32 %v1186, %v1298
        %1300 = vmatmul.f32.gmra.mxu0 %v859
        %v1301 = vpop.f32.mrf.mxu0
        %v1302 = vadd.f32 %v1189, %v1301
        %1303 = vmatmul.f32.gmra.mxu0 %v861
        %v1304 = vpop.f32.mrf.mxu0
        %v1305 = vadd.f32 %v1192, %v1304
        %1306 = vmatmul.f32.gmra.mxu0 %v863
        %v1307 = vpop.f32.mrf.mxu0
        %v1308 = vadd.f32 %v1195, %v1307
        %1309 = vmatmul.f32.gmra.mxu0 %v865
        %v1310 = vpop.f32.mrf.mxu0
        %v1311 = vadd.f32 %v1198, %v1310
        %1312 = vmatmul.f32.gmra.mxu0 %v867
        %v1313 = vpop.f32.mrf.mxu0
        %v1314 = vadd.f32 %v1201, %v1313
        %1315 = vmatmul.f32.gmra.mxu0 %v869
        %v1316 = vpop.f32.mrf.mxu0
        %v1317 = vadd.f32 %v1204, %v1316
        %1318 = vmatmul.f32.gmra.mxu0 %v871
        %v1319 = vpop.f32.mrf.mxu0
        %v1320 = vadd.f32 %v1207, %v1319
        %1321 = vdwg.mxu0
        %1322 = vmatpush.msra.mxu0 %v978
        %1323 = vmatpush.msra.mxu0 %v971
        %1324 = vmatpush.msra.mxu0 %v964
        %1325 = vmatpush.msra.mxu0 %v957
        %1326 = vmatpush.msra.mxu0 %v950
        %1327 = vmatpush.msra.mxu0 %v943
        %1328 = vmatpush.msra.mxu0 %v936
        %1329 = vmatpush.msra.mxu0 %v929
        %1330 = vmatpush.msra.mxu0 %v922
        %1331 = vmatpush.msra.mxu0 %v915
        %1332 = vmatpush.msra.mxu0 %v908
        %1333 = vmatpush.msra.mxu0 %v901
        %1334 = vmatpush.msra.mxu0 %v894
        %1335 = vmatpush.msra.mxu0 %v887
        %1336 = vmatpush.msra.mxu0 %v880
        %1337 = vmatpush.msra.mxu0 %v873
        %1338 = vmatmul.f32.gmra.mxu0 %v808
        %v1339 = vpop.f32.mrf.mxu0
        %v1340 = vadd.f32 0.0, %v1339
        %1341 = vmatmul.f32.gmra.mxu0 %v810
        %v1342 = vpop.f32.mrf.mxu0
        %v1343 = vadd.f32 0.0, %v1342
        %1344 = vmatmul.f32.gmra.mxu0 %v812
        %v1345 = vpop.f32.mrf.mxu0
        %v1346 = vadd.f32 0.0, %v1345
        %1347 = vmatmul.f32.gmra.mxu0 %v814
        %v1348 = vpop.f32.mrf.mxu0
        %v1349 = vadd.f32 0.0, %v1348
        %1350 = vmatmul.f32.gmra.mxu0 %v816
        %v1351 = vpop.f32.mrf.mxu0
        %v1352 = vadd.f32 0.0, %v1351
        %1353 = vmatmul.f32.gmra.mxu0 %v818
        %v1354 = vpop.f32.mrf.mxu0
        %v1355 = vadd.f32 0.0, %v1354
        %1356 = vmatmul.f32.gmra.mxu0 %v820
        %v1357 = vpop.f32.mrf.mxu0
        %v1358 = vadd.f32 0.0, %v1357
        %1359 = vmatmul.f32.gmra.mxu0 %v822
        %v1360 = vpop.f32.mrf.mxu0
        %v1361 = vadd.f32 0.0, %v1360
        %1362 = vmatmul.f32.gmra.mxu0 %v824
        %v1363 = vpop.f32.mrf.mxu0
        %v1364 = vadd.f32 0.0, %v1363
        %1365 = vmatmul.f32.gmra.mxu0 %v826
        %v1366 = vpop.f32.mrf.mxu0
        %v1367 = vadd.f32 0.0, %v1366
        %1368 = vmatmul.f32.gmra.mxu0 %v828
        %v1369 = vpop.f32.mrf.mxu0
        %v1370 = vadd.f32 0.0, %v1369
        %1371 = vmatmul.f32.gmra.mxu0 %v830
        %v1372 = vpop.f32.mrf.mxu0
        %v1373 = vadd.f32 0.0, %v1372
        %1374 = vmatmul.f32.gmra.mxu0 %v832
        %v1375 = vpop.f32.mrf.mxu0
        %v1376 = vadd.f32 0.0, %v1375
        %1377 = vmatmul.f32.gmra.mxu0 %v834
        %v1378 = vpop.f32.mrf.mxu0
        %v1379 = vadd.f32 0.0, %v1378
        %1380 = vmatmul.f32.gmra.mxu0 %v836
        %v1381 = vpop.f32.mrf.mxu0
        %v1382 = vadd.f32 0.0, %v1381
        %1383 = vmatmul.f32.gmra.mxu0 %v838
        %v1384 = vpop.f32.mrf.mxu0
        %v1385 = vadd.f32 0.0, %v1384
        %1386 = vmatmul.f32.gmra.mxu0 %v840
        %v1387 = vpop.f32.mrf.mxu0
        %v1388 = vadd.f32 0.0, %v1387
        %1389 = vmatmul.f32.gmra.mxu0 %v842
        %v1390 = vpop.f32.mrf.mxu0
        %v1391 = vadd.f32 0.0, %v1390
        %1392 = vmatmul.f32.gmra.mxu0 %v844
        %v1393 = vpop.f32.mrf.mxu0
        %v1394 = vadd.f32 0.0, %v1393
        %1395 = vmatmul.f32.gmra.mxu0 %v846
        %v1396 = vpop.f32.mrf.mxu0
        %v1397 = vadd.f32 0.0, %v1396
        %1398 = vmatmul.f32.gmra.mxu0 %v848
        %v1399 = vpop.f32.mrf.mxu0
        %v1400 = vadd.f32 0.0, %v1399
        %1401 = vmatmul.f32.gmra.mxu0 %v850
        %v1402 = vpop.f32.mrf.mxu0
        %v1403 = vadd.f32 0.0, %v1402
        %1404 = vmatmul.f32.gmra.mxu0 %v852
        %v1405 = vpop.f32.mrf.mxu0
        %v1406 = vadd.f32 0.0, %v1405
        %1407 = vmatmul.f32.gmra.mxu0 %v854
        %v1408 = vpop.f32.mrf.mxu0
        %v1409 = vadd.f32 0.0, %v1408
        %1410 = vmatmul.f32.gmra.mxu0 %v856
        %v1411 = vpop.f32.mrf.mxu0
        %v1412 = vadd.f32 0.0, %v1411
        %1413 = vmatmul.f32.gmra.mxu0 %v858
        %v1414 = vpop.f32.mrf.mxu0
        %v1415 = vadd.f32 0.0, %v1414
        %1416 = vmatmul.f32.gmra.mxu0 %v860
        %v1417 = vpop.f32.mrf.mxu0
        %v1418 = vadd.f32 0.0, %v1417
        %1419 = vmatmul.f32.gmra.mxu0 %v862
        %v1420 = vpop.f32.mrf.mxu0
        %v1421 = vadd.f32 0.0, %v1420
        %1422 = vmatmul.f32.gmra.mxu0 %v864
        %v1423 = vpop.f32.mrf.mxu0
        %v1424 = vadd.f32 0.0, %v1423
        %1425 = vmatmul.f32.gmra.mxu0 %v866
        %v1426 = vpop.f32.mrf.mxu0
        %v1427 = vadd.f32 0.0, %v1426
        %1428 = vmatmul.f32.gmra.mxu0 %v868
        %v1429 = vpop.f32.mrf.mxu0
        %v1430 = vadd.f32 0.0, %v1429
        %1431 = vmatmul.f32.gmra.mxu0 %v870
        %v1432 = vpop.f32.mrf.mxu0
        %v1433 = vadd.f32 0.0, %v1432
        %1434 = vdwg.mxu0
        %1435 = vmatpush.msra.mxu0 %v1090
        %1436 = vmatpush.msra.mxu0 %v1083
        %1437 = vmatpush.msra.mxu0 %v1076
        %1438 = vmatpush.msra.mxu0 %v1069
        %1439 = vmatpush.msra.mxu0 %v1062
        %1440 = vmatpush.msra.mxu0 %v1055
        %1441 = vmatpush.msra.mxu0 %v1048
        %1442 = vmatpush.msra.mxu0 %v1041
        %1443 = vmatpush.msra.mxu0 %v1034
        %1444 = vmatpush.msra.mxu0 %v1027
        %1445 = vmatpush.msra.mxu0 %v1020
        %1446 = vmatpush.msra.mxu0 %v1013
        %1447 = vmatpush.msra.mxu0 %v1006
        %1448 = vmatpush.msra.mxu0 %v999
        %1449 = vmatpush.msra.mxu0 %v992
        %1450 = vmatpush.msra.mxu0 %v985
        %1451 = vmatmul.f32.gmra.mxu0 %v809
        %v1452 = vpop.f32.mrf.mxu0
        %v1453 = vadd.f32 %v1340, %v1452
        %1454 = vmatmul.f32.gmra.mxu0 %v811
        %v1455 = vpop.f32.mrf.mxu0
        %v1456 = vadd.f32 %v1343, %v1455
        %1457 = vmatmul.f32.gmra.mxu0 %v813
        %v1458 = vpop.f32.mrf.mxu0
        %v1459 = vadd.f32 %v1346, %v1458
        %1460 = vmatmul.f32.gmra.mxu0 %v815
        %v1461 = vpop.f32.mrf.mxu0
        %v1462 = vadd.f32 %v1349, %v1461
        %1463 = vmatmul.f32.gmra.mxu0 %v817
        %v1464 = vpop.f32.mrf.mxu0
        %v1465 = vadd.f32 %v1352, %v1464
        %1466 = vmatmul.f32.gmra.mxu0 %v819
        %v1467 = vpop.f32.mrf.mxu0
        %v1468 = vadd.f32 %v1355, %v1467
        %1469 = vmatmul.f32.gmra.mxu0 %v821
        %v1470 = vpop.f32.mrf.mxu0
        %v1471 = vadd.f32 %v1358, %v1470
        %1472 = vmatmul.f32.gmra.mxu0 %v823
        %v1473 = vpop.f32.mrf.mxu0
        %v1474 = vadd.f32 %v1361, %v1473
        %1475 = vmatmul.f32.gmra.mxu0 %v825
        %v1476 = vpop.f32.mrf.mxu0
        %v1477 = vadd.f32 %v1364, %v1476
        %1478 = vmatmul.f32.gmra.mxu0 %v827
        %v1479 = vpop.f32.mrf.mxu0
        %v1480 = vadd.f32 %v1367, %v1479
        %1481 = vmatmul.f32.gmra.mxu0 %v829
        %v1482 = vpop.f32.mrf.mxu0
        %v1483 = vadd.f32 %v1370, %v1482
        %1484 = vmatmul.f32.gmra.mxu0 %v831
        %v1485 = vpop.f32.mrf.mxu0
        %v1486 = vadd.f32 %v1373, %v1485
        %1487 = vmatmul.f32.gmra.mxu0 %v833
        %v1488 = vpop.f32.mrf.mxu0
        %v1489 = vadd.f32 %v1376, %v1488
        %1490 = vmatmul.f32.gmra.mxu0 %v835
        %v1491 = vpop.f32.mrf.mxu0
        %v1492 = vadd.f32 %v1379, %v1491
        %1493 = vmatmul.f32.gmra.mxu0 %v837
        %v1494 = vpop.f32.mrf.mxu0
        %v1495 = vadd.f32 %v1382, %v1494
        %1496 = vmatmul.f32.gmra.mxu0 %v839
        %v1497 = vpop.f32.mrf.mxu0
        %v1498 = vadd.f32 %v1385, %v1497
        %1499 = vmatmul.f32.gmra.mxu0 %v841
        %v1500 = vpop.f32.mrf.mxu0
        %v1501 = vadd.f32 %v1388, %v1500
        %1502 = vmatmul.f32.gmra.mxu0 %v843
        %v1503 = vpop.f32.mrf.mxu0
        %v1504 = vadd.f32 %v1391, %v1503
        %1505 = vmatmul.f32.gmra.mxu0 %v845
        %v1506 = vpop.f32.mrf.mxu0
        %v1507 = vadd.f32 %v1394, %v1506
        %1508 = vmatmul.f32.gmra.mxu0 %v847
        %v1509 = vpop.f32.mrf.mxu0
        %v1510 = vadd.f32 %v1397, %v1509
        %1511 = vmatmul.f32.gmra.mxu0 %v849
        %v1512 = vpop.f32.mrf.mxu0
        %v1513 = vadd.f32 %v1400, %v1512
        %1514 = vmatmul.f32.gmra.mxu0 %v851
        %v1515 = vpop.f32.mrf.mxu0
        %v1516 = vadd.f32 %v1403, %v1515
        %1517 = vmatmul.f32.gmra.mxu0 %v853
        %v1518 = vpop.f32.mrf.mxu0
        %v1519 = vadd.f32 %v1406, %v1518
        %1520 = vmatmul.f32.gmra.mxu0 %v855
        %v1521 = vpop.f32.mrf.mxu0
        %v1522 = vadd.f32 %v1409, %v1521
        %1523 = vmatmul.f32.gmra.mxu0 %v857
        %v1524 = vpop.f32.mrf.mxu0
        %v1525 = vadd.f32 %v1412, %v1524
        %1526 = vmatmul.f32.gmra.mxu0 %v859
        %v1527 = vpop.f32.mrf.mxu0
        %v1528 = vadd.f32 %v1415, %v1527
        %1529 = vmatmul.f32.gmra.mxu0 %v861
        %v1530 = vpop.f32.mrf.mxu0
        %v1531 = vadd.f32 %v1418, %v1530
        %1532 = vmatmul.f32.gmra.mxu0 %v863
        %v1533 = vpop.f32.mrf.mxu0
        %v1534 = vadd.f32 %v1421, %v1533
        %1535 = vmatmul.f32.gmra.mxu0 %v865
        %v1536 = vpop.f32.mrf.mxu0
        %v1537 = vadd.f32 %v1424, %v1536
        %1538 = vmatmul.f32.gmra.mxu0 %v867
        %v1539 = vpop.f32.mrf.mxu0
        %v1540 = vadd.f32 %v1427, %v1539
        %1541 = vmatmul.f32.gmra.mxu0 %v869
        %v1542 = vpop.f32.mrf.mxu0
        %v1543 = vadd.f32 %v1430, %v1542
        %1544 = vmatmul.f32.gmra.mxu0 %v871
        %v1545 = vpop.f32.mrf.mxu0
        %v1546 = vadd.f32 %v1433, %v1545
        %1547 = vdwg.mxu0
        %1548 = vmatpush.msra.mxu0 %v979
        %1549 = vmatpush.msra.mxu0 %v972
        %1550 = vmatpush.msra.mxu0 %v965
        %1551 = vmatpush.msra.mxu0 %v958
        %1552 = vmatpush.msra.mxu0 %v951
        %1553 = vmatpush.msra.mxu0 %v944
        %1554 = vmatpush.msra.mxu0 %v937
        %1555 = vmatpush.msra.mxu0 %v930
        %1556 = vmatpush.msra.mxu0 %v923
        %1557 = vmatpush.msra.mxu0 %v916
        %1558 = vmatpush.msra.mxu0 %v909
        %1559 = vmatpush.msra.mxu0 %v902
        %1560 = vmatpush.msra.mxu0 %v895
        %1561 = vmatpush.msra.mxu0 %v888
        %1562 = vmatpush.msra.mxu0 %v881
        %1563 = vmatpush.msra.mxu0 %v874
        %1564 = vmatmul.f32.gmra.mxu0 %v808
        %v1565 = vpop.f32.mrf.mxu0
        %v1566 = vadd.f32 0.0, %v1565
        %1567 = vmatmul.f32.gmra.mxu0 %v810
        %v1568 = vpop.f32.mrf.mxu0
        %v1569 = vadd.f32 0.0, %v1568
        %1570 = vmatmul.f32.gmra.mxu0 %v812
        %v1571 = vpop.f32.mrf.mxu0
        %v1572 = vadd.f32 0.0, %v1571
        %1573 = vmatmul.f32.gmra.mxu0 %v814
        %v1574 = vpop.f32.mrf.mxu0
        %v1575 = vadd.f32 0.0, %v1574
        %1576 = vmatmul.f32.gmra.mxu0 %v816
        %v1577 = vpop.f32.mrf.mxu0
        %v1578 = vadd.f32 0.0, %v1577
        %1579 = vmatmul.f32.gmra.mxu0 %v818
        %v1580 = vpop.f32.mrf.mxu0
        %v1581 = vadd.f32 0.0, %v1580
        %1582 = vmatmul.f32.gmra.mxu0 %v820
        %v1583 = vpop.f32.mrf.mxu0
        %v1584 = vadd.f32 0.0, %v1583
        %1585 = vmatmul.f32.gmra.mxu0 %v822
        %v1586 = vpop.f32.mrf.mxu0
        %v1587 = vadd.f32 0.0, %v1586
        %1588 = vmatmul.f32.gmra.mxu0 %v824
        %v1589 = vpop.f32.mrf.mxu0
        %v1590 = vadd.f32 0.0, %v1589
        %1591 = vmatmul.f32.gmra.mxu0 %v826
        %v1592 = vpop.f32.mrf.mxu0
        %v1593 = vadd.f32 0.0, %v1592
        %1594 = vmatmul.f32.gmra.mxu0 %v828
        %v1595 = vpop.f32.mrf.mxu0
        %v1596 = vadd.f32 0.0, %v1595
        %1597 = vmatmul.f32.gmra.mxu0 %v830
        %v1598 = vpop.f32.mrf.mxu0
        %v1599 = vadd.f32 0.0, %v1598
        %1600 = vmatmul.f32.gmra.mxu0 %v832
        %v1601 = vpop.f32.mrf.mxu0
        %v1602 = vadd.f32 0.0, %v1601
        %1603 = vmatmul.f32.gmra.mxu0 %v834
        %v1604 = vpop.f32.mrf.mxu0
        %v1605 = vadd.f32 0.0, %v1604
        %1606 = vmatmul.f32.gmra.mxu0 %v836
        %v1607 = vpop.f32.mrf.mxu0
        %v1608 = vadd.f32 0.0, %v1607
        %1609 = vmatmul.f32.gmra.mxu0 %v838
        %v1610 = vpop.f32.mrf.mxu0
        %v1611 = vadd.f32 0.0, %v1610
        %1612 = vmatmul.f32.gmra.mxu0 %v840
        %v1613 = vpop.f32.mrf.mxu0
        %v1614 = vadd.f32 0.0, %v1613
        %1615 = vmatmul.f32.gmra.mxu0 %v842
        %v1616 = vpop.f32.mrf.mxu0
        %v1617 = vadd.f32 0.0, %v1616
        %1618 = vmatmul.f32.gmra.mxu0 %v844
        %v1619 = vpop.f32.mrf.mxu0
        %v1620 = vadd.f32 0.0, %v1619
        %1621 = vmatmul.f32.gmra.mxu0 %v846
        %v1622 = vpop.f32.mrf.mxu0
        %v1623 = vadd.f32 0.0, %v1622
        %1624 = vmatmul.f32.gmra.mxu0 %v848
        %v1625 = vpop.f32.mrf.mxu0
        %v1626 = vadd.f32 0.0, %v1625
        %1627 = vmatmul.f32.gmra.mxu0 %v850
        %v1628 = vpop.f32.mrf.mxu0
        %v1629 = vadd.f32 0.0, %v1628
        %1630 = vmatmul.f32.gmra.mxu0 %v852
        %v1631 = vpop.f32.mrf.mxu0
        %v1632 = vadd.f32 0.0, %v1631
        %1633 = vmatmul.f32.gmra.mxu0 %v854
        %v1634 = vpop.f32.mrf.mxu0
        %v1635 = vadd.f32 0.0, %v1634
        %1636 = vmatmul.f32.gmra.mxu0 %v856
        %v1637 = vpop.f32.mrf.mxu0
        %v1638 = vadd.f32 0.0, %v1637
        %1639 = vmatmul.f32.gmra.mxu0 %v858
        %v1640 = vpop.f32.mrf.mxu0
        %v1641 = vadd.f32 0.0, %v1640
        %1642 = vmatmul.f32.gmra.mxu0 %v860
        %v1643 = vpop.f32.mrf.mxu0
        %v1644 = vadd.f32 0.0, %v1643
        %1645 = vmatmul.f32.gmra.mxu0 %v862
        %v1646 = vpop.f32.mrf.mxu0
        %v1647 = vadd.f32 0.0, %v1646
        %1648 = vmatmul.f32.gmra.mxu0 %v864
        %v1649 = vpop.f32.mrf.mxu0
        %v1650 = vadd.f32 0.0, %v1649
        %1651 = vmatmul.f32.gmra.mxu0 %v866
        %v1652 = vpop.f32.mrf.mxu0
        %v1653 = vadd.f32 0.0, %v1652
        %1654 = vmatmul.f32.gmra.mxu0 %v868
        %v1655 = vpop.f32.mrf.mxu0
        %v1656 = vadd.f32 0.0, %v1655
        %1657 = vmatmul.f32.gmra.mxu0 %v870
        %v1658 = vpop.f32.mrf.mxu0
        %v1659 = vadd.f32 0.0, %v1658
        %1660 = vdwg.mxu0
        %1661 = vmatpush.msra.mxu0 %v1091
        %1662 = vmatpush.msra.mxu0 %v1084
        %1663 = vmatpush.msra.mxu0 %v1077
        %1664 = vmatpush.msra.mxu0 %v1070
        %1665 = vmatpush.msra.mxu0 %v1063
        %1666 = vmatpush.msra.mxu0 %v1056
        %1667 = vmatpush.msra.mxu0 %v1049
        %1668 = vmatpush.msra.mxu0 %v1042
        %1669 = vmatpush.msra.mxu0 %v1035
        %1670 = vmatpush.msra.mxu0 %v1028
        %1671 = vmatpush.msra.mxu0 %v1021
        %1672 = vmatpush.msra.mxu0 %v1014
        %1673 = vmatpush.msra.mxu0 %v1007
        %1674 = vmatpush.msra.mxu0 %v1000
        %1675 = vmatpush.msra.mxu0 %v993
        %1676 = vmatpush.msra.mxu0 %v986
        %1677 = vmatmul.f32.gmra.mxu0 %v809
        %v1678 = vpop.f32.mrf.mxu0
        %v1679 = vadd.f32 %v1566, %v1678
        %1680 = vmatmul.f32.gmra.mxu0 %v811
        %v1681 = vpop.f32.mrf.mxu0
        %v1682 = vadd.f32 %v1569, %v1681
        %1683 = vmatmul.f32.gmra.mxu0 %v813
        %v1684 = vpop.f32.mrf.mxu0
        %v1685 = vadd.f32 %v1572, %v1684
        %1686 = vmatmul.f32.gmra.mxu0 %v815
        %v1687 = vpop.f32.mrf.mxu0
        %v1688 = vadd.f32 %v1575, %v1687
        %1689 = vmatmul.f32.gmra.mxu0 %v817
        %v1690 = vpop.f32.mrf.mxu0
        %v1691 = vadd.f32 %v1578, %v1690
        %1692 = vmatmul.f32.gmra.mxu0 %v819
        %v1693 = vpop.f32.mrf.mxu0
        %v1694 = vadd.f32 %v1581, %v1693
        %1695 = vmatmul.f32.gmra.mxu0 %v821
        %v1696 = vpop.f32.mrf.mxu0
        %v1697 = vadd.f32 %v1584, %v1696
        %1698 = vmatmul.f32.gmra.mxu0 %v823
        %v1699 = vpop.f32.mrf.mxu0
        %v1700 = vadd.f32 %v1587, %v1699
        %1701 = vmatmul.f32.gmra.mxu0 %v825
        %v1702 = vpop.f32.mrf.mxu0
        %v1703 = vadd.f32 %v1590, %v1702
        %1704 = vmatmul.f32.gmra.mxu0 %v827
        %v1705 = vpop.f32.mrf.mxu0
        %v1706 = vadd.f32 %v1593, %v1705
        %1707 = vmatmul.f32.gmra.mxu0 %v829
        %v1708 = vpop.f32.mrf.mxu0
        %v1709 = vadd.f32 %v1596, %v1708
        %1710 = vmatmul.f32.gmra.mxu0 %v831
        %v1711 = vpop.f32.mrf.mxu0
        %v1712 = vadd.f32 %v1599, %v1711
        %1713 = vmatmul.f32.gmra.mxu0 %v833
        %v1714 = vpop.f32.mrf.mxu0
        %v1715 = vadd.f32 %v1602, %v1714
        %1716 = vmatmul.f32.gmra.mxu0 %v835
        %v1717 = vpop.f32.mrf.mxu0
        %v1718 = vadd.f32 %v1605, %v1717
        %1719 = vmatmul.f32.gmra.mxu0 %v837
        %v1720 = vpop.f32.mrf.mxu0
        %v1721 = vadd.f32 %v1608, %v1720
        %1722 = vmatmul.f32.gmra.mxu0 %v839
        %v1723 = vpop.f32.mrf.mxu0
        %v1724 = vadd.f32 %v1611, %v1723
        %1725 = vmatmul.f32.gmra.mxu0 %v841
        %v1726 = vpop.f32.mrf.mxu0
        %v1727 = vadd.f32 %v1614, %v1726
        %1728 = vmatmul.f32.gmra.mxu0 %v843
        %v1729 = vpop.f32.mrf.mxu0
        %v1730 = vadd.f32 %v1617, %v1729
        %1731 = vmatmul.f32.gmra.mxu0 %v845
        %v1732 = vpop.f32.mrf.mxu0
        %v1733 = vadd.f32 %v1620, %v1732
        %1734 = vmatmul.f32.gmra.mxu0 %v847
        %v1735 = vpop.f32.mrf.mxu0
        %v1736 = vadd.f32 %v1623, %v1735
        %1737 = vmatmul.f32.gmra.mxu0 %v849
        %v1738 = vpop.f32.mrf.mxu0
        %v1739 = vadd.f32 %v1626, %v1738
        %1740 = vmatmul.f32.gmra.mxu0 %v851
        %v1741 = vpop.f32.mrf.mxu0
        %v1742 = vadd.f32 %v1629, %v1741
        %1743 = vmatmul.f32.gmra.mxu0 %v853
        %v1744 = vpop.f32.mrf.mxu0
        %v1745 = vadd.f32 %v1632, %v1744
        %1746 = vmatmul.f32.gmra.mxu0 %v855
        %v1747 = vpop.f32.mrf.mxu0
        %v1748 = vadd.f32 %v1635, %v1747
        %1749 = vmatmul.f32.gmra.mxu0 %v857
        %v1750 = vpop.f32.mrf.mxu0
        %v1751 = vadd.f32 %v1638, %v1750
        %1752 = vmatmul.f32.gmra.mxu0 %v859
        %v1753 = vpop.f32.mrf.mxu0
        %v1754 = vadd.f32 %v1641, %v1753
        %1755 = vmatmul.f32.gmra.mxu0 %v861
        %v1756 = vpop.f32.mrf.mxu0
        %v1757 = vadd.f32 %v1644, %v1756
        %1758 = vmatmul.f32.gmra.mxu0 %v863
        %v1759 = vpop.f32.mrf.mxu0
        %v1760 = vadd.f32 %v1647, %v1759
        %1761 = vmatmul.f32.gmra.mxu0 %v865
        %v1762 = vpop.f32.mrf.mxu0
        %v1763 = vadd.f32 %v1650, %v1762
        %1764 = vmatmul.f32.gmra.mxu0 %v867
        %v1765 = vpop.f32.mrf.mxu0
        %v1766 = vadd.f32 %v1653, %v1765
        %1767 = vmatmul.f32.gmra.mxu0 %v869
        %v1768 = vpop.f32.mrf.mxu0
        %v1769 = vadd.f32 %v1656, %v1768
        %1770 = vmatmul.f32.gmra.mxu0 %v871
        %v1771 = vpop.f32.mrf.mxu0
        %v1772 = vadd.f32 %v1659, %v1771
        %1773 = vdwg.mxu0
        %1774 = vmatpush.msra.mxu0 %v980
        %1775 = vmatpush.msra.mxu0 %v973
        %1776 = vmatpush.msra.mxu0 %v966
        %1777 = vmatpush.msra.mxu0 %v959
        %1778 = vmatpush.msra.mxu0 %v952
        %1779 = vmatpush.msra.mxu0 %v945
        %1780 = vmatpush.msra.mxu0 %v938
        %1781 = vmatpush.msra.mxu0 %v931
        %1782 = vmatpush.msra.mxu0 %v924
        %1783 = vmatpush.msra.mxu0 %v917
        %1784 = vmatpush.msra.mxu0 %v910
        %1785 = vmatpush.msra.mxu0 %v903
        %1786 = vmatpush.msra.mxu0 %v896
        %1787 = vmatpush.msra.mxu0 %v889
        %1788 = vmatpush.msra.mxu0 %v882
        %1789 = vmatpush.msra.mxu0 %v875
        %1790 = vmatmul.f32.gmra.mxu0 %v808
        %v1791 = vpop.f32.mrf.mxu0
        %v1792 = vadd.f32 0.0, %v1791
        %1793 = vmatmul.f32.gmra.mxu0 %v810
        %v1794 = vpop.f32.mrf.mxu0
        %v1795 = vadd.f32 0.0, %v1794
        %1796 = vmatmul.f32.gmra.mxu0 %v812
        %v1797 = vpop.f32.mrf.mxu0
        %v1798 = vadd.f32 0.0, %v1797
        %1799 = vmatmul.f32.gmra.mxu0 %v814
        %v1800 = vpop.f32.mrf.mxu0
        %v1801 = vadd.f32 0.0, %v1800
        %1802 = vmatmul.f32.gmra.mxu0 %v816
        %v1803 = vpop.f32.mrf.mxu0
        %v1804 = vadd.f32 0.0, %v1803
        %1805 = vmatmul.f32.gmra.mxu0 %v818
        %v1806 = vpop.f32.mrf.mxu0
        %v1807 = vadd.f32 0.0, %v1806
        %1808 = vmatmul.f32.gmra.mxu0 %v820
        %v1809 = vpop.f32.mrf.mxu0
        %v1810 = vadd.f32 0.0, %v1809
        %1811 = vmatmul.f32.gmra.mxu0 %v822
        %v1812 = vpop.f32.mrf.mxu0
        %v1813 = vadd.f32 0.0, %v1812
        %1814 = vmatmul.f32.gmra.mxu0 %v824
        %v1815 = vpop.f32.mrf.mxu0
        %v1816 = vadd.f32 0.0, %v1815
        %1817 = vmatmul.f32.gmra.mxu0 %v826
        %v1818 = vpop.f32.mrf.mxu0
        %v1819 = vadd.f32 0.0, %v1818
        %1820 = vmatmul.f32.gmra.mxu0 %v828
        %v1821 = vpop.f32.mrf.mxu0
        %v1822 = vadd.f32 0.0, %v1821
        %1823 = vmatmul.f32.gmra.mxu0 %v830
        %v1824 = vpop.f32.mrf.mxu0
        %v1825 = vadd.f32 0.0, %v1824
        %1826 = vmatmul.f32.gmra.mxu0 %v832
        %v1827 = vpop.f32.mrf.mxu0
        %v1828 = vadd.f32 0.0, %v1827
        %1829 = vmatmul.f32.gmra.mxu0 %v834
        %v1830 = vpop.f32.mrf.mxu0
        %v1831 = vadd.f32 0.0, %v1830
        %1832 = vmatmul.f32.gmra.mxu0 %v836
        %v1833 = vpop.f32.mrf.mxu0
        %v1834 = vadd.f32 0.0, %v1833
        %1835 = vmatmul.f32.gmra.mxu0 %v838
        %v1836 = vpop.f32.mrf.mxu0
        %v1837 = vadd.f32 0.0, %v1836
        %1838 = vmatmul.f32.gmra.mxu0 %v840
        %v1839 = vpop.f32.mrf.mxu0
        %v1840 = vadd.f32 0.0, %v1839
        %1841 = vmatmul.f32.gmra.mxu0 %v842
        %v1842 = vpop.f32.mrf.mxu0
        %v1843 = vadd.f32 0.0, %v1842
        %1844 = vmatmul.f32.gmra.mxu0 %v844
        %v1845 = vpop.f32.mrf.mxu0
        %v1846 = vadd.f32 0.0, %v1845
        %1847 = vmatmul.f32.gmra.mxu0 %v846
        %v1848 = vpop.f32.mrf.mxu0
        %v1849 = vadd.f32 0.0, %v1848
        %1850 = vmatmul.f32.gmra.mxu0 %v848
        %v1851 = vpop.f32.mrf.mxu0
        %v1852 = vadd.f32 0.0, %v1851
        %1853 = vmatmul.f32.gmra.mxu0 %v850
        %v1854 = vpop.f32.mrf.mxu0
        %v1855 = vadd.f32 0.0, %v1854
        %1856 = vmatmul.f32.gmra.mxu0 %v852
        %v1857 = vpop.f32.mrf.mxu0
        %v1858 = vadd.f32 0.0, %v1857
        %1859 = vmatmul.f32.gmra.mxu0 %v854
        %v1860 = vpop.f32.mrf.mxu0
        %v1861 = vadd.f32 0.0, %v1860
        %1862 = vmatmul.f32.gmra.mxu0 %v856
        %v1863 = vpop.f32.mrf.mxu0
        %v1864 = vadd.f32 0.0, %v1863
        %1865 = vmatmul.f32.gmra.mxu0 %v858
        %v1866 = vpop.f32.mrf.mxu0
        %v1867 = vadd.f32 0.0, %v1866
        %1868 = vmatmul.f32.gmra.mxu0 %v860
        %v1869 = vpop.f32.mrf.mxu0
        %v1870 = vadd.f32 0.0, %v1869
        %1871 = vmatmul.f32.gmra.mxu0 %v862
        %v1872 = vpop.f32.mrf.mxu0
        %v1873 = vadd.f32 0.0, %v1872
        %1874 = vmatmul.f32.gmra.mxu0 %v864
        %v1875 = vpop.f32.mrf.mxu0
        %v1876 = vadd.f32 0.0, %v1875
        %1877 = vmatmul.f32.gmra.mxu0 %v866
        %v1878 = vpop.f32.mrf.mxu0
        %v1879 = vadd.f32 0.0, %v1878
        %1880 = vmatmul.f32.gmra.mxu0 %v868
        %v1881 = vpop.f32.mrf.mxu0
        %v1882 = vadd.f32 0.0, %v1881
        %1883 = vmatmul.f32.gmra.mxu0 %v870
        %v1884 = vpop.f32.mrf.mxu0
        %v1885 = vadd.f32 0.0, %v1884
        %1886 = vdwg.mxu0
        %1887 = vmatpush.msra.mxu0 %v1092
        %1888 = vmatpush.msra.mxu0 %v1085
        %1889 = vmatpush.msra.mxu0 %v1078
        %1890 = vmatpush.msra.mxu0 %v1071
        %1891 = vmatpush.msra.mxu0 %v1064
        %1892 = vmatpush.msra.mxu0 %v1057
        %1893 = vmatpush.msra.mxu0 %v1050
        %1894 = vmatpush.msra.mxu0 %v1043
        %1895 = vmatpush.msra.mxu0 %v1036
        %1896 = vmatpush.msra.mxu0 %v1029
        %1897 = vmatpush.msra.mxu0 %v1022
        %1898 = vmatpush.msra.mxu0 %v1015
        %1899 = vmatpush.msra.mxu0 %v1008
        %1900 = vmatpush.msra.mxu0 %v1001
        %1901 = vmatpush.msra.mxu0 %v994
        %1902 = vmatpush.msra.mxu0 %v987
        %1903 = vmatmul.f32.gmra.mxu0 %v809
        %v1904 = vpop.f32.mrf.mxu0
        %v1905 = vadd.f32 %v1792, %v1904
        %1906 = vmatmul.f32.gmra.mxu0 %v811
        %v1907 = vpop.f32.mrf.mxu0
        %v1908 = vadd.f32 %v1795, %v1907
        %1909 = vmatmul.f32.gmra.mxu0 %v813
        %v1910 = vpop.f32.mrf.mxu0
        %v1911 = vadd.f32 %v1798, %v1910
        %1912 = vmatmul.f32.gmra.mxu0 %v815
        %v1913 = vpop.f32.mrf.mxu0
        %v1914 = vadd.f32 %v1801, %v1913
        %1915 = vmatmul.f32.gmra.mxu0 %v817
        %v1916 = vpop.f32.mrf.mxu0
        %v1917 = vadd.f32 %v1804, %v1916
        %1918 = vmatmul.f32.gmra.mxu0 %v819
        %v1919 = vpop.f32.mrf.mxu0
        %v1920 = vadd.f32 %v1807, %v1919
        %1921 = vmatmul.f32.gmra.mxu0 %v821
        %v1922 = vpop.f32.mrf.mxu0
        %v1923 = vadd.f32 %v1810, %v1922
        %1924 = vmatmul.f32.gmra.mxu0 %v823
        %v1925 = vpop.f32.mrf.mxu0
        %v1926 = vadd.f32 %v1813, %v1925
        %1927 = vmatmul.f32.gmra.mxu0 %v825
        %v1928 = vpop.f32.mrf.mxu0
        %v1929 = vadd.f32 %v1816, %v1928
        %1930 = vmatmul.f32.gmra.mxu0 %v827
        %v1931 = vpop.f32.mrf.mxu0
        %v1932 = vadd.f32 %v1819, %v1931
        %1933 = vmatmul.f32.gmra.mxu0 %v829
        %v1934 = vpop.f32.mrf.mxu0
        %v1935 = vadd.f32 %v1822, %v1934
        %1936 = vmatmul.f32.gmra.mxu0 %v831
        %v1937 = vpop.f32.mrf.mxu0
        %v1938 = vadd.f32 %v1825, %v1937
        %1939 = vmatmul.f32.gmra.mxu0 %v833
        %v1940 = vpop.f32.mrf.mxu0
        %v1941 = vadd.f32 %v1828, %v1940
        %1942 = vmatmul.f32.gmra.mxu0 %v835
        %v1943 = vpop.f32.mrf.mxu0
        %v1944 = vadd.f32 %v1831, %v1943
        %1945 = vmatmul.f32.gmra.mxu0 %v837
        %v1946 = vpop.f32.mrf.mxu0
        %v1947 = vadd.f32 %v1834, %v1946
        %1948 = vmatmul.f32.gmra.mxu0 %v839
        %v1949 = vpop.f32.mrf.mxu0
        %v1950 = vadd.f32 %v1837, %v1949
        %1951 = vmatmul.f32.gmra.mxu0 %v841
        %v1952 = vpop.f32.mrf.mxu0
        %v1953 = vadd.f32 %v1840, %v1952
        %1954 = vmatmul.f32.gmra.mxu0 %v843
        %v1955 = vpop.f32.mrf.mxu0
        %v1956 = vadd.f32 %v1843, %v1955
        %1957 = vmatmul.f32.gmra.mxu0 %v845
        %v1958 = vpop.f32.mrf.mxu0
        %v1959 = vadd.f32 %v1846, %v1958
        %1960 = vmatmul.f32.gmra.mxu0 %v847
        %v1961 = vpop.f32.mrf.mxu0
        %v1962 = vadd.f32 %v1849, %v1961
        %1963 = vmatmul.f32.gmra.mxu0 %v849
        %v1964 = vpop.f32.mrf.mxu0
        %v1965 = vadd.f32 %v1852, %v1964
        %1966 = vmatmul.f32.gmra.mxu0 %v851
        %v1967 = vpop.f32.mrf.mxu0
        %v1968 = vadd.f32 %v1855, %v1967
        %1969 = vmatmul.f32.gmra.mxu0 %v853
        %v1970 = vpop.f32.mrf.mxu0
        %v1971 = vadd.f32 %v1858, %v1970
        %1972 = vmatmul.f32.gmra.mxu0 %v855
        %v1973 = vpop.f32.mrf.mxu0
        %v1974 = vadd.f32 %v1861, %v1973
        %1975 = vmatmul.f32.gmra.mxu0 %v857
        %v1976 = vpop.f32.mrf.mxu0
        %v1977 = vadd.f32 %v1864, %v1976
        %1978 = vmatmul.f32.gmra.mxu0 %v859
        %v1979 = vpop.f32.mrf.mxu0
        %v1980 = vadd.f32 %v1867, %v1979
        %1981 = vmatmul.f32.gmra.mxu0 %v861
        %v1982 = vpop.f32.mrf.mxu0
        %v1983 = vadd.f32 %v1870, %v1982
        %1984 = vmatmul.f32.gmra.mxu0 %v863
        %v1985 = vpop.f32.mrf.mxu0
        %v1986 = vadd.f32 %v1873, %v1985
        %1987 = vmatmul.f32.gmra.mxu0 %v865
        %v1988 = vpop.f32.mrf.mxu0
        %v1989 = vadd.f32 %v1876, %v1988
        %1990 = vmatmul.f32.gmra.mxu0 %v867
        %v1991 = vpop.f32.mrf.mxu0
        %v1992 = vadd.f32 %v1879, %v1991
        %1993 = vmatmul.f32.gmra.mxu0 %v869
        %v1994 = vpop.f32.mrf.mxu0
        %v1995 = vadd.f32 %v1882, %v1994
        %1996 = vmatmul.f32.gmra.mxu0 %v871
        %v1997 = vpop.f32.mrf.mxu0
        %v1998 = vadd.f32 %v1885, %v1997
        %1999 = vdwg.mxu0
        %2000 = vmatpush.msra.mxu0 %v981
        %2001 = vmatpush.msra.mxu0 %v974
        %2002 = vmatpush.msra.mxu0 %v967
        %2003 = vmatpush.msra.mxu0 %v960
        %2004 = vmatpush.msra.mxu0 %v953
        %2005 = vmatpush.msra.mxu0 %v946
        %2006 = vmatpush.msra.mxu0 %v939
        %2007 = vmatpush.msra.mxu0 %v932
        %2008 = vmatpush.msra.mxu0 %v925
        %2009 = vmatpush.msra.mxu0 %v918
        %2010 = vmatpush.msra.mxu0 %v911
        %2011 = vmatpush.msra.mxu0 %v904
        %2012 = vmatpush.msra.mxu0 %v897
        %2013 = vmatpush.msra.mxu0 %v890
        %2014 = vmatpush.msra.mxu0 %v883
        %2015 = vmatpush.msra.mxu0 %v876
        %2016 = vmatmul.f32.gmra.mxu0 %v808
        %v2017 = vpop.f32.mrf.mxu0
        %v2018 = vadd.f32 0.0, %v2017
        %2019 = vmatmul.f32.gmra.mxu0 %v810
        %v2020 = vpop.f32.mrf.mxu0
        %v2021 = vadd.f32 0.0, %v2020
        %2022 = vmatmul.f32.gmra.mxu0 %v812
        %v2023 = vpop.f32.mrf.mxu0
        %v2024 = vadd.f32 0.0, %v2023
        %2025 = vmatmul.f32.gmra.mxu0 %v814
        %v2026 = vpop.f32.mrf.mxu0
        %v2027 = vadd.f32 0.0, %v2026
        %2028 = vmatmul.f32.gmra.mxu0 %v816
        %v2029 = vpop.f32.mrf.mxu0
        %v2030 = vadd.f32 0.0, %v2029
        %2031 = vmatmul.f32.gmra.mxu0 %v818
        %v2032 = vpop.f32.mrf.mxu0
        %v2033 = vadd.f32 0.0, %v2032
        %2034 = vmatmul.f32.gmra.mxu0 %v820
        %v2035 = vpop.f32.mrf.mxu0
        %v2036 = vadd.f32 0.0, %v2035
        %2037 = vmatmul.f32.gmra.mxu0 %v822
        %v2038 = vpop.f32.mrf.mxu0
        %v2039 = vadd.f32 0.0, %v2038
        %2040 = vmatmul.f32.gmra.mxu0 %v824
        %v2041 = vpop.f32.mrf.mxu0
        %v2042 = vadd.f32 0.0, %v2041
        %2043 = vmatmul.f32.gmra.mxu0 %v826
        %v2044 = vpop.f32.mrf.mxu0
        %v2045 = vadd.f32 0.0, %v2044
        %2046 = vmatmul.f32.gmra.mxu0 %v828
        %v2047 = vpop.f32.mrf.mxu0
        %v2048 = vadd.f32 0.0, %v2047
        %2049 = vmatmul.f32.gmra.mxu0 %v830
        %v2050 = vpop.f32.mrf.mxu0
        %v2051 = vadd.f32 0.0, %v2050
        %2052 = vmatmul.f32.gmra.mxu0 %v832
        %v2053 = vpop.f32.mrf.mxu0
        %v2054 = vadd.f32 0.0, %v2053
        %2055 = vmatmul.f32.gmra.mxu0 %v834
        %v2056 = vpop.f32.mrf.mxu0
        %v2057 = vadd.f32 0.0, %v2056
        %2058 = vmatmul.f32.gmra.mxu0 %v836
        %v2059 = vpop.f32.mrf.mxu0
        %v2060 = vadd.f32 0.0, %v2059
        %2061 = vmatmul.f32.gmra.mxu0 %v838
        %v2062 = vpop.f32.mrf.mxu0
        %v2063 = vadd.f32 0.0, %v2062
        %2064 = vmatmul.f32.gmra.mxu0 %v840
        %v2065 = vpop.f32.mrf.mxu0
        %v2066 = vadd.f32 0.0, %v2065
        %2067 = vmatmul.f32.gmra.mxu0 %v842
        %v2068 = vpop.f32.mrf.mxu0
        %v2069 = vadd.f32 0.0, %v2068
        %2070 = vmatmul.f32.gmra.mxu0 %v844
        %v2071 = vpop.f32.mrf.mxu0
        %v2072 = vadd.f32 0.0, %v2071
        %2073 = vmatmul.f32.gmra.mxu0 %v846
        %v2074 = vpop.f32.mrf.mxu0
        %v2075 = vadd.f32 0.0, %v2074
        %2076 = vmatmul.f32.gmra.mxu0 %v848
        %v2077 = vpop.f32.mrf.mxu0
        %v2078 = vadd.f32 0.0, %v2077
        %2079 = vmatmul.f32.gmra.mxu0 %v850
        %v2080 = vpop.f32.mrf.mxu0
        %v2081 = vadd.f32 0.0, %v2080
        %2082 = vmatmul.f32.gmra.mxu0 %v852
        %v2083 = vpop.f32.mrf.mxu0
        %v2084 = vadd.f32 0.0, %v2083
        %2085 = vmatmul.f32.gmra.mxu0 %v854
        %v2086 = vpop.f32.mrf.mxu0
        %v2087 = vadd.f32 0.0, %v2086
        %2088 = vmatmul.f32.gmra.mxu0 %v856
        %v2089 = vpop.f32.mrf.mxu0
        %v2090 = vadd.f32 0.0, %v2089
        %2091 = vmatmul.f32.gmra.mxu0 %v858
        %v2092 = vpop.f32.mrf.mxu0
        %v2093 = vadd.f32 0.0, %v2092
        %2094 = vmatmul.f32.gmra.mxu0 %v860
        %v2095 = vpop.f32.mrf.mxu0
        %v2096 = vadd.f32 0.0, %v2095
        %2097 = vmatmul.f32.gmra.mxu0 %v862
        %v2098 = vpop.f32.mrf.mxu0
        %v2099 = vadd.f32 0.0, %v2098
        %2100 = vmatmul.f32.gmra.mxu0 %v864
        %v2101 = vpop.f32.mrf.mxu0
        %v2102 = vadd.f32 0.0, %v2101
        %2103 = vmatmul.f32.gmra.mxu0 %v866
        %v2104 = vpop.f32.mrf.mxu0
        %v2105 = vadd.f32 0.0, %v2104
        %2106 = vmatmul.f32.gmra.mxu0 %v868
        %v2107 = vpop.f32.mrf.mxu0
        %v2108 = vadd.f32 0.0, %v2107
        %2109 = vmatmul.f32.gmra.mxu0 %v870
        %v2110 = vpop.f32.mrf.mxu0
        %v2111 = vadd.f32 0.0, %v2110
        %2112 = vdwg.mxu0
        %2113 = vmatpush.msra.mxu0 %v1093
        %2114 = vmatpush.msra.mxu0 %v1086
        %2115 = vmatpush.msra.mxu0 %v1079
        %2116 = vmatpush.msra.mxu0 %v1072
        %2117 = vmatpush.msra.mxu0 %v1065
        %2118 = vmatpush.msra.mxu0 %v1058
        %2119 = vmatpush.msra.mxu0 %v1051
        %2120 = vmatpush.msra.mxu0 %v1044
        %2121 = vmatpush.msra.mxu0 %v1037
        %2122 = vmatpush.msra.mxu0 %v1030
        %2123 = vmatpush.msra.mxu0 %v1023
        %2124 = vmatpush.msra.mxu0 %v1016
        %2125 = vmatpush.msra.mxu0 %v1009
        %2126 = vmatpush.msra.mxu0 %v1002
        %2127 = vmatpush.msra.mxu0 %v995
        %2128 = vmatpush.msra.mxu0 %v988
        %2129 = vmatmul.f32.gmra.mxu0 %v809
        %v2130 = vpop.f32.mrf.mxu0
        %v2131 = vadd.f32 %v2018, %v2130
        %2132 = vmatmul.f32.gmra.mxu0 %v811
        %v2133 = vpop.f32.mrf.mxu0
        %v2134 = vadd.f32 %v2021, %v2133
        %2135 = vmatmul.f32.gmra.mxu0 %v813
        %v2136 = vpop.f32.mrf.mxu0
        %v2137 = vadd.f32 %v2024, %v2136
        %2138 = vmatmul.f32.gmra.mxu0 %v815
        %v2139 = vpop.f32.mrf.mxu0
        %v2140 = vadd.f32 %v2027, %v2139
        %2141 = vmatmul.f32.gmra.mxu0 %v817
        %v2142 = vpop.f32.mrf.mxu0
        %v2143 = vadd.f32 %v2030, %v2142
        %2144 = vmatmul.f32.gmra.mxu0 %v819
        %v2145 = vpop.f32.mrf.mxu0
        %v2146 = vadd.f32 %v2033, %v2145
        %2147 = vmatmul.f32.gmra.mxu0 %v821
        %v2148 = vpop.f32.mrf.mxu0
        %v2149 = vadd.f32 %v2036, %v2148
        %2150 = vmatmul.f32.gmra.mxu0 %v823
        %v2151 = vpop.f32.mrf.mxu0
        %v2152 = vadd.f32 %v2039, %v2151
        %2153 = vmatmul.f32.gmra.mxu0 %v825
        %v2154 = vpop.f32.mrf.mxu0
        %v2155 = vadd.f32 %v2042, %v2154
        %2156 = vmatmul.f32.gmra.mxu0 %v827
        %v2157 = vpop.f32.mrf.mxu0
        %v2158 = vadd.f32 %v2045, %v2157
        %2159 = vmatmul.f32.gmra.mxu0 %v829
        %v2160 = vpop.f32.mrf.mxu0
        %v2161 = vadd.f32 %v2048, %v2160
        %2162 = vmatmul.f32.gmra.mxu0 %v831
        %v2163 = vpop.f32.mrf.mxu0
        %v2164 = vadd.f32 %v2051, %v2163
        %2165 = vmatmul.f32.gmra.mxu0 %v833
        %v2166 = vpop.f32.mrf.mxu0
        %v2167 = vadd.f32 %v2054, %v2166
        %2168 = vmatmul.f32.gmra.mxu0 %v835
        %v2169 = vpop.f32.mrf.mxu0
        %v2170 = vadd.f32 %v2057, %v2169
        %2171 = vmatmul.f32.gmra.mxu0 %v837
        %v2172 = vpop.f32.mrf.mxu0
        %v2173 = vadd.f32 %v2060, %v2172
        %2174 = vmatmul.f32.gmra.mxu0 %v839
        %v2175 = vpop.f32.mrf.mxu0
        %v2176 = vadd.f32 %v2063, %v2175
        %2177 = vmatmul.f32.gmra.mxu0 %v841
        %v2178 = vpop.f32.mrf.mxu0
        %v2179 = vadd.f32 %v2066, %v2178
        %2180 = vmatmul.f32.gmra.mxu0 %v843
        %v2181 = vpop.f32.mrf.mxu0
        %v2182 = vadd.f32 %v2069, %v2181
        %2183 = vmatmul.f32.gmra.mxu0 %v845
        %v2184 = vpop.f32.mrf.mxu0
        %v2185 = vadd.f32 %v2072, %v2184
        %2186 = vmatmul.f32.gmra.mxu0 %v847
        %v2187 = vpop.f32.mrf.mxu0
        %v2188 = vadd.f32 %v2075, %v2187
        %2189 = vmatmul.f32.gmra.mxu0 %v849
        %v2190 = vpop.f32.mrf.mxu0
        %v2191 = vadd.f32 %v2078, %v2190
        %2192 = vmatmul.f32.gmra.mxu0 %v851
        %v2193 = vpop.f32.mrf.mxu0
        %v2194 = vadd.f32 %v2081, %v2193
        %2195 = vmatmul.f32.gmra.mxu0 %v853
        %v2196 = vpop.f32.mrf.mxu0
        %v2197 = vadd.f32 %v2084, %v2196
        %2198 = vmatmul.f32.gmra.mxu0 %v855
        %v2199 = vpop.f32.mrf.mxu0
        %v2200 = vadd.f32 %v2087, %v2199
        %2201 = vmatmul.f32.gmra.mxu0 %v857
        %v2202 = vpop.f32.mrf.mxu0
        %v2203 = vadd.f32 %v2090, %v2202
        %2204 = vmatmul.f32.gmra.mxu0 %v859
        %v2205 = vpop.f32.mrf.mxu0
        %v2206 = vadd.f32 %v2093, %v2205
        %2207 = vmatmul.f32.gmra.mxu0 %v861
        %v2208 = vpop.f32.mrf.mxu0
        %v2209 = vadd.f32 %v2096, %v2208
        %2210 = vmatmul.f32.gmra.mxu0 %v863
        %v2211 = vpop.f32.mrf.mxu0
        %v2212 = vadd.f32 %v2099, %v2211
        %2213 = vmatmul.f32.gmra.mxu0 %v865
        %v2214 = vpop.f32.mrf.mxu0
        %v2215 = vadd.f32 %v2102, %v2214
        %2216 = vmatmul.f32.gmra.mxu0 %v867
        %v2217 = vpop.f32.mrf.mxu0
        %v2218 = vadd.f32 %v2105, %v2217
        %2219 = vmatmul.f32.gmra.mxu0 %v869
        %v2220 = vpop.f32.mrf.mxu0
        %v2221 = vadd.f32 %v2108, %v2220
        %2222 = vmatmul.f32.gmra.mxu0 %v871
        %v2223 = vpop.f32.mrf.mxu0
        %v2224 = vadd.f32 %v2111, %v2223
        %2225 = vdwg.mxu0
        %2226 = vmatpush.msra.mxu0 %v982
        %2227 = vmatpush.msra.mxu0 %v975
        %2228 = vmatpush.msra.mxu0 %v968
        %2229 = vmatpush.msra.mxu0 %v961
        %2230 = vmatpush.msra.mxu0 %v954
        %2231 = vmatpush.msra.mxu0 %v947
        %2232 = vmatpush.msra.mxu0 %v940
        %2233 = vmatpush.msra.mxu0 %v933
        %2234 = vmatpush.msra.mxu0 %v926
        %2235 = vmatpush.msra.mxu0 %v919
        %2236 = vmatpush.msra.mxu0 %v912
        %2237 = vmatpush.msra.mxu0 %v905
        %2238 = vmatpush.msra.mxu0 %v898
        %2239 = vmatpush.msra.mxu0 %v891
        %2240 = vmatpush.msra.mxu0 %v884
        %2241 = vmatpush.msra.mxu0 %v877
        %2242 = vmatmul.f32.gmra.mxu0 %v808
        %v2243 = vpop.f32.mrf.mxu0
        %v2244 = vadd.f32 0.0, %v2243
        %2245 = vmatmul.f32.gmra.mxu0 %v810
        %v2246 = vpop.f32.mrf.mxu0
        %v2247 = vadd.f32 0.0, %v2246
        %2248 = vmatmul.f32.gmra.mxu0 %v812
        %v2249 = vpop.f32.mrf.mxu0
        %v2250 = vadd.f32 0.0, %v2249
        %2251 = vmatmul.f32.gmra.mxu0 %v814
        %v2252 = vpop.f32.mrf.mxu0
        %v2253 = vadd.f32 0.0, %v2252
        %2254 = vmatmul.f32.gmra.mxu0 %v816
        %v2255 = vpop.f32.mrf.mxu0
        %v2256 = vadd.f32 0.0, %v2255
        %2257 = vmatmul.f32.gmra.mxu0 %v818
        %v2258 = vpop.f32.mrf.mxu0
        %v2259 = vadd.f32 0.0, %v2258
        %2260 = vmatmul.f32.gmra.mxu0 %v820
        %v2261 = vpop.f32.mrf.mxu0
        %v2262 = vadd.f32 0.0, %v2261
        %2263 = vmatmul.f32.gmra.mxu0 %v822
        %v2264 = vpop.f32.mrf.mxu0
        %v2265 = vadd.f32 0.0, %v2264
        %2266 = vmatmul.f32.gmra.mxu0 %v824
        %v2267 = vpop.f32.mrf.mxu0
        %v2268 = vadd.f32 0.0, %v2267
        %2269 = vmatmul.f32.gmra.mxu0 %v826
        %v2270 = vpop.f32.mrf.mxu0
        %v2271 = vadd.f32 0.0, %v2270
        %2272 = vmatmul.f32.gmra.mxu0 %v828
        %v2273 = vpop.f32.mrf.mxu0
        %v2274 = vadd.f32 0.0, %v2273
        %2275 = vmatmul.f32.gmra.mxu0 %v830
        %v2276 = vpop.f32.mrf.mxu0
        %v2277 = vadd.f32 0.0, %v2276
        %2278 = vmatmul.f32.gmra.mxu0 %v832
        %v2279 = vpop.f32.mrf.mxu0
        %v2280 = vadd.f32 0.0, %v2279
        %2281 = vmatmul.f32.gmra.mxu0 %v834
        %v2282 = vpop.f32.mrf.mxu0
        %v2283 = vadd.f32 0.0, %v2282
        %2284 = vmatmul.f32.gmra.mxu0 %v836
        %v2285 = vpop.f32.mrf.mxu0
        %v2286 = vadd.f32 0.0, %v2285
        %2287 = vmatmul.f32.gmra.mxu0 %v838
        %v2288 = vpop.f32.mrf.mxu0
        %v2289 = vadd.f32 0.0, %v2288
        %2290 = vmatmul.f32.gmra.mxu0 %v840
        %v2291 = vpop.f32.mrf.mxu0
        %v2292 = vadd.f32 0.0, %v2291
        %2293 = vmatmul.f32.gmra.mxu0 %v842
        %v2294 = vpop.f32.mrf.mxu0
        %v2295 = vadd.f32 0.0, %v2294
        %2296 = vmatmul.f32.gmra.mxu0 %v844
        %v2297 = vpop.f32.mrf.mxu0
        %v2298 = vadd.f32 0.0, %v2297
        %2299 = vmatmul.f32.gmra.mxu0 %v846
        %v2300 = vpop.f32.mrf.mxu0
        %v2301 = vadd.f32 0.0, %v2300
        %2302 = vmatmul.f32.gmra.mxu0 %v848
        %v2303 = vpop.f32.mrf.mxu0
        %v2304 = vadd.f32 0.0, %v2303
        %2305 = vmatmul.f32.gmra.mxu0 %v850
        %v2306 = vpop.f32.mrf.mxu0
        %v2307 = vadd.f32 0.0, %v2306
        %2308 = vmatmul.f32.gmra.mxu0 %v852
        %v2309 = vpop.f32.mrf.mxu0
        %v2310 = vadd.f32 0.0, %v2309
        %2311 = vmatmul.f32.gmra.mxu0 %v854
        %v2312 = vpop.f32.mrf.mxu0
        %v2313 = vadd.f32 0.0, %v2312
        %2314 = vmatmul.f32.gmra.mxu0 %v856
        %v2315 = vpop.f32.mrf.mxu0
        %v2316 = vadd.f32 0.0, %v2315
        %2317 = vmatmul.f32.gmra.mxu0 %v858
        %v2318 = vpop.f32.mrf.mxu0
        %v2319 = vadd.f32 0.0, %v2318
        %2320 = vmatmul.f32.gmra.mxu0 %v860
        %v2321 = vpop.f32.mrf.mxu0
        %v2322 = vadd.f32 0.0, %v2321
        %2323 = vmatmul.f32.gmra.mxu0 %v862
        %v2324 = vpop.f32.mrf.mxu0
        %v2325 = vadd.f32 0.0, %v2324
        %2326 = vmatmul.f32.gmra.mxu0 %v864
        %v2327 = vpop.f32.mrf.mxu0
        %v2328 = vadd.f32 0.0, %v2327
        %2329 = vmatmul.f32.gmra.mxu0 %v866
        %v2330 = vpop.f32.mrf.mxu0
        %v2331 = vadd.f32 0.0, %v2330
        %2332 = vmatmul.f32.gmra.mxu0 %v868
        %v2333 = vpop.f32.mrf.mxu0
        %v2334 = vadd.f32 0.0, %v2333
        %2335 = vmatmul.f32.gmra.mxu0 %v870
        %v2336 = vpop.f32.mrf.mxu0
        %v2337 = vadd.f32 0.0, %v2336
        %2338 = vdwg.mxu0
        %2339 = vmatpush.msra.mxu0 %v1094
        %2340 = vmatpush.msra.mxu0 %v1087
        %2341 = vmatpush.msra.mxu0 %v1080
        %2342 = vmatpush.msra.mxu0 %v1073
        %2343 = vmatpush.msra.mxu0 %v1066
        %2344 = vmatpush.msra.mxu0 %v1059
        %2345 = vmatpush.msra.mxu0 %v1052
        %2346 = vmatpush.msra.mxu0 %v1045
        %2347 = vmatpush.msra.mxu0 %v1038
        %2348 = vmatpush.msra.mxu0 %v1031
        %2349 = vmatpush.msra.mxu0 %v1024
        %2350 = vmatpush.msra.mxu0 %v1017
        %2351 = vmatpush.msra.mxu0 %v1010
        %2352 = vmatpush.msra.mxu0 %v1003
        %2353 = vmatpush.msra.mxu0 %v996
        %2354 = vmatpush.msra.mxu0 %v989
        %2355 = vmatmul.f32.gmra.mxu0 %v809
        %v2356 = vpop.f32.mrf.mxu0
        %v2357 = vadd.f32 %v2244, %v2356
        %2358 = vmatmul.f32.gmra.mxu0 %v811
        %v2359 = vpop.f32.mrf.mxu0
        %v2360 = vadd.f32 %v2247, %v2359
        %2361 = vmatmul.f32.gmra.mxu0 %v813
        %v2362 = vpop.f32.mrf.mxu0
        %v2363 = vadd.f32 %v2250, %v2362
        %2364 = vmatmul.f32.gmra.mxu0 %v815
        %v2365 = vpop.f32.mrf.mxu0
        %v2366 = vadd.f32 %v2253, %v2365
        %2367 = vmatmul.f32.gmra.mxu0 %v817
        %v2368 = vpop.f32.mrf.mxu0
        %v2369 = vadd.f32 %v2256, %v2368
        %2370 = vmatmul.f32.gmra.mxu0 %v819
        %v2371 = vpop.f32.mrf.mxu0
        %v2372 = vadd.f32 %v2259, %v2371
        %2373 = vmatmul.f32.gmra.mxu0 %v821
        %v2374 = vpop.f32.mrf.mxu0
        %v2375 = vadd.f32 %v2262, %v2374
        %2376 = vmatmul.f32.gmra.mxu0 %v823
        %v2377 = vpop.f32.mrf.mxu0
        %v2378 = vadd.f32 %v2265, %v2377
        %2379 = vmatmul.f32.gmra.mxu0 %v825
        %v2380 = vpop.f32.mrf.mxu0
        %v2381 = vadd.f32 %v2268, %v2380
        %2382 = vmatmul.f32.gmra.mxu0 %v827
        %v2383 = vpop.f32.mrf.mxu0
        %v2384 = vadd.f32 %v2271, %v2383
        %2385 = vmatmul.f32.gmra.mxu0 %v829
        %v2386 = vpop.f32.mrf.mxu0
        %v2387 = vadd.f32 %v2274, %v2386
        %2388 = vmatmul.f32.gmra.mxu0 %v831
        %v2389 = vpop.f32.mrf.mxu0
        %v2390 = vadd.f32 %v2277, %v2389
        %2391 = vmatmul.f32.gmra.mxu0 %v833
        %v2392 = vpop.f32.mrf.mxu0
        %v2393 = vadd.f32 %v2280, %v2392
        %2394 = vmatmul.f32.gmra.mxu0 %v835
        %v2395 = vpop.f32.mrf.mxu0
        %v2396 = vadd.f32 %v2283, %v2395
        %2397 = vmatmul.f32.gmra.mxu0 %v837
        %v2398 = vpop.f32.mrf.mxu0
        %v2399 = vadd.f32 %v2286, %v2398
        %2400 = vmatmul.f32.gmra.mxu0 %v839
        %v2401 = vpop.f32.mrf.mxu0
        %v2402 = vadd.f32 %v2289, %v2401
        %2403 = vmatmul.f32.gmra.mxu0 %v841
        %v2404 = vpop.f32.mrf.mxu0
        %v2405 = vadd.f32 %v2292, %v2404
        %2406 = vmatmul.f32.gmra.mxu0 %v843
        %v2407 = vpop.f32.mrf.mxu0
        %v2408 = vadd.f32 %v2295, %v2407
        %2409 = vmatmul.f32.gmra.mxu0 %v845
        %v2410 = vpop.f32.mrf.mxu0
        %v2411 = vadd.f32 %v2298, %v2410
        %2412 = vmatmul.f32.gmra.mxu0 %v847
        %v2413 = vpop.f32.mrf.mxu0
        %v2414 = vadd.f32 %v2301, %v2413
        %2415 = vmatmul.f32.gmra.mxu0 %v849
        %v2416 = vpop.f32.mrf.mxu0
        %v2417 = vadd.f32 %v2304, %v2416
        %2418 = vmatmul.f32.gmra.mxu0 %v851
        %v2419 = vpop.f32.mrf.mxu0
        %v2420 = vadd.f32 %v2307, %v2419
        %2421 = vmatmul.f32.gmra.mxu0 %v853
        %v2422 = vpop.f32.mrf.mxu0
        %v2423 = vadd.f32 %v2310, %v2422
        %2424 = vmatmul.f32.gmra.mxu0 %v855
        %v2425 = vpop.f32.mrf.mxu0
        %v2426 = vadd.f32 %v2313, %v2425
        %2427 = vmatmul.f32.gmra.mxu0 %v857
        %v2428 = vpop.f32.mrf.mxu0
        %v2429 = vadd.f32 %v2316, %v2428
        %2430 = vmatmul.f32.gmra.mxu0 %v859
        %v2431 = vpop.f32.mrf.mxu0
        %v2432 = vadd.f32 %v2319, %v2431
        %2433 = vmatmul.f32.gmra.mxu0 %v861
        %v2434 = vpop.f32.mrf.mxu0
        %v2435 = vadd.f32 %v2322, %v2434
        %2436 = vmatmul.f32.gmra.mxu0 %v863
        %v2437 = vpop.f32.mrf.mxu0
        %v2438 = vadd.f32 %v2325, %v2437
        %2439 = vmatmul.f32.gmra.mxu0 %v865
        %v2440 = vpop.f32.mrf.mxu0
        %v2441 = vadd.f32 %v2328, %v2440
        %2442 = vmatmul.f32.gmra.mxu0 %v867
        %v2443 = vpop.f32.mrf.mxu0
        %v2444 = vadd.f32 %v2331, %v2443
        %2445 = vmatmul.f32.gmra.mxu0 %v869
        %v2446 = vpop.f32.mrf.mxu0
        %v2447 = vadd.f32 %v2334, %v2446
        %2448 = vmatmul.f32.gmra.mxu0 %v871
        %v2449 = vpop.f32.mrf.mxu0
        %v2450 = vadd.f32 %v2337, %v2449
        %2451 = vdwg.mxu0
        %2452 = vmatpush.msra.mxu0 %v983
        %2453 = vmatpush.msra.mxu0 %v976
        %2454 = vmatpush.msra.mxu0 %v969
        %2455 = vmatpush.msra.mxu0 %v962
        %2456 = vmatpush.msra.mxu0 %v955
        %2457 = vmatpush.msra.mxu0 %v948
        %2458 = vmatpush.msra.mxu0 %v941
        %2459 = vmatpush.msra.mxu0 %v934
        %2460 = vmatpush.msra.mxu0 %v927
        %2461 = vmatpush.msra.mxu0 %v920
        %2462 = vmatpush.msra.mxu0 %v913
        %2463 = vmatpush.msra.mxu0 %v906
        %2464 = vmatpush.msra.mxu0 %v899
        %2465 = vmatpush.msra.mxu0 %v892
        %2466 = vmatpush.msra.mxu0 %v885
        %2467 = vmatpush.msra.mxu0 %v878
        %2468 = vmatmul.f32.gmra.mxu0 %v808
        %v2469 = vpop.f32.mrf.mxu0
        %v2470 = vadd.f32 0.0, %v2469
        %2471 = vmatmul.f32.gmra.mxu0 %v810
        %v2472 = vpop.f32.mrf.mxu0
        %v2473 = vadd.f32 0.0, %v2472
        %2474 = vmatmul.f32.gmra.mxu0 %v812
        %v2475 = vpop.f32.mrf.mxu0
        %v2476 = vadd.f32 0.0, %v2475
        %2477 = vmatmul.f32.gmra.mxu0 %v814
        %v2478 = vpop.f32.mrf.mxu0
        %v2479 = vadd.f32 0.0, %v2478
        %2480 = vmatmul.f32.gmra.mxu0 %v816
        %v2481 = vpop.f32.mrf.mxu0
        %v2482 = vadd.f32 0.0, %v2481
        %2483 = vmatmul.f32.gmra.mxu0 %v818
        %v2484 = vpop.f32.mrf.mxu0
        %v2485 = vadd.f32 0.0, %v2484
        %2486 = vmatmul.f32.gmra.mxu0 %v820
        %v2487 = vpop.f32.mrf.mxu0
        %v2488 = vadd.f32 0.0, %v2487
        %2489 = vmatmul.f32.gmra.mxu0 %v822
        %v2490 = vpop.f32.mrf.mxu0
        %v2491 = vadd.f32 0.0, %v2490
        %2492 = vmatmul.f32.gmra.mxu0 %v824
        %v2493 = vpop.f32.mrf.mxu0
        %v2494 = vadd.f32 0.0, %v2493
        %2495 = vmatmul.f32.gmra.mxu0 %v826
        %v2496 = vpop.f32.mrf.mxu0
        %v2497 = vadd.f32 0.0, %v2496
        %2498 = vmatmul.f32.gmra.mxu0 %v828
        %v2499 = vpop.f32.mrf.mxu0
        %v2500 = vadd.f32 0.0, %v2499
        %2501 = vmatmul.f32.gmra.mxu0 %v830
        %v2502 = vpop.f32.mrf.mxu0
        %v2503 = vadd.f32 0.0, %v2502
        %2504 = vmatmul.f32.gmra.mxu0 %v832
        %v2505 = vpop.f32.mrf.mxu0
        %v2506 = vadd.f32 0.0, %v2505
        %2507 = vmatmul.f32.gmra.mxu0 %v834
        %v2508 = vpop.f32.mrf.mxu0
        %v2509 = vadd.f32 0.0, %v2508
        %2510 = vmatmul.f32.gmra.mxu0 %v836
        %v2511 = vpop.f32.mrf.mxu0
        %v2512 = vadd.f32 0.0, %v2511
        %2513 = vmatmul.f32.gmra.mxu0 %v838
        %v2514 = vpop.f32.mrf.mxu0
        %v2515 = vadd.f32 0.0, %v2514
        %2516 = vmatmul.f32.gmra.mxu0 %v840
        %v2517 = vpop.f32.mrf.mxu0
        %v2518 = vadd.f32 0.0, %v2517
        %2519 = vmatmul.f32.gmra.mxu0 %v842
        %v2520 = vpop.f32.mrf.mxu0
        %v2521 = vadd.f32 0.0, %v2520
        %2522 = vmatmul.f32.gmra.mxu0 %v844
        %v2523 = vpop.f32.mrf.mxu0
        %v2524 = vadd.f32 0.0, %v2523
        %2525 = vmatmul.f32.gmra.mxu0 %v846
        %v2526 = vpop.f32.mrf.mxu0
        %v2527 = vadd.f32 0.0, %v2526
        %2528 = vmatmul.f32.gmra.mxu0 %v848
        %v2529 = vpop.f32.mrf.mxu0
        %v2530 = vadd.f32 0.0, %v2529
        %2531 = vmatmul.f32.gmra.mxu0 %v850
        %v2532 = vpop.f32.mrf.mxu0
        %v2533 = vadd.f32 0.0, %v2532
        %2534 = vmatmul.f32.gmra.mxu0 %v852
        %v2535 = vpop.f32.mrf.mxu0
        %v2536 = vadd.f32 0.0, %v2535
        %2537 = vmatmul.f32.gmra.mxu0 %v854
        %v2538 = vpop.f32.mrf.mxu0
        %v2539 = vadd.f32 0.0, %v2538
        %2540 = vmatmul.f32.gmra.mxu0 %v856
        %v2541 = vpop.f32.mrf.mxu0
        %v2542 = vadd.f32 0.0, %v2541
        %2543 = vmatmul.f32.gmra.mxu0 %v858
        %v2544 = vpop.f32.mrf.mxu0
        %v2545 = vadd.f32 0.0, %v2544
        %2546 = vmatmul.f32.gmra.mxu0 %v860
        %v2547 = vpop.f32.mrf.mxu0
        %v2548 = vadd.f32 0.0, %v2547
        %2549 = vmatmul.f32.gmra.mxu0 %v862
        %v2550 = vpop.f32.mrf.mxu0
        %v2551 = vadd.f32 0.0, %v2550
        %2552 = vmatmul.f32.gmra.mxu0 %v864
        %v2553 = vpop.f32.mrf.mxu0
        %v2554 = vadd.f32 0.0, %v2553
        %2555 = vmatmul.f32.gmra.mxu0 %v866
        %v2556 = vpop.f32.mrf.mxu0
        %v2557 = vadd.f32 0.0, %v2556
        %2558 = vmatmul.f32.gmra.mxu0 %v868
        %v2559 = vpop.f32.mrf.mxu0
        %v2560 = vadd.f32 0.0, %v2559
        %2561 = vmatmul.f32.gmra.mxu0 %v870
        %v2562 = vpop.f32.mrf.mxu0
        %v2563 = vadd.f32 0.0, %v2562
        %2564 = vdwg.mxu0
        %2565 = vmatpush.msra.mxu0 %v1095
        %2566 = vmatpush.msra.mxu0 %v1088
        %2567 = vmatpush.msra.mxu0 %v1081
        %2568 = vmatpush.msra.mxu0 %v1074
        %2569 = vmatpush.msra.mxu0 %v1067
        %2570 = vmatpush.msra.mxu0 %v1060
        %2571 = vmatpush.msra.mxu0 %v1053
        %2572 = vmatpush.msra.mxu0 %v1046
        %2573 = vmatpush.msra.mxu0 %v1039
        %2574 = vmatpush.msra.mxu0 %v1032
        %2575 = vmatpush.msra.mxu0 %v1025
        %2576 = vmatpush.msra.mxu0 %v1018
        %2577 = vmatpush.msra.mxu0 %v1011
        %2578 = vmatpush.msra.mxu0 %v1004
        %2579 = vmatpush.msra.mxu0 %v997
        %2580 = vmatpush.msra.mxu0 %v990
        %2581 = vmatmul.f32.gmra.mxu0 %v809
        %v2582 = vpop.f32.mrf.mxu0
        %v2583 = vadd.f32 %v2470, %v2582
        %2584 = vmatmul.f32.gmra.mxu0 %v811
        %v2585 = vpop.f32.mrf.mxu0
        %v2586 = vadd.f32 %v2473, %v2585
        %2587 = vmatmul.f32.gmra.mxu0 %v813
        %v2588 = vpop.f32.mrf.mxu0
        %v2589 = vadd.f32 %v2476, %v2588
        %2590 = vmatmul.f32.gmra.mxu0 %v815
        %v2591 = vpop.f32.mrf.mxu0
        %v2592 = vadd.f32 %v2479, %v2591
        %2593 = vmatmul.f32.gmra.mxu0 %v817
        %v2594 = vpop.f32.mrf.mxu0
        %v2595 = vadd.f32 %v2482, %v2594
        %2596 = vmatmul.f32.gmra.mxu0 %v819
        %v2597 = vpop.f32.mrf.mxu0
        %v2598 = vadd.f32 %v2485, %v2597
        %2599 = vmatmul.f32.gmra.mxu0 %v821
        %v2600 = vpop.f32.mrf.mxu0
        %v2601 = vadd.f32 %v2488, %v2600
        %2602 = vmatmul.f32.gmra.mxu0 %v823
        %v2603 = vpop.f32.mrf.mxu0
        %v2604 = vadd.f32 %v2491, %v2603
        %2605 = vmatmul.f32.gmra.mxu0 %v825
        %v2606 = vpop.f32.mrf.mxu0
        %v2607 = vadd.f32 %v2494, %v2606
        %2608 = vmatmul.f32.gmra.mxu0 %v827
        %v2609 = vpop.f32.mrf.mxu0
        %v2610 = vadd.f32 %v2497, %v2609
        %2611 = vmatmul.f32.gmra.mxu0 %v829
        %v2612 = vpop.f32.mrf.mxu0
        %v2613 = vadd.f32 %v2500, %v2612
        %2614 = vmatmul.f32.gmra.mxu0 %v831
        %v2615 = vpop.f32.mrf.mxu0
        %v2616 = vadd.f32 %v2503, %v2615
        %2617 = vmatmul.f32.gmra.mxu0 %v833
        %v2618 = vpop.f32.mrf.mxu0
        %v2619 = vadd.f32 %v2506, %v2618
        %2620 = vmatmul.f32.gmra.mxu0 %v835
        %v2621 = vpop.f32.mrf.mxu0
        %v2622 = vadd.f32 %v2509, %v2621
        %2623 = vmatmul.f32.gmra.mxu0 %v837
        %v2624 = vpop.f32.mrf.mxu0
        %v2625 = vadd.f32 %v2512, %v2624
        %2626 = vmatmul.f32.gmra.mxu0 %v839
        %v2627 = vpop.f32.mrf.mxu0
        %v2628 = vadd.f32 %v2515, %v2627
        %2629 = vmatmul.f32.gmra.mxu0 %v841
        %v2630 = vpop.f32.mrf.mxu0
        %v2631 = vadd.f32 %v2518, %v2630
        %2632 = vmatmul.f32.gmra.mxu0 %v843
        %v2633 = vpop.f32.mrf.mxu0
        %v2634 = vadd.f32 %v2521, %v2633
        %2635 = vmatmul.f32.gmra.mxu0 %v845
        %v2636 = vpop.f32.mrf.mxu0
        %v2637 = vadd.f32 %v2524, %v2636
        %2638 = vmatmul.f32.gmra.mxu0 %v847
        %v2639 = vpop.f32.mrf.mxu0
        %v2640 = vadd.f32 %v2527, %v2639
        %2641 = vmatmul.f32.gmra.mxu0 %v849
        %v2642 = vpop.f32.mrf.mxu0
        %v2643 = vadd.f32 %v2530, %v2642
        %2644 = vmatmul.f32.gmra.mxu0 %v851
        %v2645 = vpop.f32.mrf.mxu0
        %v2646 = vadd.f32 %v2533, %v2645
        %2647 = vmatmul.f32.gmra.mxu0 %v853
        %v2648 = vpop.f32.mrf.mxu0
        %v2649 = vadd.f32 %v2536, %v2648
        %2650 = vmatmul.f32.gmra.mxu0 %v855
        %v2651 = vpop.f32.mrf.mxu0
        %v2652 = vadd.f32 %v2539, %v2651
        %2653 = vmatmul.f32.gmra.mxu0 %v857
        %v2654 = vpop.f32.mrf.mxu0
        %v2655 = vadd.f32 %v2542, %v2654
        %2656 = vmatmul.f32.gmra.mxu0 %v859
        %v2657 = vpop.f32.mrf.mxu0
        %v2658 = vadd.f32 %v2545, %v2657
        %2659 = vmatmul.f32.gmra.mxu0 %v861
        %v2660 = vpop.f32.mrf.mxu0
        %v2661 = vadd.f32 %v2548, %v2660
        %2662 = vmatmul.f32.gmra.mxu0 %v863
        %v2663 = vpop.f32.mrf.mxu0
        %v2664 = vadd.f32 %v2551, %v2663
        %2665 = vmatmul.f32.gmra.mxu0 %v865
        %v2666 = vpop.f32.mrf.mxu0
        %v2667 = vadd.f32 %v2554, %v2666
        %2668 = vmatmul.f32.gmra.mxu0 %v867
        %v2669 = vpop.f32.mrf.mxu0
        %v2670 = vadd.f32 %v2557, %v2669
        %2671 = vmatmul.f32.gmra.mxu0 %v869
        %v2672 = vpop.f32.mrf.mxu0
        %v2673 = vadd.f32 %v2560, %v2672
        %2674 = vmatmul.f32.gmra.mxu0 %v871
        %v2675 = vpop.f32.mrf.mxu0
        %v2676 = vadd.f32 %v2563, %v2675
        %2677 = vdwg.mxu0
        %v2678 = vadd.f32 %v584, %v1227
        %v2679 = vadd.f32 %v585, %v1453
        %v2680 = vadd.f32 %v586, %v1679
        %v2681 = vadd.f32 %v587, %v1905
        %v2682 = vadd.f32 %v588, %v2131
        %v2683 = vadd.f32 %v589, %v2357
        %v2684 = vadd.f32 %v590, %v2583
        %v2685 = vadd.f32 %v591, %v1230
        %v2686 = vadd.f32 %v592, %v1456
        %v2687 = vadd.f32 %v593, %v1682
        %v2688 = vadd.f32 %v594, %v1908
        %v2689 = vadd.f32 %v595, %v2134
        %v2690 = vadd.f32 %v596, %v2360
        %v2691 = vadd.f32 %v597, %v2586
        %v2692 = vadd.f32 %v598, %v1233
        %v2693 = vadd.f32 %v599, %v1459
        %v2694 = vadd.f32 %v600, %v1685
        %v2695 = vadd.f32 %v601, %v1911
        %v2696 = vadd.f32 %v602, %v2137
        %v2697 = vadd.f32 %v603, %v2363
        %v2698 = vadd.f32 %v604, %v2589
        %v2699 = vadd.f32 %v605, %v1236
        %v2700 = vadd.f32 %v606, %v1462
        %v2701 = vadd.f32 %v607, %v1688
        %v2702 = vadd.f32 %v608, %v1914
        %v2703 = vadd.f32 %v609, %v2140
        %v2704 = vadd.f32 %v610, %v2366
        %v2705 = vadd.f32 %v611, %v2592
        %v2706 = vadd.f32 %v612, %v1239
        %v2707 = vadd.f32 %v613, %v1465
        %v2708 = vadd.f32 %v614, %v1691
        %v2709 = vadd.f32 %v615, %v1917
        %v2710 = vadd.f32 %v616, %v2143
        %v2711 = vadd.f32 %v617, %v2369
        %v2712 = vadd.f32 %v618, %v2595
        %v2713 = vadd.f32 %v619, %v1242
        %v2714 = vadd.f32 %v620, %v1468
        %v2715 = vadd.f32 %v621, %v1694
        %v2716 = vadd.f32 %v622, %v1920
        %v2717 = vadd.f32 %v623, %v2146
        %v2718 = vadd.f32 %v624, %v2372
        %v2719 = vadd.f32 %v625, %v2598
        %v2720 = vadd.f32 %v626, %v1245
        %v2721 = vadd.f32 %v627, %v1471
        %v2722 = vadd.f32 %v628, %v1697
        %v2723 = vadd.f32 %v629, %v1923
        %v2724 = vadd.f32 %v630, %v2149
        %v2725 = vadd.f32 %v631, %v2375
        %v2726 = vadd.f32 %v632, %v2601
        %v2727 = vadd.f32 %v633, %v1248
        %v2728 = vadd.f32 %v634, %v1474
        %v2729 = vadd.f32 %v635, %v1700
        %v2730 = vadd.f32 %v636, %v1926
        %v2731 = vadd.f32 %v637, %v2152
        %v2732 = vadd.f32 %v638, %v2378
        %v2733 = vadd.f32 %v639, %v2604
        %v2734 = vadd.f32 %v640, %v1251
        %v2735 = vadd.f32 %v641, %v1477
        %v2736 = vadd.f32 %v642, %v1703
        %v2737 = vadd.f32 %v643, %v1929
        %v2738 = vadd.f32 %v644, %v2155
        %v2739 = vadd.f32 %v645, %v2381
        %v2740 = vadd.f32 %v646, %v2607
        %v2741 = vadd.f32 %v647, %v1254
        %v2742 = vadd.f32 %v648, %v1480
        %v2743 = vadd.f32 %v649, %v1706
        %v2744 = vadd.f32 %v650, %v1932
        %v2745 = vadd.f32 %v651, %v2158
        %v2746 = vadd.f32 %v652, %v2384
        %v2747 = vadd.f32 %v653, %v2610
        %v2748 = vadd.f32 %v654, %v1257
        %v2749 = vadd.f32 %v655, %v1483
        %v2750 = vadd.f32 %v656, %v1709
        %v2751 = vadd.f32 %v657, %v1935
        %v2752 = vadd.f32 %v658, %v2161
        %v2753 = vadd.f32 %v659, %v2387
        %v2754 = vadd.f32 %v660, %v2613
        %v2755 = vadd.f32 %v661, %v1260
        %v2756 = vadd.f32 %v662, %v1486
        %v2757 = vadd.f32 %v663, %v1712
        %v2758 = vadd.f32 %v664, %v1938
        %v2759 = vadd.f32 %v665, %v2164
        %v2760 = vadd.f32 %v666, %v2390
        %v2761 = vadd.f32 %v667, %v2616
        %v2762 = vadd.f32 %v668, %v1263
        %v2763 = vadd.f32 %v669, %v1489
        %v2764 = vadd.f32 %v670, %v1715
        %v2765 = vadd.f32 %v671, %v1941
        %v2766 = vadd.f32 %v672, %v2167
        %v2767 = vadd.f32 %v673, %v2393
        %v2768 = vadd.f32 %v674, %v2619
        %v2769 = vadd.f32 %v675, %v1266
        %v2770 = vadd.f32 %v676, %v1492
        %v2771 = vadd.f32 %v677, %v1718
        %v2772 = vadd.f32 %v678, %v1944
        %v2773 = vadd.f32 %v679, %v2170
        %v2774 = vadd.f32 %v680, %v2396
        %v2775 = vadd.f32 %v681, %v2622
        %v2776 = vadd.f32 %v682, %v1269
        %v2777 = vadd.f32 %v683, %v1495
        %v2778 = vadd.f32 %v684, %v1721
        %v2779 = vadd.f32 %v685, %v1947
        %v2780 = vadd.f32 %v686, %v2173
        %v2781 = vadd.f32 %v687, %v2399
        %v2782 = vadd.f32 %v688, %v2625
        %v2783 = vadd.f32 %v689, %v1272
        %v2784 = vadd.f32 %v690, %v1498
        %v2785 = vadd.f32 %v691, %v1724
        %v2786 = vadd.f32 %v692, %v1950
        %v2787 = vadd.f32 %v693, %v2176
        %v2788 = vadd.f32 %v694, %v2402
        %v2789 = vadd.f32 %v695, %v2628
        %v2790 = vadd.f32 %v696, %v1275
        %v2791 = vadd.f32 %v697, %v1501
        %v2792 = vadd.f32 %v698, %v1727
        %v2793 = vadd.f32 %v699, %v1953
        %v2794 = vadd.f32 %v700, %v2179
        %v2795 = vadd.f32 %v701, %v2405
        %v2796 = vadd.f32 %v702, %v2631
        %v2797 = vadd.f32 %v703, %v1278
        %v2798 = vadd.f32 %v704, %v1504
        %v2799 = vadd.f32 %v705, %v1730
        %v2800 = vadd.f32 %v706, %v1956
        %v2801 = vadd.f32 %v707, %v2182
        %v2802 = vadd.f32 %v708, %v2408
        %v2803 = vadd.f32 %v709, %v2634
        %v2804 = vadd.f32 %v710, %v1281
        %v2805 = vadd.f32 %v711, %v1507
        %v2806 = vadd.f32 %v712, %v1733
        %v2807 = vadd.f32 %v713, %v1959
        %v2808 = vadd.f32 %v714, %v2185
        %v2809 = vadd.f32 %v715, %v2411
        %v2810 = vadd.f32 %v716, %v2637
        %v2811 = vadd.f32 %v717, %v1284
        %v2812 = vadd.f32 %v718, %v1510
        %v2813 = vadd.f32 %v719, %v1736
        %v2814 = vadd.f32 %v720, %v1962
        %v2815 = vadd.f32 %v721, %v2188
        %v2816 = vadd.f32 %v722, %v2414
        %v2817 = vadd.f32 %v723, %v2640
        %v2818 = vadd.f32 %v724, %v1287
        %v2819 = vadd.f32 %v725, %v1513
        %v2820 = vadd.f32 %v726, %v1739
        %v2821 = vadd.f32 %v727, %v1965
        %v2822 = vadd.f32 %v728, %v2191
        %v2823 = vadd.f32 %v729, %v2417
        %v2824 = vadd.f32 %v730, %v2643
        %v2825 = vadd.f32 %v731, %v1290
        %v2826 = vadd.f32 %v732, %v1516
        %v2827 = vadd.f32 %v733, %v1742
        %v2828 = vadd.f32 %v734, %v1968
        %v2829 = vadd.f32 %v735, %v2194
        %v2830 = vadd.f32 %v736, %v2420
        %v2831 = vadd.f32 %v737, %v2646
        %v2832 = vadd.f32 %v738, %v1293
        %v2833 = vadd.f32 %v739, %v1519
        %v2834 = vadd.f32 %v740, %v1745
        %v2835 = vadd.f32 %v741, %v1971
        %v2836 = vadd.f32 %v742, %v2197
        %v2837 = vadd.f32 %v743, %v2423
        %v2838 = vadd.f32 %v744, %v2649
        %v2839 = vadd.f32 %v745, %v1296
        %v2840 = vadd.f32 %v746, %v1522
        %v2841 = vadd.f32 %v747, %v1748
        %v2842 = vadd.f32 %v748, %v1974
        %v2843 = vadd.f32 %v749, %v2200
        %v2844 = vadd.f32 %v750, %v2426
        %v2845 = vadd.f32 %v751, %v2652
        %v2846 = vadd.f32 %v752, %v1299
        %v2847 = vadd.f32 %v753, %v1525
        %v2848 = vadd.f32 %v754, %v1751
        %v2849 = vadd.f32 %v755, %v1977
        %v2850 = vadd.f32 %v756, %v2203
        %v2851 = vadd.f32 %v757, %v2429
        %v2852 = vadd.f32 %v758, %v2655
        %v2853 = vadd.f32 %v759, %v1302
        %v2854 = vadd.f32 %v760, %v1528
        %v2855 = vadd.f32 %v761, %v1754
        %v2856 = vadd.f32 %v762, %v1980
        %v2857 = vadd.f32 %v763, %v2206
        %v2858 = vadd.f32 %v764, %v2432
        %v2859 = vadd.f32 %v765, %v2658
        %v2860 = vadd.f32 %v766, %v1305
        %v2861 = vadd.f32 %v767, %v1531
        %v2862 = vadd.f32 %v768, %v1757
        %v2863 = vadd.f32 %v769, %v1983
        %v2864 = vadd.f32 %v770, %v2209
        %v2865 = vadd.f32 %v771, %v2435
        %v2866 = vadd.f32 %v772, %v2661
        %v2867 = vadd.f32 %v773, %v1308
        %v2868 = vadd.f32 %v774, %v1534
        %v2869 = vadd.f32 %v775, %v1760
        %v2870 = vadd.f32 %v776, %v1986
        %v2871 = vadd.f32 %v777, %v2212
        %v2872 = vadd.f32 %v778, %v2438
        %v2873 = vadd.f32 %v779, %v2664
        %v2874 = vadd.f32 %v780, %v1311
        %v2875 = vadd.f32 %v781, %v1537
        %v2876 = vadd.f32 %v782, %v1763
        %v2877 = vadd.f32 %v783, %v1989
        %v2878 = vadd.f32 %v784, %v2215
        %v2879 = vadd.f32 %v785, %v2441
        %v2880 = vadd.f32 %v786, %v2667
        %v2881 = vadd.f32 %v787, %v1314
        %v2882 = vadd.f32 %v788, %v1540
        %v2883 = vadd.f32 %v789, %v1766
        %v2884 = vadd.f32 %v790, %v1992
        %v2885 = vadd.f32 %v791, %v2218
        %v2886 = vadd.f32 %v792, %v2444
        %v2887 = vadd.f32 %v793, %v2670
        %v2888 = vadd.f32 %v794, %v1317
        %v2889 = vadd.f32 %v795, %v1543
        %v2890 = vadd.f32 %v796, %v1769
        %v2891 = vadd.f32 %v797, %v1995
        %v2892 = vadd.f32 %v798, %v2221
        %v2893 = vadd.f32 %v799, %v2447
        %v2894 = vadd.f32 %v800, %v2673
        %v2895 = vadd.f32 %v801, %v1320
        %v2896 = vadd.f32 %v802, %v1546
        %v2897 = vadd.f32 %v803, %v1772
        %v2898 = vadd.f32 %v804, %v1998
        %v2899 = vadd.f32 %v805, %v2224
        %v2900 = vadd.f32 %v806, %v2450
        %v2901 = vadd.f32 %v807, %v2676
        %2902 = vst [vmem:[%s4] sm:$0xff] %v2678
        %2903 = vst [vmem:[%s4 + $0x8] sm:$0xff] %v2679
        %2904 = vst [vmem:[%s4 + $0x10] sm:$0xff] %v2680
        %2905 = vst [vmem:[%s4 + $0x18] sm:$0xff] %v2681
        %2906 = vst [vmem:[%s4 + $0x20] sm:$0xff] %v2682
        %2907 = vst [vmem:[%s4 + $0x28] sm:$0xff] %v2683
        %vm2908 = vcmask 130048
        %2909 = vst.msk [vmem:[%s4 + $0x30] sm:$0xff] %vm2908, %v2684
        %2910 = vst [vmem:[%s4 + $0x38] sm:$0xff] %v2685
        %2911 = vst [vmem:[%s4 + $0x40] sm:$0xff] %v2686
        %2912 = vst [vmem:[%s4 + $0x48] sm:$0xff] %v2687
        %2913 = vst [vmem:[%s4 + $0x50] sm:$0xff] %v2688
        %2914 = vst [vmem:[%s4 + $0x58] sm:$0xff] %v2689
        %2915 = vst [vmem:[%s4 + $0x60] sm:$0xff] %v2690
        %2916 = vst.msk [vmem:[%s4 + $0x68] sm:$0xff] %vm2908, %v2691
        %2917 = vst [vmem:[%s4 + $0x70] sm:$0xff] %v2692
        %2918 = vst [vmem:[%s4 + $0x78] sm:$0xff] %v2693
        %2919 = vst [vmem:[%s4 + $0x80] sm:$0xff] %v2694
        %2920 = vst [vmem:[%s4 + $0x88] sm:$0xff] %v2695
        %2921 = vst [vmem:[%s4 + $0x90] sm:$0xff] %v2696
        %2922 = vst [vmem:[%s4 + $0x98] sm:$0xff] %v2697
        %2923 = vst.msk [vmem:[%s4 + $0xa0] sm:$0xff] %vm2908, %v2698
        %2924 = vst [vmem:[%s4 + $0xa8] sm:$0xff] %v2699
        %2925 = vst [vmem:[%s4 + $0xb0] sm:$0xff] %v2700
        %2926 = vst [vmem:[%s4 + $0xb8] sm:$0xff] %v2701
        %2927 = vst [vmem:[%s4 + $0xc0] sm:$0xff] %v2702
        %2928 = vst [vmem:[%s4 + $0xc8] sm:$0xff] %v2703
        %2929 = vst [vmem:[%s4 + $0xd0] sm:$0xff] %v2704
        %2930 = vst.msk [vmem:[%s4 + $0xd8] sm:$0xff] %vm2908, %v2705
        %2931 = vst [vmem:[%s4 + $0xe0] sm:$0xff] %v2706
        %2932 = vst [vmem:[%s4 + $0xe8] sm:$0xff] %v2707
        %2933 = vst [vmem:[%s4 + $0xf0] sm:$0xff] %v2708
        %2934 = vst [vmem:[%s4 + $0xf8] sm:$0xff] %v2709
        %2935 = vst [vmem:[%s4 + $0x100] sm:$0xff] %v2710
        %2936 = vst [vmem:[%s4 + $0x108] sm:$0xff] %v2711
        %2937 = vst.msk [vmem:[%s4 + $0x110] sm:$0xff] %vm2908, %v2712
        %2938 = vst [vmem:[%s4 + $0x118] sm:$0xff] %v2713
        %2939 = vst [vmem:[%s4 + $0x120] sm:$0xff] %v2714
        %2940 = vst [vmem:[%s4 + $0x128] sm:$0xff] %v2715
        %2941 = vst [vmem:[%s4 + $0x130] sm:$0xff] %v2716
        %2942 = vst [vmem:[%s4 + $0x138] sm:$0xff] %v2717
        %2943 = vst [vmem:[%s4 + $0x140] sm:$0xff] %v2718
        %2944 = vst.msk [vmem:[%s4 + $0x148] sm:$0xff] %vm2908, %v2719
        %2945 = vst [vmem:[%s4 + $0x150] sm:$0xff] %v2720
        %2946 = vst [vmem:[%s4 + $0x158] sm:$0xff] %v2721
        %2947 = vst [vmem:[%s4 + $0x160] sm:$0xff] %v2722
        %2948 = vst [vmem:[%s4 + $0x168] sm:$0xff] %v2723
        %2949 = vst [vmem:[%s4 + $0x170] sm:$0xff] %v2724
        %2950 = vst [vmem:[%s4 + $0x178] sm:$0xff] %v2725
        %2951 = vst.msk [vmem:[%s4 + $0x180] sm:$0xff] %vm2908, %v2726
        %2952 = vst [vmem:[%s4 + $0x188] sm:$0xff] %v2727
        %2953 = vst [vmem:[%s4 + $0x190] sm:$0xff] %v2728
        %2954 = vst [vmem:[%s4 + $0x198] sm:$0xff] %v2729
        %2955 = vst [vmem:[%s4 + $0x1a0] sm:$0xff] %v2730
        %2956 = vst [vmem:[%s4 + $0x1a8] sm:$0xff] %v2731
        %2957 = vst [vmem:[%s4 + $0x1b0] sm:$0xff] %v2732
        %2958 = vst.msk [vmem:[%s4 + $0x1b8] sm:$0xff] %vm2908, %v2733
        %2959 = vst [vmem:[%s4 + $0x1c0] sm:$0xff] %v2734
        %2960 = vst [vmem:[%s4 + $0x1c8] sm:$0xff] %v2735
        %2961 = vst [vmem:[%s4 + $0x1d0] sm:$0xff] %v2736
        %2962 = vst [vmem:[%s4 + $0x1d8] sm:$0xff] %v2737
        %2963 = vst [vmem:[%s4 + $0x1e0] sm:$0xff] %v2738
        %2964 = vst [vmem:[%s4 + $0x1e8] sm:$0xff] %v2739
        %2965 = vst.msk [vmem:[%s4 + $0x1f0] sm:$0xff] %vm2908, %v2740
        %2966 = vst [vmem:[%s4 + $0x1f8] sm:$0xff] %v2741
        %2967 = vst [vmem:[%s4 + $0x200] sm:$0xff] %v2742
        %2968 = vst [vmem:[%s4 + $0x208] sm:$0xff] %v2743
        %2969 = vst [vmem:[%s4 + $0x210] sm:$0xff] %v2744
        %2970 = vst [vmem:[%s4 + $0x218] sm:$0xff] %v2745
        %2971 = vst [vmem:[%s4 + $0x220] sm:$0xff] %v2746
        %2972 = vst.msk [vmem:[%s4 + $0x228] sm:$0xff] %vm2908, %v2747
        %2973 = vst [vmem:[%s4 + $0x230] sm:$0xff] %v2748
        %2974 = vst [vmem:[%s4 + $0x238] sm:$0xff] %v2749
        %2975 = vst [vmem:[%s4 + $0x240] sm:$0xff] %v2750
        %2976 = vst [vmem:[%s4 + $0x248] sm:$0xff] %v2751
        %2977 = vst [vmem:[%s4 + $0x250] sm:$0xff] %v2752
        %2978 = vst [vmem:[%s4 + $0x258] sm:$0xff] %v2753
        %2979 = vst.msk [vmem:[%s4 + $0x260] sm:$0xff] %vm2908, %v2754
        %2980 = vst [vmem:[%s4 + $0x268] sm:$0xff] %v2755
        %2981 = vst [vmem:[%s4 + $0x270] sm:$0xff] %v2756
        %2982 = vst [vmem:[%s4 + $0x278] sm:$0xff] %v2757
        %2983 = vst [vmem:[%s4 + $0x280] sm:$0xff] %v2758
        %2984 = vst [vmem:[%s4 + $0x288] sm:$0xff] %v2759
        %2985 = vst [vmem:[%s4 + $0x290] sm:$0xff] %v2760
        %2986 = vst.msk [vmem:[%s4 + $0x298] sm:$0xff] %vm2908, %v2761
        %2987 = vst [vmem:[%s4 + $0x2a0] sm:$0xff] %v2762
        %2988 = vst [vmem:[%s4 + $0x2a8] sm:$0xff] %v2763
        %2989 = vst [vmem:[%s4 + $0x2b0] sm:$0xff] %v2764
        %2990 = vst [vmem:[%s4 + $0x2b8] sm:$0xff] %v2765
        %2991 = vst [vmem:[%s4 + $0x2c0] sm:$0xff] %v2766
        %2992 = vst [vmem:[%s4 + $0x2c8] sm:$0xff] %v2767
        %2993 = vst.msk [vmem:[%s4 + $0x2d0] sm:$0xff] %vm2908, %v2768
        %2994 = vst [vmem:[%s4 + $0x2d8] sm:$0xff] %v2769
        %2995 = vst [vmem:[%s4 + $0x2e0] sm:$0xff] %v2770
        %2996 = vst [vmem:[%s4 + $0x2e8] sm:$0xff] %v2771
        %2997 = vst [vmem:[%s4 + $0x2f0] sm:$0xff] %v2772
        %2998 = vst [vmem:[%s4 + $0x2f8] sm:$0xff] %v2773
        %2999 = vst [vmem:[%s4 + $0x300] sm:$0xff] %v2774
        %3000 = vst.msk [vmem:[%s4 + $0x308] sm:$0xff] %vm2908, %v2775
        %3001 = vst [vmem:[%s4 + $0x310] sm:$0xff] %v2776
        %3002 = vst [vmem:[%s4 + $0x318] sm:$0xff] %v2777
        %3003 = vst [vmem:[%s4 + $0x320] sm:$0xff] %v2778
        %3004 = vst [vmem:[%s4 + $0x328] sm:$0xff] %v2779
        %3005 = vst [vmem:[%s4 + $0x330] sm:$0xff] %v2780
        %3006 = vst [vmem:[%s4 + $0x338] sm:$0xff] %v2781
        %3007 = vst.msk [vmem:[%s4 + $0x340] sm:$0xff] %vm2908, %v2782
        %3008 = vst [vmem:[%s4 + $0x348] sm:$0xff] %v2783
        %3009 = vst [vmem:[%s4 + $0x350] sm:$0xff] %v2784
        %3010 = vst [vmem:[%s4 + $0x358] sm:$0xff] %v2785
        %3011 = vst [vmem:[%s4 + $0x360] sm:$0xff] %v2786
        %3012 = vst [vmem:[%s4 + $0x368] sm:$0xff] %v2787
        %3013 = vst [vmem:[%s4 + $0x370] sm:$0xff] %v2788
        %3014 = vst.msk [vmem:[%s4 + $0x378] sm:$0xff] %vm2908, %v2789
        %3015 = vst [vmem:[%s4 + $0x380] sm:$0xff] %v2790
        %3016 = vst [vmem:[%s4 + $0x388] sm:$0xff] %v2791
        %3017 = vst [vmem:[%s4 + $0x390] sm:$0xff] %v2792
        %3018 = vst [vmem:[%s4 + $0x398] sm:$0xff] %v2793
        %3019 = vst [vmem:[%s4 + $0x3a0] sm:$0xff] %v2794
        %3020 = vst [vmem:[%s4 + $0x3a8] sm:$0xff] %v2795
        %3021 = vst.msk [vmem:[%s4 + $0x3b0] sm:$0xff] %vm2908, %v2796
        %3022 = vst [vmem:[%s4 + $0x3b8] sm:$0xff] %v2797
        %3023 = vst [vmem:[%s4 + $0x3c0] sm:$0xff] %v2798
        %3024 = vst [vmem:[%s4 + $0x3c8] sm:$0xff] %v2799
        %3025 = vst [vmem:[%s4 + $0x3d0] sm:$0xff] %v2800
        %3026 = vst [vmem:[%s4 + $0x3d8] sm:$0xff] %v2801
        %3027 = vst [vmem:[%s4 + $0x3e0] sm:$0xff] %v2802
        %3028 = vst.msk [vmem:[%s4 + $0x3e8] sm:$0xff] %vm2908, %v2803
        %3029 = vst [vmem:[%s4 + $0x3f0] sm:$0xff] %v2804
        %3030 = vst [vmem:[%s4 + $0x3f8] sm:$0xff] %v2805
        %3031 = vst [vmem:[%s4 + $0x400] sm:$0xff] %v2806
        %3032 = vst [vmem:[%s4 + $0x408] sm:$0xff] %v2807
        %3033 = vst [vmem:[%s4 + $0x410] sm:$0xff] %v2808
        %3034 = vst [vmem:[%s4 + $0x418] sm:$0xff] %v2809
        %3035 = vst.msk [vmem:[%s4 + $0x420] sm:$0xff] %vm2908, %v2810
        %3036 = vst [vmem:[%s4 + $0x428] sm:$0xff] %v2811
        %3037 = vst [vmem:[%s4 + $0x430] sm:$0xff] %v2812
        %3038 = vst [vmem:[%s4 + $0x438] sm:$0xff] %v2813
        %3039 = vst [vmem:[%s4 + $0x440] sm:$0xff] %v2814
        %3040 = vst [vmem:[%s4 + $0x448] sm:$0xff] %v2815
        %3041 = vst [vmem:[%s4 + $0x450] sm:$0xff] %v2816
        %3042 = vst.msk [vmem:[%s4 + $0x458] sm:$0xff] %vm2908, %v2817
        %3043 = vst [vmem:[%s4 + $0x460] sm:$0xff] %v2818
        %3044 = vst [vmem:[%s4 + $0x468] sm:$0xff] %v2819
        %3045 = vst [vmem:[%s4 + $0x470] sm:$0xff] %v2820
        %3046 = vst [vmem:[%s4 + $0x478] sm:$0xff] %v2821
        %3047 = vst [vmem:[%s4 + $0x480] sm:$0xff] %v2822
        %3048 = vst [vmem:[%s4 + $0x488] sm:$0xff] %v2823
        %3049 = vst.msk [vmem:[%s4 + $0x490] sm:$0xff] %vm2908, %v2824
        %3050 = vst [vmem:[%s4 + $0x498] sm:$0xff] %v2825
        %3051 = vst [vmem:[%s4 + $0x4a0] sm:$0xff] %v2826
        %3052 = vst [vmem:[%s4 + $0x4a8] sm:$0xff] %v2827
        %3053 = vst [vmem:[%s4 + $0x4b0] sm:$0xff] %v2828
        %3054 = vst [vmem:[%s4 + $0x4b8] sm:$0xff] %v2829
        %3055 = vst [vmem:[%s4 + $0x4c0] sm:$0xff] %v2830
        %3056 = vst.msk [vmem:[%s4 + $0x4c8] sm:$0xff] %vm2908, %v2831
        %3057 = vst [vmem:[%s4 + $0x4d0] sm:$0xff] %v2832
        %3058 = vst [vmem:[%s4 + $0x4d8] sm:$0xff] %v2833
        %3059 = vst [vmem:[%s4 + $0x4e0] sm:$0xff] %v2834
        %3060 = vst [vmem:[%s4 + $0x4e8] sm:$0xff] %v2835
        %3061 = vst [vmem:[%s4 + $0x4f0] sm:$0xff] %v2836
        %3062 = vst [vmem:[%s4 + $0x4f8] sm:$0xff] %v2837
        %3063 = vst.msk [vmem:[%s4 + $0x500] sm:$0xff] %vm2908, %v2838
        %3064 = vst [vmem:[%s4 + $0x508] sm:$0xff] %v2839
        %3065 = vst [vmem:[%s4 + $0x510] sm:$0xff] %v2840
        %3066 = vst [vmem:[%s4 + $0x518] sm:$0xff] %v2841
        %3067 = vst [vmem:[%s4 + $0x520] sm:$0xff] %v2842
        %3068 = vst [vmem:[%s4 + $0x528] sm:$0xff] %v2843
        %3069 = vst [vmem:[%s4 + $0x530] sm:$0xff] %v2844
        %3070 = vst.msk [vmem:[%s4 + $0x538] sm:$0xff] %vm2908, %v2845
        %3071 = vst [vmem:[%s4 + $0x540] sm:$0xff] %v2846
        %3072 = vst [vmem:[%s4 + $0x548] sm:$0xff] %v2847
        %3073 = vst [vmem:[%s4 + $0x550] sm:$0xff] %v2848
        %3074 = vst [vmem:[%s4 + $0x558] sm:$0xff] %v2849
        %3075 = vst [vmem:[%s4 + $0x560] sm:$0xff] %v2850
        %3076 = vst [vmem:[%s4 + $0x568] sm:$0xff] %v2851
        %3077 = vst.msk [vmem:[%s4 + $0x570] sm:$0xff] %vm2908, %v2852
        %3078 = vst [vmem:[%s4 + $0x578] sm:$0xff] %v2853
        %3079 = vst [vmem:[%s4 + $0x580] sm:$0xff] %v2854
        %3080 = vst [vmem:[%s4 + $0x588] sm:$0xff] %v2855
        %3081 = vst [vmem:[%s4 + $0x590] sm:$0xff] %v2856
        %3082 = vst [vmem:[%s4 + $0x598] sm:$0xff] %v2857
        %3083 = vst [vmem:[%s4 + $0x5a0] sm:$0xff] %v2858
        %3084 = vst.msk [vmem:[%s4 + $0x5a8] sm:$0xff] %vm2908, %v2859
        %3085 = vst [vmem:[%s4 + $0x5b0] sm:$0xff] %v2860
        %3086 = vst [vmem:[%s4 + $0x5b8] sm:$0xff] %v2861
        %3087 = vst [vmem:[%s4 + $0x5c0] sm:$0xff] %v2862
        %3088 = vst [vmem:[%s4 + $0x5c8] sm:$0xff] %v2863
        %3089 = vst [vmem:[%s4 + $0x5d0] sm:$0xff] %v2864
        %3090 = vst [vmem:[%s4 + $0x5d8] sm:$0xff] %v2865
        %3091 = vst.msk [vmem:[%s4 + $0x5e0] sm:$0xff] %vm2908, %v2866
        %3092 = vst [vmem:[%s4 + $0x5e8] sm:$0xff] %v2867
        %3093 = vst [vmem:[%s4 + $0x5f0] sm:$0xff] %v2868
        %3094 = vst [vmem:[%s4 + $0x5f8] sm:$0xff] %v2869
        %3095 = vst [vmem:[%s4 + $0x600] sm:$0xff] %v2870
        %3096 = vst [vmem:[%s4 + $0x608] sm:$0xff] %v2871
        %3097 = vst [vmem:[%s4 + $0x610] sm:$0xff] %v2872
        %3098 = vst.msk [vmem:[%s4 + $0x618] sm:$0xff] %vm2908, %v2873
        %3099 = vst [vmem:[%s4 + $0x620] sm:$0xff] %v2874
        %3100 = vst [vmem:[%s4 + $0x628] sm:$0xff] %v2875
        %3101 = vst [vmem:[%s4 + $0x630] sm:$0xff] %v2876
        %3102 = vst [vmem:[%s4 + $0x638] sm:$0xff] %v2877
        %3103 = vst [vmem:[%s4 + $0x640] sm:$0xff] %v2878
        %3104 = vst [vmem:[%s4 + $0x648] sm:$0xff] %v2879
        %3105 = vst.msk [vmem:[%s4 + $0x650] sm:$0xff] %vm2908, %v2880
        %3106 = vst [vmem:[%s4 + $0x658] sm:$0xff] %v2881
        %3107 = vst [vmem:[%s4 + $0x660] sm:$0xff] %v2882
        %3108 = vst [vmem:[%s4 + $0x668] sm:$0xff] %v2883
        %3109 = vst [vmem:[%s4 + $0x670] sm:$0xff] %v2884
        %3110 = vst [vmem:[%s4 + $0x678] sm:$0xff] %v2885
        %3111 = vst [vmem:[%s4 + $0x680] sm:$0xff] %v2886
        %3112 = vst.msk [vmem:[%s4 + $0x688] sm:$0xff] %vm2908, %v2887
        %3113 = vst [vmem:[%s4 + $0x690] sm:$0xff] %v2888
        %3114 = vst [vmem:[%s4 + $0x698] sm:$0xff] %v2889
        %3115 = vst [vmem:[%s4 + $0x6a0] sm:$0xff] %v2890
        %3116 = vst [vmem:[%s4 + $0x6a8] sm:$0xff] %v2891
        %3117 = vst [vmem:[%s4 + $0x6b0] sm:$0xff] %v2892
        %3118 = vst [vmem:[%s4 + $0x6b8] sm:$0xff] %v2893
        %3119 = vst.msk [vmem:[%s4 + $0x6c0] sm:$0xff] %vm2908, %v2894
        %3120 = vst [vmem:[%s4 + $0x6c8] sm:$0xff] %v2895
        %3121 = vst [vmem:[%s4 + $0x6d0] sm:$0xff] %v2896
        %3122 = vst [vmem:[%s4 + $0x6d8] sm:$0xff] %v2897
        %3123 = vst [vmem:[%s4 + $0x6e0] sm:$0xff] %v2898
        %3124 = vst [vmem:[%s4 + $0x6e8] sm:$0xff] %v2899
        %3125 = vst [vmem:[%s4 + $0x6f0] sm:$0xff] %v2900
        %3126 = vst.msk [vmem:[%s4 + $0x6f8] sm:$0xff] %vm2908, %v2901
        %p3127 = scmp.eq.s32.totalorder %s15, 4
        // Predicated region
        $region64: #{tpu_custom_call.1} parent=54 // pred_check
          %p3128 = pneg %p3127
        $region65: #{tpu_custom_call.1} parent=54 // pred_check_branch
          %3130 = sbr.rel (%p3128) target = $region67
        $region66: #{tpu_custom_call.1} parent=54 // pred_region
          %v3131 = vld [vmem:[%s4] sm:$0xff]
          %v3132 = vld [vmem:[%s4 + $0x8] sm:$0xff]
          %v3133 = vld [vmem:[%s4 + $0x10] sm:$0xff]
          %v3134 = vld [vmem:[%s4 + $0x18] sm:$0xff]
          %v3135 = vld [vmem:[%s4 + $0x20] sm:$0xff]
          %v3136 = vld [vmem:[%s4 + $0x28] sm:$0xff]
          %v3137 = vld [vmem:[%s4 + $0x30] sm:$0xff]
          %v3138 = vld [vmem:[%s4 + $0x38] sm:$0xff]
          %v3139 = vld [vmem:[%s4 + $0x40] sm:$0xff]
          %v3140 = vld [vmem:[%s4 + $0x48] sm:$0xff]
          %v3141 = vld [vmem:[%s4 + $0x50] sm:$0xff]
          %v3142 = vld [vmem:[%s4 + $0x58] sm:$0xff]
          %v3143 = vld [vmem:[%s4 + $0x60] sm:$0xff]
          %v3144 = vld [vmem:[%s4 + $0x68] sm:$0xff]
          %v3145 = vld [vmem:[%s4 + $0x70] sm:$0xff]
          %v3146 = vld [vmem:[%s4 + $0x78] sm:$0xff]
          %v3147 = vld [vmem:[%s4 + $0x80] sm:$0xff]
          %v3148 = vld [vmem:[%s4 + $0x88] sm:$0xff]
          %v3149 = vld [vmem:[%s4 + $0x90] sm:$0xff]
          %v3150 = vld [vmem:[%s4 + $0x98] sm:$0xff]
          %v3151 = vld [vmem:[%s4 + $0xa0] sm:$0xff]
          %v3152 = vld [vmem:[%s4 + $0xa8] sm:$0xff]
          %v3153 = vld [vmem:[%s4 + $0xb0] sm:$0xff]
          %v3154 = vld [vmem:[%s4 + $0xb8] sm:$0xff]
          %v3155 = vld [vmem:[%s4 + $0xc0] sm:$0xff]
          %v3156 = vld [vmem:[%s4 + $0xc8] sm:$0xff]
          %v3157 = vld [vmem:[%s4 + $0xd0] sm:$0xff]
          %v3158 = vld [vmem:[%s4 + $0xd8] sm:$0xff]
          %v3159 = vld [vmem:[%s4 + $0xe0] sm:$0xff]
          %v3160 = vld [vmem:[%s4 + $0xe8] sm:$0xff]
          %v3161 = vld [vmem:[%s4 + $0xf0] sm:$0xff]
          %v3162 = vld [vmem:[%s4 + $0xf8] sm:$0xff]
          %v3163 = vld [vmem:[%s4 + $0x100] sm:$0xff]
          %v3164 = vld [vmem:[%s4 + $0x108] sm:$0xff]
          %v3165 = vld [vmem:[%s4 + $0x110] sm:$0xff]
          %v3166 = vld [vmem:[%s4 + $0x118] sm:$0xff]
          %v3167 = vld [vmem:[%s4 + $0x120] sm:$0xff]
          %v3168 = vld [vmem:[%s4 + $0x128] sm:$0xff]
          %v3169 = vld [vmem:[%s4 + $0x130] sm:$0xff]
          %v3170 = vld [vmem:[%s4 + $0x138] sm:$0xff]
          %v3171 = vld [vmem:[%s4 + $0x140] sm:$0xff]
          %v3172 = vld [vmem:[%s4 + $0x148] sm:$0xff]
          %v3173 = vld [vmem:[%s4 + $0x150] sm:$0xff]
          %v3174 = vld [vmem:[%s4 + $0x158] sm:$0xff]
          %v3175 = vld [vmem:[%s4 + $0x160] sm:$0xff]
          %v3176 = vld [vmem:[%s4 + $0x168] sm:$0xff]
          %v3177 = vld [vmem:[%s4 + $0x170] sm:$0xff]
          %v3178 = vld [vmem:[%s4 + $0x178] sm:$0xff]
          %v3179 = vld [vmem:[%s4 + $0x180] sm:$0xff]
          %v3180 = vld [vmem:[%s4 + $0x188] sm:$0xff]
          %v3181 = vld [vmem:[%s4 + $0x190] sm:$0xff]
          %v3182 = vld [vmem:[%s4 + $0x198] sm:$0xff]
          %v3183 = vld [vmem:[%s4 + $0x1a0] sm:$0xff]
          %v3184 = vld [vmem:[%s4 + $0x1a8] sm:$0xff]
          %v3185 = vld [vmem:[%s4 + $0x1b0] sm:$0xff]
          %v3186 = vld [vmem:[%s4 + $0x1b8] sm:$0xff]
          %v3187 = vld [vmem:[%s4 + $0x1c0] sm:$0xff]
          %v3188 = vld [vmem:[%s4 + $0x1c8] sm:$0xff]
          %v3189 = vld [vmem:[%s4 + $0x1d0] sm:$0xff]
          %v3190 = vld [vmem:[%s4 + $0x1d8] sm:$0xff]
          %v3191 = vld [vmem:[%s4 + $0x1e0] sm:$0xff]
          %v3192 = vld [vmem:[%s4 + $0x1e8] sm:$0xff]
          %v3193 = vld [vmem:[%s4 + $0x1f0] sm:$0xff]
          %v3194 = vld [vmem:[%s4 + $0x1f8] sm:$0xff]
          %v3195 = vld [vmem:[%s4 + $0x200] sm:$0xff]
          %v3196 = vld [vmem:[%s4 + $0x208] sm:$0xff]
          %v3197 = vld [vmem:[%s4 + $0x210] sm:$0xff]
          %v3198 = vld [vmem:[%s4 + $0x218] sm:$0xff]
          %v3199 = vld [vmem:[%s4 + $0x220] sm:$0xff]
          %v3200 = vld [vmem:[%s4 + $0x228] sm:$0xff]
          %v3201 = vld [vmem:[%s4 + $0x230] sm:$0xff]
          %v3202 = vld [vmem:[%s4 + $0x238] sm:$0xff]
          %v3203 = vld [vmem:[%s4 + $0x240] sm:$0xff]
          %v3204 = vld [vmem:[%s4 + $0x248] sm:$0xff]
          %v3205 = vld [vmem:[%s4 + $0x250] sm:$0xff]
          %v3206 = vld [vmem:[%s4 + $0x258] sm:$0xff]
          %v3207 = vld [vmem:[%s4 + $0x260] sm:$0xff]
          %v3208 = vld [vmem:[%s4 + $0x268] sm:$0xff]
          %v3209 = vld [vmem:[%s4 + $0x270] sm:$0xff]
          %v3210 = vld [vmem:[%s4 + $0x278] sm:$0xff]
          %v3211 = vld [vmem:[%s4 + $0x280] sm:$0xff]
          %v3212 = vld [vmem:[%s4 + $0x288] sm:$0xff]
          %v3213 = vld [vmem:[%s4 + $0x290] sm:$0xff]
          %v3214 = vld [vmem:[%s4 + $0x298] sm:$0xff]
          %v3215 = vld [vmem:[%s4 + $0x2a0] sm:$0xff]
          %v3216 = vld [vmem:[%s4 + $0x2a8] sm:$0xff]
          %v3217 = vld [vmem:[%s4 + $0x2b0] sm:$0xff]
          %v3218 = vld [vmem:[%s4 + $0x2b8] sm:$0xff]
          %v3219 = vld [vmem:[%s4 + $0x2c0] sm:$0xff]
          %v3220 = vld [vmem:[%s4 + $0x2c8] sm:$0xff]
          %v3221 = vld [vmem:[%s4 + $0x2d0] sm:$0xff]
          %v3222 = vld [vmem:[%s4 + $0x2d8] sm:$0xff]
          %v3223 = vld [vmem:[%s4 + $0x2e0] sm:$0xff]
          %v3224 = vld [vmem:[%s4 + $0x2e8] sm:$0xff]
          %v3225 = vld [vmem:[%s4 + $0x2f0] sm:$0xff]
          %v3226 = vld [vmem:[%s4 + $0x2f8] sm:$0xff]
          %v3227 = vld [vmem:[%s4 + $0x300] sm:$0xff]
          %v3228 = vld [vmem:[%s4 + $0x308] sm:$0xff]
          %v3229 = vld [vmem:[%s4 + $0x310] sm:$0xff]
          %v3230 = vld [vmem:[%s4 + $0x318] sm:$0xff]
          %v3231 = vld [vmem:[%s4 + $0x320] sm:$0xff]
          %v3232 = vld [vmem:[%s4 + $0x328] sm:$0xff]
          %v3233 = vld [vmem:[%s4 + $0x330] sm:$0xff]
          %v3234 = vld [vmem:[%s4 + $0x338] sm:$0xff]
          %v3235 = vld [vmem:[%s4 + $0x340] sm:$0xff]
          %v3236 = vld [vmem:[%s4 + $0x348] sm:$0xff]
          %v3237 = vld [vmem:[%s4 + $0x350] sm:$0xff]
          %v3238 = vld [vmem:[%s4 + $0x358] sm:$0xff]
          %v3239 = vld [vmem:[%s4 + $0x360] sm:$0xff]
          %v3240 = vld [vmem:[%s4 + $0x368] sm:$0xff]
          %v3241 = vld [vmem:[%s4 + $0x370] sm:$0xff]
          %v3242 = vld [vmem:[%s4 + $0x378] sm:$0xff]
          %v3243 = vld [vmem:[%s4 + $0x380] sm:$0xff]
          %v3244 = vld [vmem:[%s4 + $0x388] sm:$0xff]
          %v3245 = vld [vmem:[%s4 + $0x390] sm:$0xff]
          %v3246 = vld [vmem:[%s4 + $0x398] sm:$0xff]
          %v3247 = vld [vmem:[%s4 + $0x3a0] sm:$0xff]
          %v3248 = vld [vmem:[%s4 + $0x3a8] sm:$0xff]
          %v3249 = vld [vmem:[%s4 + $0x3b0] sm:$0xff]
          %v3250 = vld [vmem:[%s4 + $0x3b8] sm:$0xff]
          %v3251 = vld [vmem:[%s4 + $0x3c0] sm:$0xff]
          %v3252 = vld [vmem:[%s4 + $0x3c8] sm:$0xff]
          %v3253 = vld [vmem:[%s4 + $0x3d0] sm:$0xff]
          %v3254 = vld [vmem:[%s4 + $0x3d8] sm:$0xff]
          %v3255 = vld [vmem:[%s4 + $0x3e0] sm:$0xff]
          %v3256 = vld [vmem:[%s4 + $0x3e8] sm:$0xff]
          %v3257 = vld [vmem:[%s4 + $0x3f0] sm:$0xff]
          %v3258 = vld [vmem:[%s4 + $0x3f8] sm:$0xff]
          %v3259 = vld [vmem:[%s4 + $0x400] sm:$0xff]
          %v3260 = vld [vmem:[%s4 + $0x408] sm:$0xff]
          %v3261 = vld [vmem:[%s4 + $0x410] sm:$0xff]
          %v3262 = vld [vmem:[%s4 + $0x418] sm:$0xff]
          %v3263 = vld [vmem:[%s4 + $0x420] sm:$0xff]
          %v3264 = vld [vmem:[%s4 + $0x428] sm:$0xff]
          %v3265 = vld [vmem:[%s4 + $0x430] sm:$0xff]
          %v3266 = vld [vmem:[%s4 + $0x438] sm:$0xff]
          %v3267 = vld [vmem:[%s4 + $0x440] sm:$0xff]
          %v3268 = vld [vmem:[%s4 + $0x448] sm:$0xff]
          %v3269 = vld [vmem:[%s4 + $0x450] sm:$0xff]
          %v3270 = vld [vmem:[%s4 + $0x458] sm:$0xff]
          %v3271 = vld [vmem:[%s4 + $0x460] sm:$0xff]
          %v3272 = vld [vmem:[%s4 + $0x468] sm:$0xff]
          %v3273 = vld [vmem:[%s4 + $0x470] sm:$0xff]
          %v3274 = vld [vmem:[%s4 + $0x478] sm:$0xff]
          %v3275 = vld [vmem:[%s4 + $0x480] sm:$0xff]
          %v3276 = vld [vmem:[%s4 + $0x488] sm:$0xff]
          %v3277 = vld [vmem:[%s4 + $0x490] sm:$0xff]
          %v3278 = vld [vmem:[%s4 + $0x498] sm:$0xff]
          %v3279 = vld [vmem:[%s4 + $0x4a0] sm:$0xff]
          %v3280 = vld [vmem:[%s4 + $0x4a8] sm:$0xff]
          %v3281 = vld [vmem:[%s4 + $0x4b0] sm:$0xff]
          %v3282 = vld [vmem:[%s4 + $0x4b8] sm:$0xff]
          %v3283 = vld [vmem:[%s4 + $0x4c0] sm:$0xff]
          %v3284 = vld [vmem:[%s4 + $0x4c8] sm:$0xff]
          %v3285 = vld [vmem:[%s4 + $0x4d0] sm:$0xff]
          %v3286 = vld [vmem:[%s4 + $0x4d8] sm:$0xff]
          %v3287 = vld [vmem:[%s4 + $0x4e0] sm:$0xff]
          %v3288 = vld [vmem:[%s4 + $0x4e8] sm:$0xff]
          %v3289 = vld [vmem:[%s4 + $0x4f0] sm:$0xff]
          %v3290 = vld [vmem:[%s4 + $0x4f8] sm:$0xff]
          %v3291 = vld [vmem:[%s4 + $0x500] sm:$0xff]
          %v3292 = vld [vmem:[%s4 + $0x508] sm:$0xff]
          %v3293 = vld [vmem:[%s4 + $0x510] sm:$0xff]
          %v3294 = vld [vmem:[%s4 + $0x518] sm:$0xff]
          %v3295 = vld [vmem:[%s4 + $0x520] sm:$0xff]
          %v3296 = vld [vmem:[%s4 + $0x528] sm:$0xff]
          %v3297 = vld [vmem:[%s4 + $0x530] sm:$0xff]
          %v3298 = vld [vmem:[%s4 + $0x538] sm:$0xff]
          %v3299 = vld [vmem:[%s4 + $0x540] sm:$0xff]
          %v3300 = vld [vmem:[%s4 + $0x548] sm:$0xff]
          %v3301 = vld [vmem:[%s4 + $0x550] sm:$0xff]
          %v3302 = vld [vmem:[%s4 + $0x558] sm:$0xff]
          %v3303 = vld [vmem:[%s4 + $0x560] sm:$0xff]
          %v3304 = vld [vmem:[%s4 + $0x568] sm:$0xff]
          %v3305 = vld [vmem:[%s4 + $0x570] sm:$0xff]
          %v3306 = vld [vmem:[%s4 + $0x578] sm:$0xff]
          %v3307 = vld [vmem:[%s4 + $0x580] sm:$0xff]
          %v3308 = vld [vmem:[%s4 + $0x588] sm:$0xff]
          %v3309 = vld [vmem:[%s4 + $0x590] sm:$0xff]
          %v3310 = vld [vmem:[%s4 + $0x598] sm:$0xff]
          %v3311 = vld [vmem:[%s4 + $0x5a0] sm:$0xff]
          %v3312 = vld [vmem:[%s4 + $0x5a8] sm:$0xff]
          %v3313 = vld [vmem:[%s4 + $0x5b0] sm:$0xff]
          %v3314 = vld [vmem:[%s4 + $0x5b8] sm:$0xff]
          %v3315 = vld [vmem:[%s4 + $0x5c0] sm:$0xff]
          %v3316 = vld [vmem:[%s4 + $0x5c8] sm:$0xff]
          %v3317 = vld [vmem:[%s4 + $0x5d0] sm:$0xff]
          %v3318 = vld [vmem:[%s4 + $0x5d8] sm:$0xff]
          %v3319 = vld [vmem:[%s4 + $0x5e0] sm:$0xff]
          %v3320 = vld [vmem:[%s4 + $0x5e8] sm:$0xff]
          %v3321 = vld [vmem:[%s4 + $0x5f0] sm:$0xff]
          %v3322 = vld [vmem:[%s4 + $0x5f8] sm:$0xff]
          %v3323 = vld [vmem:[%s4 + $0x600] sm:$0xff]
          %v3324 = vld [vmem:[%s4 + $0x608] sm:$0xff]
          %v3325 = vld [vmem:[%s4 + $0x610] sm:$0xff]
          %v3326 = vld [vmem:[%s4 + $0x618] sm:$0xff]
          %v3327 = vld [vmem:[%s4 + $0x620] sm:$0xff]
          %v3328 = vld [vmem:[%s4 + $0x628] sm:$0xff]
          %v3329 = vld [vmem:[%s4 + $0x630] sm:$0xff]
          %v3330 = vld [vmem:[%s4 + $0x638] sm:$0xff]
          %v3331 = vld [vmem:[%s4 + $0x640] sm:$0xff]
          %v3332 = vld [vmem:[%s4 + $0x648] sm:$0xff]
          %v3333 = vld [vmem:[%s4 + $0x650] sm:$0xff]
          %v3334 = vld [vmem:[%s4 + $0x658] sm:$0xff]
          %v3335 = vld [vmem:[%s4 + $0x660] sm:$0xff]
          %v3336 = vld [vmem:[%s4 + $0x668] sm:$0xff]
          %v3337 = vld [vmem:[%s4 + $0x670] sm:$0xff]
          %v3338 = vld [vmem:[%s4 + $0x678] sm:$0xff]
          %v3339 = vld [vmem:[%s4 + $0x680] sm:$0xff]
          %v3340 = vld [vmem:[%s4 + $0x688] sm:$0xff]
          %v3341 = vld [vmem:[%s4 + $0x690] sm:$0xff]
          %v3342 = vld [vmem:[%s4 + $0x698] sm:$0xff]
          %v3343 = vld [vmem:[%s4 + $0x6a0] sm:$0xff]
          %v3344 = vld [vmem:[%s4 + $0x6a8] sm:$0xff]
          %v3345 = vld [vmem:[%s4 + $0x6b0] sm:$0xff]
          %v3346 = vld [vmem:[%s4 + $0x6b8] sm:$0xff]
          %v3347 = vld [vmem:[%s4 + $0x6c0] sm:$0xff]
          %v3348 = vld [vmem:[%s4 + $0x6c8] sm:$0xff]
          %v3349 = vld [vmem:[%s4 + $0x6d0] sm:$0xff]
          %v3350 = vld [vmem:[%s4 + $0x6d8] sm:$0xff]
          %v3351 = vld [vmem:[%s4 + $0x6e0] sm:$0xff]
          %v3352 = vld [vmem:[%s4 + $0x6e8] sm:$0xff]
          %v3353 = vld [vmem:[%s4 + $0x6f0] sm:$0xff]
          %v3354 = vld [vmem:[%s4 + $0x6f8] sm:$0xff]
          %v3355 = vadd.f32 %v3131, %v3132
          %v3356 = vadd.f32 %v3355, %v3133
          %v3357 = vadd.f32 %v3356, %v3134
          %v3358 = vadd.f32 %v3357, %v3135
          %v3359 = vadd.f32 %v3358, %v3136
          %v3360 = vsel %vm2908, %v3137, 0.0
          %v3361 = vadd.f32 %v3359, %v3360
          %3362 = vadd.xlane.f32.xlu0 %v3361
          %v3363 = vpop.xlane.xlu0 %3362
          %v3364 = vadd.f32 %v3138, %v3139
          %v3365 = vadd.f32 %v3364, %v3140
          %v3366 = vadd.f32 %v3365, %v3141
          %v3367 = vadd.f32 %v3366, %v3142
          %v3368 = vadd.f32 %v3367, %v3143
          %v3369 = vsel %vm2908, %v3144, 0.0
          %v3370 = vadd.f32 %v3368, %v3369
          %3371 = vadd.xlane.f32.xlu0 %v3370
          %v3372 = vpop.xlane.xlu0 %3371
          %v3373 = vadd.f32 %v3145, %v3146
          %v3374 = vadd.f32 %v3373, %v3147
          %v3375 = vadd.f32 %v3374, %v3148
          %v3376 = vadd.f32 %v3375, %v3149
          %v3377 = vadd.f32 %v3376, %v3150
          %v3378 = vsel %vm2908, %v3151, 0.0
          %v3379 = vadd.f32 %v3377, %v3378
          %3380 = vadd.xlane.f32.xlu0 %v3379
          %v3381 = vpop.xlane.xlu0 %3380
          %v3382 = vadd.f32 %v3152, %v3153
          %v3383 = vadd.f32 %v3382, %v3154
          %v3384 = vadd.f32 %v3383, %v3155
          %v3385 = vadd.f32 %v3384, %v3156
          %v3386 = vadd.f32 %v3385, %v3157
          %v3387 = vsel %vm2908, %v3158, 0.0
          %v3388 = vadd.f32 %v3386, %v3387
          %3389 = vadd.xlane.f32.xlu0 %v3388
          %v3390 = vpop.xlane.xlu0 %3389
          %v3391 = vadd.f32 %v3159, %v3160
          %v3392 = vadd.f32 %v3391, %v3161
          %v3393 = vadd.f32 %v3392, %v3162
          %v3394 = vadd.f32 %v3393, %v3163
          %v3395 = vadd.f32 %v3394, %v3164
          %v3396 = vsel %vm2908, %v3165, 0.0
          %v3397 = vadd.f32 %v3395, %v3396
          %3398 = vadd.xlane.f32.xlu0 %v3397
          %v3399 = vpop.xlane.xlu0 %3398
          %v3400 = vadd.f32 %v3166, %v3167
          %v3401 = vadd.f32 %v3400, %v3168
          %v3402 = vadd.f32 %v3401, %v3169
          %v3403 = vadd.f32 %v3402, %v3170
          %v3404 = vadd.f32 %v3403, %v3171
          %v3405 = vsel %vm2908, %v3172, 0.0
          %v3406 = vadd.f32 %v3404, %v3405
          %3407 = vadd.xlane.f32.xlu0 %v3406
          %v3408 = vpop.xlane.xlu0 %3407
          %v3409 = vadd.f32 %v3173, %v3174
          %v3410 = vadd.f32 %v3409, %v3175
          %v3411 = vadd.f32 %v3410, %v3176
          %v3412 = vadd.f32 %v3411, %v3177
          %v3413 = vadd.f32 %v3412, %v3178
          %v3414 = vsel %vm2908, %v3179, 0.0
          %v3415 = vadd.f32 %v3413, %v3414
          %3416 = vadd.xlane.f32.xlu0 %v3415
          %v3417 = vpop.xlane.xlu0 %3416
          %v3418 = vadd.f32 %v3180, %v3181
          %v3419 = vadd.f32 %v3418, %v3182
          %v3420 = vadd.f32 %v3419, %v3183
          %v3421 = vadd.f32 %v3420, %v3184
          %v3422 = vadd.f32 %v3421, %v3185
          %v3423 = vsel %vm2908, %v3186, 0.0
          %v3424 = vadd.f32 %v3422, %v3423
          %3425 = vadd.xlane.f32.xlu0 %v3424
          %v3426 = vpop.xlane.xlu0 %3425
          %v3427 = vadd.f32 %v3187, %v3188
          %v3428 = vadd.f32 %v3427, %v3189
          %v3429 = vadd.f32 %v3428, %v3190
          %v3430 = vadd.f32 %v3429, %v3191
          %v3431 = vadd.f32 %v3430, %v3192
          %v3432 = vsel %vm2908, %v3193, 0.0
          %v3433 = vadd.f32 %v3431, %v3432
          %3434 = vadd.xlane.f32.xlu0 %v3433
          %v3435 = vpop.xlane.xlu0 %3434
          %v3436 = vadd.f32 %v3194, %v3195
          %v3437 = vadd.f32 %v3436, %v3196
          %v3438 = vadd.f32 %v3437, %v3197
          %v3439 = vadd.f32 %v3438, %v3198
          %v3440 = vadd.f32 %v3439, %v3199
          %v3441 = vsel %vm2908, %v3200, 0.0
          %v3442 = vadd.f32 %v3440, %v3441
          %3443 = vadd.xlane.f32.xlu0 %v3442
          %v3444 = vpop.xlane.xlu0 %3443
          %v3445 = vadd.f32 %v3201, %v3202
          %v3446 = vadd.f32 %v3445, %v3203
          %v3447 = vadd.f32 %v3446, %v3204
          %v3448 = vadd.f32 %v3447, %v3205
          %v3449 = vadd.f32 %v3448, %v3206
          %v3450 = vsel %vm2908, %v3207, 0.0
          %v3451 = vadd.f32 %v3449, %v3450
          %3452 = vadd.xlane.f32.xlu0 %v3451
          %v3453 = vpop.xlane.xlu0 %3452
          %v3454 = vadd.f32 %v3208, %v3209
          %v3455 = vadd.f32 %v3454, %v3210
          %v3456 = vadd.f32 %v3455, %v3211
          %v3457 = vadd.f32 %v3456, %v3212
          %v3458 = vadd.f32 %v3457, %v3213
          %v3459 = vsel %vm2908, %v3214, 0.0
          %v3460 = vadd.f32 %v3458, %v3459
          %3461 = vadd.xlane.f32.xlu0 %v3460
          %v3462 = vpop.xlane.xlu0 %3461
          %v3463 = vadd.f32 %v3215, %v3216
          %v3464 = vadd.f32 %v3463, %v3217
          %v3465 = vadd.f32 %v3464, %v3218
          %v3466 = vadd.f32 %v3465, %v3219
          %v3467 = vadd.f32 %v3466, %v3220
          %v3468 = vsel %vm2908, %v3221, 0.0
          %v3469 = vadd.f32 %v3467, %v3468
          %3470 = vadd.xlane.f32.xlu0 %v3469
          %v3471 = vpop.xlane.xlu0 %3470
          %v3472 = vadd.f32 %v3222, %v3223
          %v3473 = vadd.f32 %v3472, %v3224
          %v3474 = vadd.f32 %v3473, %v3225
          %v3475 = vadd.f32 %v3474, %v3226
          %v3476 = vadd.f32 %v3475, %v3227
          %v3477 = vsel %vm2908, %v3228, 0.0
          %v3478 = vadd.f32 %v3476, %v3477
          %3479 = vadd.xlane.f32.xlu0 %v3478
          %v3480 = vpop.xlane.xlu0 %3479
          %v3481 = vadd.f32 %v3229, %v3230
          %v3482 = vadd.f32 %v3481, %v3231
          %v3483 = vadd.f32 %v3482, %v3232
          %v3484 = vadd.f32 %v3483, %v3233
          %v3485 = vadd.f32 %v3484, %v3234
          %v3486 = vsel %vm2908, %v3235, 0.0
          %v3487 = vadd.f32 %v3485, %v3486
          %3488 = vadd.xlane.f32.xlu0 %v3487
          %v3489 = vpop.xlane.xlu0 %3488
          %v3490 = vadd.f32 %v3236, %v3237
          %v3491 = vadd.f32 %v3490, %v3238
          %v3492 = vadd.f32 %v3491, %v3239
          %v3493 = vadd.f32 %v3492, %v3240
          %v3494 = vadd.f32 %v3493, %v3241
          %v3495 = vsel %vm2908, %v3242, 0.0
          %v3496 = vadd.f32 %v3494, %v3495
          %3497 = vadd.xlane.f32.xlu0 %v3496
          %v3498 = vpop.xlane.xlu0 %3497
          %v3499 = vadd.f32 %v3243, %v3244
          %v3500 = vadd.f32 %v3499, %v3245
          %v3501 = vadd.f32 %v3500, %v3246
          %v3502 = vadd.f32 %v3501, %v3247
          %v3503 = vadd.f32 %v3502, %v3248
          %v3504 = vsel %vm2908, %v3249, 0.0
          %v3505 = vadd.f32 %v3503, %v3504
          %3506 = vadd.xlane.f32.xlu0 %v3505
          %v3507 = vpop.xlane.xlu0 %3506
          %v3508 = vadd.f32 %v3250, %v3251
          %v3509 = vadd.f32 %v3508, %v3252
          %v3510 = vadd.f32 %v3509, %v3253
          %v3511 = vadd.f32 %v3510, %v3254
          %v3512 = vadd.f32 %v3511, %v3255
          %v3513 = vsel %vm2908, %v3256, 0.0
          %v3514 = vadd.f32 %v3512, %v3513
          %3515 = vadd.xlane.f32.xlu0 %v3514
          %v3516 = vpop.xlane.xlu0 %3515
          %v3517 = vadd.f32 %v3257, %v3258
          %v3518 = vadd.f32 %v3517, %v3259
          %v3519 = vadd.f32 %v3518, %v3260
          %v3520 = vadd.f32 %v3519, %v3261
          %v3521 = vadd.f32 %v3520, %v3262
          %v3522 = vsel %vm2908, %v3263, 0.0
          %v3523 = vadd.f32 %v3521, %v3522
          %3524 = vadd.xlane.f32.xlu0 %v3523
          %v3525 = vpop.xlane.xlu0 %3524
          %v3526 = vadd.f32 %v3264, %v3265
          %v3527 = vadd.f32 %v3526, %v3266
          %v3528 = vadd.f32 %v3527, %v3267
          %v3529 = vadd.f32 %v3528, %v3268
          %v3530 = vadd.f32 %v3529, %v3269
          %v3531 = vsel %vm2908, %v3270, 0.0
          %v3532 = vadd.f32 %v3530, %v3531
          %3533 = vadd.xlane.f32.xlu0 %v3532
          %v3534 = vpop.xlane.xlu0 %3533
          %v3535 = vadd.f32 %v3271, %v3272
          %v3536 = vadd.f32 %v3535, %v3273
          %v3537 = vadd.f32 %v3536, %v3274
          %v3538 = vadd.f32 %v3537, %v3275
          %v3539 = vadd.f32 %v3538, %v3276
          %v3540 = vsel %vm2908, %v3277, 0.0
          %v3541 = vadd.f32 %v3539, %v3540
          %3542 = vadd.xlane.f32.xlu0 %v3541
          %v3543 = vpop.xlane.xlu0 %3542
          %v3544 = vadd.f32 %v3278, %v3279
          %v3545 = vadd.f32 %v3544, %v3280
          %v3546 = vadd.f32 %v3545, %v3281
          %v3547 = vadd.f32 %v3546, %v3282
          %v3548 = vadd.f32 %v3547, %v3283
          %v3549 = vsel %vm2908, %v3284, 0.0
          %v3550 = vadd.f32 %v3548, %v3549
          %3551 = vadd.xlane.f32.xlu0 %v3550
          %v3552 = vpop.xlane.xlu0 %3551
          %v3553 = vadd.f32 %v3285, %v3286
          %v3554 = vadd.f32 %v3553, %v3287
          %v3555 = vadd.f32 %v3554, %v3288
          %v3556 = vadd.f32 %v3555, %v3289
          %v3557 = vadd.f32 %v3556, %v3290
          %v3558 = vsel %vm2908, %v3291, 0.0
          %v3559 = vadd.f32 %v3557, %v3558
          %3560 = vadd.xlane.f32.xlu0 %v3559
          %v3561 = vpop.xlane.xlu0 %3560
          %v3562 = vadd.f32 %v3292, %v3293
          %v3563 = vadd.f32 %v3562, %v3294
          %v3564 = vadd.f32 %v3563, %v3295
          %v3565 = vadd.f32 %v3564, %v3296
          %v3566 = vadd.f32 %v3565, %v3297
          %v3567 = vsel %vm2908, %v3298, 0.0
          %v3568 = vadd.f32 %v3566, %v3567
          %3569 = vadd.xlane.f32.xlu0 %v3568
          %v3570 = vpop.xlane.xlu0 %3569
          %v3571 = vadd.f32 %v3299, %v3300
          %v3572 = vadd.f32 %v3571, %v3301
          %v3573 = vadd.f32 %v3572, %v3302
          %v3574 = vadd.f32 %v3573, %v3303
          %v3575 = vadd.f32 %v3574, %v3304
          %v3576 = vsel %vm2908, %v3305, 0.0
          %v3577 = vadd.f32 %v3575, %v3576
          %3578 = vadd.xlane.f32.xlu0 %v3577
          %v3579 = vpop.xlane.xlu0 %3578
          %v3580 = vadd.f32 %v3306, %v3307
          %v3581 = vadd.f32 %v3580, %v3308
          %v3582 = vadd.f32 %v3581, %v3309
          %v3583 = vadd.f32 %v3582, %v3310
          %v3584 = vadd.f32 %v3583, %v3311
          %v3585 = vsel %vm2908, %v3312, 0.0
          %v3586 = vadd.f32 %v3584, %v3585
          %3587 = vadd.xlane.f32.xlu0 %v3586
          %v3588 = vpop.xlane.xlu0 %3587
          %v3589 = vadd.f32 %v3313, %v3314
          %v3590 = vadd.f32 %v3589, %v3315
          %v3591 = vadd.f32 %v3590, %v3316
          %v3592 = vadd.f32 %v3591, %v3317
          %v3593 = vadd.f32 %v3592, %v3318
          %v3594 = vsel %vm2908, %v3319, 0.0
          %v3595 = vadd.f32 %v3593, %v3594
          %3596 = vadd.xlane.f32.xlu0 %v3595
          %v3597 = vpop.xlane.xlu0 %3596
          %v3598 = vadd.f32 %v3320, %v3321
          %v3599 = vadd.f32 %v3598, %v3322
          %v3600 = vadd.f32 %v3599, %v3323
          %v3601 = vadd.f32 %v3600, %v3324
          %v3602 = vadd.f32 %v3601, %v3325
          %v3603 = vsel %vm2908, %v3326, 0.0
          %v3604 = vadd.f32 %v3602, %v3603
          %3605 = vadd.xlane.f32.xlu0 %v3604
          %v3606 = vpop.xlane.xlu0 %3605
          %v3607 = vadd.f32 %v3327, %v3328
          %v3608 = vadd.f32 %v3607, %v3329
          %v3609 = vadd.f32 %v3608, %v3330
          %v3610 = vadd.f32 %v3609, %v3331
          %v3611 = vadd.f32 %v3610, %v3332
          %v3612 = vsel %vm2908, %v3333, 0.0
          %v3613 = vadd.f32 %v3611, %v3612
          %3614 = vadd.xlane.f32.xlu0 %v3613
          %v3615 = vpop.xlane.xlu0 %3614
          %v3616 = vadd.f32 %v3334, %v3335
          %v3617 = vadd.f32 %v3616, %v3336
          %v3618 = vadd.f32 %v3617, %v3337
          %v3619 = vadd.f32 %v3618, %v3338
          %v3620 = vadd.f32 %v3619, %v3339
          %v3621 = vsel %vm2908, %v3340, 0.0
          %v3622 = vadd.f32 %v3620, %v3621
          %3623 = vadd.xlane.f32.xlu0 %v3622
          %v3624 = vpop.xlane.xlu0 %3623
          %v3625 = vadd.f32 %v3341, %v3342
          %v3626 = vadd.f32 %v3625, %v3343
          %v3627 = vadd.f32 %v3626, %v3344
          %v3628 = vadd.f32 %v3627, %v3345
          %v3629 = vadd.f32 %v3628, %v3346
          %v3630 = vsel %vm2908, %v3347, 0.0
          %v3631 = vadd.f32 %v3629, %v3630
          %3632 = vadd.xlane.f32.xlu0 %v3631
          %v3633 = vpop.xlane.xlu0 %3632
          %v3634 = vadd.f32 %v3348, %v3349
          %v3635 = vadd.f32 %v3634, %v3350
          %v3636 = vadd.f32 %v3635, %v3351
          %v3637 = vadd.f32 %v3636, %v3352
          %v3638 = vadd.f32 %v3637, %v3353
          %v3639 = vsel %vm2908, %v3354, 0.0
          %v3640 = vadd.f32 %v3638, %v3639
          %3641 = vadd.xlane.f32.xlu0 %v3640
          %v3642 = vpop.xlane.xlu0 %3641
          %v3643 = vmul.f32 %v3363, 0.0012755102
          %v3644 = vmul.f32 %v3372, 0.0012755102
          %v3645 = vmul.f32 %v3381, 0.0012755102
          %v3646 = vmul.f32 %v3390, 0.0012755102
          %v3647 = vmul.f32 %v3399, 0.0012755102
          %v3648 = vmul.f32 %v3408, 0.0012755102
          %v3649 = vmul.f32 %v3417, 0.0012755102
          %v3650 = vmul.f32 %v3426, 0.0012755102
          %v3651 = vmul.f32 %v3435, 0.0012755102
          %v3652 = vmul.f32 %v3444, 0.0012755102
          %v3653 = vmul.f32 %v3453, 0.0012755102
          %v3654 = vmul.f32 %v3462, 0.0012755102
          %v3655 = vmul.f32 %v3471, 0.0012755102
          %v3656 = vmul.f32 %v3480, 0.0012755102
          %v3657 = vmul.f32 %v3489, 0.0012755102
          %v3658 = vmul.f32 %v3498, 0.0012755102
          %v3659 = vmul.f32 %v3507, 0.0012755102
          %v3660 = vmul.f32 %v3516, 0.0012755102
          %v3661 = vmul.f32 %v3525, 0.0012755102
          %v3662 = vmul.f32 %v3534, 0.0012755102
          %v3663 = vmul.f32 %v3543, 0.0012755102
          %v3664 = vmul.f32 %v3552, 0.0012755102
          %v3665 = vmul.f32 %v3561, 0.0012755102
          %v3666 = vmul.f32 %v3570, 0.0012755102
          %v3667 = vmul.f32 %v3579, 0.0012755102
          %v3668 = vmul.f32 %v3588, 0.0012755102
          %v3669 = vmul.f32 %v3597, 0.0012755102
          %v3670 = vmul.f32 %v3606, 0.0012755102
          %v3671 = vmul.f32 %v3615, 0.0012755102
          %v3672 = vmul.f32 %v3624, 0.0012755102
          %v3673 = vmul.f32 %v3633, 0.0012755102
          %v3674 = vmul.f32 %v3642, 0.0012755102
          %v3675 = vmul.f32 %v3131, %v3131
          %v3676 = vmul.f32 %v3132, %v3132
          %v3677 = vmul.f32 %v3133, %v3133
          %v3678 = vmul.f32 %v3134, %v3134
          %v3679 = vmul.f32 %v3135, %v3135
          %v3680 = vmul.f32 %v3136, %v3136
          %v3681 = vmul.f32 %v3137, %v3137
          %v3682 = vmul.f32 %v3138, %v3138
          %v3683 = vmul.f32 %v3139, %v3139
          %v3684 = vmul.f32 %v3140, %v3140
          %v3685 = vmul.f32 %v3141, %v3141
          %v3686 = vmul.f32 %v3142, %v3142
          %v3687 = vmul.f32 %v3143, %v3143
          %v3688 = vmul.f32 %v3144, %v3144
          %v3689 = vmul.f32 %v3145, %v3145
          %v3690 = vmul.f32 %v3146, %v3146
          %v3691 = vmul.f32 %v3147, %v3147
          %v3692 = vmul.f32 %v3148, %v3148
          %v3693 = vmul.f32 %v3149, %v3149
          %v3694 = vmul.f32 %v3150, %v3150
          %v3695 = vmul.f32 %v3151, %v3151
          %v3696 = vmul.f32 %v3152, %v3152
          %v3697 = vmul.f32 %v3153, %v3153
          %v3698 = vmul.f32 %v3154, %v3154
          %v3699 = vmul.f32 %v3155, %v3155
          %v3700 = vmul.f32 %v3156, %v3156
          %v3701 = vmul.f32 %v3157, %v3157
          %v3702 = vmul.f32 %v3158, %v3158
          %v3703 = vmul.f32 %v3159, %v3159
          %v3704 = vmul.f32 %v3160, %v3160
          %v3705 = vmul.f32 %v3161, %v3161
          %v3706 = vmul.f32 %v3162, %v3162
          %v3707 = vmul.f32 %v3163, %v3163
          %v3708 = vmul.f32 %v3164, %v3164
          %v3709 = vmul.f32 %v3165, %v3165
          %v3710 = vmul.f32 %v3166, %v3166
          %v3711 = vmul.f32 %v3167, %v3167
          %v3712 = vmul.f32 %v3168, %v3168
          %v3713 = vmul.f32 %v3169, %v3169
          %v3714 = vmul.f32 %v3170, %v3170
          %v3715 = vmul.f32 %v3171, %v3171
          %v3716 = vmul.f32 %v3172, %v3172
          %v3717 = vmul.f32 %v3173, %v3173
          %v3718 = vmul.f32 %v3174, %v3174
          %v3719 = vmul.f32 %v3175, %v3175
          %v3720 = vmul.f32 %v3176, %v3176
          %v3721 = vmul.f32 %v3177, %v3177
          %v3722 = vmul.f32 %v3178, %v3178
          %v3723 = vmul.f32 %v3179, %v3179
          %v3724 = vmul.f32 %v3180, %v3180
          %v3725 = vmul.f32 %v3181, %v3181
          %v3726 = vmul.f32 %v3182, %v3182
          %v3727 = vmul.f32 %v3183, %v3183
          %v3728 = vmul.f32 %v3184, %v3184
          %v3729 = vmul.f32 %v3185, %v3185
          %v3730 = vmul.f32 %v3186, %v3186
          %v3731 = vmul.f32 %v3187, %v3187
          %v3732 = vmul.f32 %v3188, %v3188
          %v3733 = vmul.f32 %v3189, %v3189
          %v3734 = vmul.f32 %v3190, %v3190
          %v3735 = vmul.f32 %v3191, %v3191
          %v3736 = vmul.f32 %v3192, %v3192
          %v3737 = vmul.f32 %v3193, %v3193
          %v3738 = vmul.f32 %v3194, %v3194
          %v3739 = vmul.f32 %v3195, %v3195
          %v3740 = vmul.f32 %v3196, %v3196
          %v3741 = vmul.f32 %v3197, %v3197
          %v3742 = vmul.f32 %v3198, %v3198
          %v3743 = vmul.f32 %v3199, %v3199
          %v3744 = vmul.f32 %v3200, %v3200
          %v3745 = vmul.f32 %v3201, %v3201
          %v3746 = vmul.f32 %v3202, %v3202
          %v3747 = vmul.f32 %v3203, %v3203
          %v3748 = vmul.f32 %v3204, %v3204
          %v3749 = vmul.f32 %v3205, %v3205
          %v3750 = vmul.f32 %v3206, %v3206
          %v3751 = vmul.f32 %v3207, %v3207
          %v3752 = vmul.f32 %v3208, %v3208
          %v3753 = vmul.f32 %v3209, %v3209
          %v3754 = vmul.f32 %v3210, %v3210
          %v3755 = vmul.f32 %v3211, %v3211
          %v3756 = vmul.f32 %v3212, %v3212
          %v3757 = vmul.f32 %v3213, %v3213
          %v3758 = vmul.f32 %v3214, %v3214
          %v3759 = vmul.f32 %v3215, %v3215
          %v3760 = vmul.f32 %v3216, %v3216
          %v3761 = vmul.f32 %v3217, %v3217
          %v3762 = vmul.f32 %v3218, %v3218
          %v3763 = vmul.f32 %v3219, %v3219
          %v3764 = vmul.f32 %v3220, %v3220
          %v3765 = vmul.f32 %v3221, %v3221
          %v3766 = vmul.f32 %v3222, %v3222
          %v3767 = vmul.f32 %v3223, %v3223
          %v3768 = vmul.f32 %v3224, %v3224
          %v3769 = vmul.f32 %v3225, %v3225
          %v3770 = vmul.f32 %v3226, %v3226
          %v3771 = vmul.f32 %v3227, %v3227
          %v3772 = vmul.f32 %v3228, %v3228
          %v3773 = vmul.f32 %v3229, %v3229
          %v3774 = vmul.f32 %v3230, %v3230
          %v3775 = vmul.f32 %v3231, %v3231
          %v3776 = vmul.f32 %v3232, %v3232
          %v3777 = vmul.f32 %v3233, %v3233
          %v3778 = vmul.f32 %v3234, %v3234
          %v3779 = vmul.f32 %v3235, %v3235
          %v3780 = vmul.f32 %v3236, %v3236
          %v3781 = vmul.f32 %v3237, %v3237
          %v3782 = vmul.f32 %v3238, %v3238
          %v3783 = vmul.f32 %v3239, %v3239
          %v3784 = vmul.f32 %v3240, %v3240
          %v3785 = vmul.f32 %v3241, %v3241
          %v3786 = vmul.f32 %v3242, %v3242
          %v3787 = vmul.f32 %v3243, %v3243
          %v3788 = vmul.f32 %v3244, %v3244
          %v3789 = vmul.f32 %v3245, %v3245
          %v3790 = vmul.f32 %v3246, %v3246
          %v3791 = vmul.f32 %v3247, %v3247
          %v3792 = vmul.f32 %v3248, %v3248
          %v3793 = vmul.f32 %v3249, %v3249
          %v3794 = vmul.f32 %v3250, %v3250
          %v3795 = vmul.f32 %v3251, %v3251
          %v3796 = vmul.f32 %v3252, %v3252
          %v3797 = vmul.f32 %v3253, %v3253
          %v3798 = vmul.f32 %v3254, %v3254
          %v3799 = vmul.f32 %v3255, %v3255
          %v3800 = vmul.f32 %v3256, %v3256
          %v3801 = vmul.f32 %v3257, %v3257
          %v3802 = vmul.f32 %v3258, %v3258
          %v3803 = vmul.f32 %v3259, %v3259
          %v3804 = vmul.f32 %v3260, %v3260
          %v3805 = vmul.f32 %v3261, %v3261
          %v3806 = vmul.f32 %v3262, %v3262
          %v3807 = vmul.f32 %v3263, %v3263
          %v3808 = vmul.f32 %v3264, %v3264
          %v3809 = vmul.f32 %v3265, %v3265
          %v3810 = vmul.f32 %v3266, %v3266
          %v3811 = vmul.f32 %v3267, %v3267
          %v3812 = vmul.f32 %v3268, %v3268
          %v3813 = vmul.f32 %v3269, %v3269
          %v3814 = vmul.f32 %v3270, %v3270
          %v3815 = vmul.f32 %v3271, %v3271
          %v3816 = vmul.f32 %v3272, %v3272
          %v3817 = vmul.f32 %v3273, %v3273
          %v3818 = vmul.f32 %v3274, %v3274
          %v3819 = vmul.f32 %v3275, %v3275
          %v3820 = vmul.f32 %v3276, %v3276
          %v3821 = vmul.f32 %v3277, %v3277
          %v3822 = vmul.f32 %v3278, %v3278
          %v3823 = vmul.f32 %v3279, %v3279
          %v3824 = vmul.f32 %v3280, %v3280
          %v3825 = vmul.f32 %v3281, %v3281
          %v3826 = vmul.f32 %v3282, %v3282
          %v3827 = vmul.f32 %v3283, %v3283
          %v3828 = vmul.f32 %v3284, %v3284
          %v3829 = vmul.f32 %v3285, %v3285
          %v3830 = vmul.f32 %v3286, %v3286
          %v3831 = vmul.f32 %v3287, %v3287
          %v3832 = vmul.f32 %v3288, %v3288
          %v3833 = vmul.f32 %v3289, %v3289
          %v3834 = vmul.f32 %v3290, %v3290
          %v3835 = vmul.f32 %v3291, %v3291
          %v3836 = vmul.f32 %v3292, %v3292
          %v3837 = vmul.f32 %v3293, %v3293
          %v3838 = vmul.f32 %v3294, %v3294
          %v3839 = vmul.f32 %v3295, %v3295
          %v3840 = vmul.f32 %v3296, %v3296
          %v3841 = vmul.f32 %v3297, %v3297
          %v3842 = vmul.f32 %v3298, %v3298
          %v3843 = vmul.f32 %v3299, %v3299
          %v3844 = vmul.f32 %v3300, %v3300
          %v3845 = vmul.f32 %v3301, %v3301
          %v3846 = vmul.f32 %v3302, %v3302
          %v3847 = vmul.f32 %v3303, %v3303
          %v3848 = vmul.f32 %v3304, %v3304
          %v3849 = vmul.f32 %v3305, %v3305
          %v3850 = vmul.f32 %v3306, %v3306
          %v3851 = vmul.f32 %v3307, %v3307
          %v3852 = vmul.f32 %v3308, %v3308
          %v3853 = vmul.f32 %v3309, %v3309
          %v3854 = vmul.f32 %v3310, %v3310
          %v3855 = vmul.f32 %v3311, %v3311
          %v3856 = vmul.f32 %v3312, %v3312
          %v3857 = vmul.f32 %v3313, %v3313
          %v3858 = vmul.f32 %v3314, %v3314
          %v3859 = vmul.f32 %v3315, %v3315
          %v3860 = vmul.f32 %v3316, %v3316
          %v3861 = vmul.f32 %v3317, %v3317
          %v3862 = vmul.f32 %v3318, %v3318
          %v3863 = vmul.f32 %v3319, %v3319
          %v3864 = vmul.f32 %v3320, %v3320
          %v3865 = vmul.f32 %v3321, %v3321
          %v3866 = vmul.f32 %v3322, %v3322
          %v3867 = vmul.f32 %v3323, %v3323
          %v3868 = vmul.f32 %v3324, %v3324
          %v3869 = vmul.f32 %v3325, %v3325
          %v3870 = vmul.f32 %v3326, %v3326
          %v3871 = vmul.f32 %v3327, %v3327
          %v3872 = vmul.f32 %v3328, %v3328
          %v3873 = vmul.f32 %v3329, %v3329
          %v3874 = vmul.f32 %v3330, %v3330
          %v3875 = vmul.f32 %v3331, %v3331
          %v3876 = vmul.f32 %v3332, %v3332
          %v3877 = vmul.f32 %v3333, %v3333
          %v3878 = vmul.f32 %v3334, %v3334
          %v3879 = vmul.f32 %v3335, %v3335
          %v3880 = vmul.f32 %v3336, %v3336
          %v3881 = vmul.f32 %v3337, %v3337
          %v3882 = vmul.f32 %v3338, %v3338
          %v3883 = vmul.f32 %v3339, %v3339
          %v3884 = vmul.f32 %v3340, %v3340
          %v3885 = vmul.f32 %v3341, %v3341
          %v3886 = vmul.f32 %v3342, %v3342
          %v3887 = vmul.f32 %v3343, %v3343
          %v3888 = vmul.f32 %v3344, %v3344
          %v3889 = vmul.f32 %v3345, %v3345
          %v3890 = vmul.f32 %v3346, %v3346
          %v3891 = vmul.f32 %v3347, %v3347
          %v3892 = vmul.f32 %v3348, %v3348
          %v3893 = vmul.f32 %v3349, %v3349
          %v3894 = vmul.f32 %v3350, %v3350
          %v3895 = vmul.f32 %v3351, %v3351
          %v3896 = vmul.f32 %v3352, %v3352
          %v3897 = vmul.f32 %v3353, %v3353
          %v3898 = vmul.f32 %v3354, %v3354
          %v3899 = vadd.f32 %v3675, %v3676
          %v3900 = vadd.f32 %v3899, %v3677
          %v3901 = vadd.f32 %v3900, %v3678
          %v3902 = vadd.f32 %v3901, %v3679
          %v3903 = vadd.f32 %v3902, %v3680
          %v3904 = vsel %vm2908, %v3681, 0.0
          %v3905 = vadd.f32 %v3903, %v3904
          %3906 = vadd.xlane.f32.xlu0 %v3905
          %v3907 = vpop.xlane.xlu0 %3906
          %v3908 = vadd.f32 %v3682, %v3683
          %v3909 = vadd.f32 %v3908, %v3684
          %v3910 = vadd.f32 %v3909, %v3685
          %v3911 = vadd.f32 %v3910, %v3686
          %v3912 = vadd.f32 %v3911, %v3687
          %v3913 = vsel %vm2908, %v3688, 0.0
          %v3914 = vadd.f32 %v3912, %v3913
          %3915 = vadd.xlane.f32.xlu0 %v3914
          %v3916 = vpop.xlane.xlu0 %3915
          %v3917 = vadd.f32 %v3689, %v3690
          %v3918 = vadd.f32 %v3917, %v3691
          %v3919 = vadd.f32 %v3918, %v3692
          %v3920 = vadd.f32 %v3919, %v3693
          %v3921 = vadd.f32 %v3920, %v3694
          %v3922 = vsel %vm2908, %v3695, 0.0
          %v3923 = vadd.f32 %v3921, %v3922
          %3924 = vadd.xlane.f32.xlu0 %v3923
          %v3925 = vpop.xlane.xlu0 %3924
          %v3926 = vadd.f32 %v3696, %v3697
          %v3927 = vadd.f32 %v3926, %v3698
          %v3928 = vadd.f32 %v3927, %v3699
          %v3929 = vadd.f32 %v3928, %v3700
          %v3930 = vadd.f32 %v3929, %v3701
          %v3931 = vsel %vm2908, %v3702, 0.0
          %v3932 = vadd.f32 %v3930, %v3931
          %3933 = vadd.xlane.f32.xlu0 %v3932
          %v3934 = vpop.xlane.xlu0 %3933
          %v3935 = vadd.f32 %v3703, %v3704
          %v3936 = vadd.f32 %v3935, %v3705
          %v3937 = vadd.f32 %v3936, %v3706
          %v3938 = vadd.f32 %v3937, %v3707
          %v3939 = vadd.f32 %v3938, %v3708
          %v3940 = vsel %vm2908, %v3709, 0.0
          %v3941 = vadd.f32 %v3939, %v3940
          %3942 = vadd.xlane.f32.xlu0 %v3941
          %v3943 = vpop.xlane.xlu0 %3942
          %v3944 = vadd.f32 %v3710, %v3711
          %v3945 = vadd.f32 %v3944, %v3712
          %v3946 = vadd.f32 %v3945, %v3713
          %v3947 = vadd.f32 %v3946, %v3714
          %v3948 = vadd.f32 %v3947, %v3715
          %v3949 = vsel %vm2908, %v3716, 0.0
          %v3950 = vadd.f32 %v3948, %v3949
          %3951 = vadd.xlane.f32.xlu0 %v3950
          %v3952 = vpop.xlane.xlu0 %3951
          %v3953 = vadd.f32 %v3717, %v3718
          %v3954 = vadd.f32 %v3953, %v3719
          %v3955 = vadd.f32 %v3954, %v3720
          %v3956 = vadd.f32 %v3955, %v3721
          %v3957 = vadd.f32 %v3956, %v3722
          %v3958 = vsel %vm2908, %v3723, 0.0
          %v3959 = vadd.f32 %v3957, %v3958
          %3960 = vadd.xlane.f32.xlu0 %v3959
          %v3961 = vpop.xlane.xlu0 %3960
          %v3962 = vadd.f32 %v3724, %v3725
          %v3963 = vadd.f32 %v3962, %v3726
          %v3964 = vadd.f32 %v3963, %v3727
          %v3965 = vadd.f32 %v3964, %v3728
          %v3966 = vadd.f32 %v3965, %v3729
          %v3967 = vsel %vm2908, %v3730, 0.0
          %v3968 = vadd.f32 %v3966, %v3967
          %3969 = vadd.xlane.f32.xlu0 %v3968
          %v3970 = vpop.xlane.xlu0 %3969
          %v3971 = vadd.f32 %v3731, %v3732
          %v3972 = vadd.f32 %v3971, %v3733
          %v3973 = vadd.f32 %v3972, %v3734
          %v3974 = vadd.f32 %v3973, %v3735
          %v3975 = vadd.f32 %v3974, %v3736
          %v3976 = vsel %vm2908, %v3737, 0.0
          %v3977 = vadd.f32 %v3975, %v3976
          %3978 = vadd.xlane.f32.xlu0 %v3977
          %v3979 = vpop.xlane.xlu0 %3978
          %v3980 = vadd.f32 %v3738, %v3739
          %v3981 = vadd.f32 %v3980, %v3740
          %v3982 = vadd.f32 %v3981, %v3741
          %v3983 = vadd.f32 %v3982, %v3742
          %v3984 = vadd.f32 %v3983, %v3743
          %v3985 = vsel %vm2908, %v3744, 0.0
          %v3986 = vadd.f32 %v3984, %v3985
          %3987 = vadd.xlane.f32.xlu0 %v3986
          %v3988 = vpop.xlane.xlu0 %3987
          %v3989 = vadd.f32 %v3745, %v3746
          %v3990 = vadd.f32 %v3989, %v3747
          %v3991 = vadd.f32 %v3990, %v3748
          %v3992 = vadd.f32 %v3991, %v3749
          %v3993 = vadd.f32 %v3992, %v3750
          %v3994 = vsel %vm2908, %v3751, 0.0
          %v3995 = vadd.f32 %v3993, %v3994
          %3996 = vadd.xlane.f32.xlu0 %v3995
          %v3997 = vpop.xlane.xlu0 %3996
          %v3998 = vadd.f32 %v3752, %v3753
          %v3999 = vadd.f32 %v3998, %v3754
          %v4000 = vadd.f32 %v3999, %v3755
          %v4001 = vadd.f32 %v4000, %v3756
          %v4002 = vadd.f32 %v4001, %v3757
          %v4003 = vsel %vm2908, %v3758, 0.0
          %v4004 = vadd.f32 %v4002, %v4003
          %4005 = vadd.xlane.f32.xlu0 %v4004
          %v4006 = vpop.xlane.xlu0 %4005
          %v4007 = vadd.f32 %v3759, %v3760
          %v4008 = vadd.f32 %v4007, %v3761
          %v4009 = vadd.f32 %v4008, %v3762
          %v4010 = vadd.f32 %v4009, %v3763
          %v4011 = vadd.f32 %v4010, %v3764
          %v4012 = vsel %vm2908, %v3765, 0.0
          %v4013 = vadd.f32 %v4011, %v4012
          %4014 = vadd.xlane.f32.xlu0 %v4013
          %v4015 = vpop.xlane.xlu0 %4014
          %v4016 = vadd.f32 %v3766, %v3767
          %v4017 = vadd.f32 %v4016, %v3768
          %v4018 = vadd.f32 %v4017, %v3769
          %v4019 = vadd.f32 %v4018, %v3770
          %v4020 = vadd.f32 %v4019, %v3771
          %v4021 = vsel %vm2908, %v3772, 0.0
          %v4022 = vadd.f32 %v4020, %v4021
          %4023 = vadd.xlane.f32.xlu0 %v4022
          %v4024 = vpop.xlane.xlu0 %4023
          %v4025 = vadd.f32 %v3773, %v3774
          %v4026 = vadd.f32 %v4025, %v3775
          %v4027 = vadd.f32 %v4026, %v3776
          %v4028 = vadd.f32 %v4027, %v3777
          %v4029 = vadd.f32 %v4028, %v3778
          %v4030 = vsel %vm2908, %v3779, 0.0
          %v4031 = vadd.f32 %v4029, %v4030
          %4032 = vadd.xlane.f32.xlu0 %v4031
          %v4033 = vpop.xlane.xlu0 %4032
          %v4034 = vadd.f32 %v3780, %v3781
          %v4035 = vadd.f32 %v4034, %v3782
          %v4036 = vadd.f32 %v4035, %v3783
          %v4037 = vadd.f32 %v4036, %v3784
          %v4038 = vadd.f32 %v4037, %v3785
          %v4039 = vsel %vm2908, %v3786, 0.0
          %v4040 = vadd.f32 %v4038, %v4039
          %4041 = vadd.xlane.f32.xlu0 %v4040
          %v4042 = vpop.xlane.xlu0 %4041
          %v4043 = vadd.f32 %v3787, %v3788
          %v4044 = vadd.f32 %v4043, %v3789
          %v4045 = vadd.f32 %v4044, %v3790
          %v4046 = vadd.f32 %v4045, %v3791
          %v4047 = vadd.f32 %v4046, %v3792
          %v4048 = vsel %vm2908, %v3793, 0.0
          %v4049 = vadd.f32 %v4047, %v4048
          %4050 = vadd.xlane.f32.xlu0 %v4049
          %v4051 = vpop.xlane.xlu0 %4050
          %v4052 = vadd.f32 %v3794, %v3795
          %v4053 = vadd.f32 %v4052, %v3796
          %v4054 = vadd.f32 %v4053, %v3797
          %v4055 = vadd.f32 %v4054, %v3798
          %v4056 = vadd.f32 %v4055, %v3799
          %v4057 = vsel %vm2908, %v3800, 0.0
          %v4058 = vadd.f32 %v4056, %v4057
          %4059 = vadd.xlane.f32.xlu0 %v4058
          %v4060 = vpop.xlane.xlu0 %4059
          %v4061 = vadd.f32 %v3801, %v3802
          %v4062 = vadd.f32 %v4061, %v3803
          %v4063 = vadd.f32 %v4062, %v3804
          %v4064 = vadd.f32 %v4063, %v3805
          %v4065 = vadd.f32 %v4064, %v3806
          %v4066 = vsel %vm2908, %v3807, 0.0
          %v4067 = vadd.f32 %v4065, %v4066
          %4068 = vadd.xlane.f32.xlu0 %v4067
          %v4069 = vpop.xlane.xlu0 %4068
          %v4070 = vadd.f32 %v3808, %v3809
          %v4071 = vadd.f32 %v4070, %v3810
          %v4072 = vadd.f32 %v4071, %v3811
          %v4073 = vadd.f32 %v4072, %v3812
          %v4074 = vadd.f32 %v4073, %v3813
          %v4075 = vsel %vm2908, %v3814, 0.0
          %v4076 = vadd.f32 %v4074, %v4075
          %4077 = vadd.xlane.f32.xlu0 %v4076
          %v4078 = vpop.xlane.xlu0 %4077
          %v4079 = vadd.f32 %v3815, %v3816
          %v4080 = vadd.f32 %v4079, %v3817
          %v4081 = vadd.f32 %v4080, %v3818
          %v4082 = vadd.f32 %v4081, %v3819
          %v4083 = vadd.f32 %v4082, %v3820
          %v4084 = vsel %vm2908, %v3821, 0.0
          %v4085 = vadd.f32 %v4083, %v4084
          %4086 = vadd.xlane.f32.xlu0 %v4085
          %v4087 = vpop.xlane.xlu0 %4086
          %v4088 = vadd.f32 %v3822, %v3823
          %v4089 = vadd.f32 %v4088, %v3824
          %v4090 = vadd.f32 %v4089, %v3825
          %v4091 = vadd.f32 %v4090, %v3826
          %v4092 = vadd.f32 %v4091, %v3827
          %v4093 = vsel %vm2908, %v3828, 0.0
          %v4094 = vadd.f32 %v4092, %v4093
          %4095 = vadd.xlane.f32.xlu0 %v4094
          %v4096 = vpop.xlane.xlu0 %4095
          %v4097 = vadd.f32 %v3829, %v3830
          %v4098 = vadd.f32 %v4097, %v3831
          %v4099 = vadd.f32 %v4098, %v3832
          %v4100 = vadd.f32 %v4099, %v3833
          %v4101 = vadd.f32 %v4100, %v3834
          %v4102 = vsel %vm2908, %v3835, 0.0
          %v4103 = vadd.f32 %v4101, %v4102
          %4104 = vadd.xlane.f32.xlu0 %v4103
          %v4105 = vpop.xlane.xlu0 %4104
          %v4106 = vadd.f32 %v3836, %v3837
          %v4107 = vadd.f32 %v4106, %v3838
          %v4108 = vadd.f32 %v4107, %v3839
          %v4109 = vadd.f32 %v4108, %v3840
          %v4110 = vadd.f32 %v4109, %v3841
          %v4111 = vsel %vm2908, %v3842, 0.0
          %v4112 = vadd.f32 %v4110, %v4111
          %4113 = vadd.xlane.f32.xlu0 %v4112
          %v4114 = vpop.xlane.xlu0 %4113
          %v4115 = vadd.f32 %v3843, %v3844
          %v4116 = vadd.f32 %v4115, %v3845
          %v4117 = vadd.f32 %v4116, %v3846
          %v4118 = vadd.f32 %v4117, %v3847
          %v4119 = vadd.f32 %v4118, %v3848
          %v4120 = vsel %vm2908, %v3849, 0.0
          %v4121 = vadd.f32 %v4119, %v4120
          %4122 = vadd.xlane.f32.xlu0 %v4121
          %v4123 = vpop.xlane.xlu0 %4122
          %v4124 = vadd.f32 %v3850, %v3851
          %v4125 = vadd.f32 %v4124, %v3852
          %v4126 = vadd.f32 %v4125, %v3853
          %v4127 = vadd.f32 %v4126, %v3854
          %v4128 = vadd.f32 %v4127, %v3855
          %v4129 = vsel %vm2908, %v3856, 0.0
          %v4130 = vadd.f32 %v4128, %v4129
          %4131 = vadd.xlane.f32.xlu0 %v4130
          %v4132 = vpop.xlane.xlu0 %4131
          %v4133 = vadd.f32 %v3857, %v3858
          %v4134 = vadd.f32 %v4133, %v3859
          %v4135 = vadd.f32 %v4134, %v3860
          %v4136 = vadd.f32 %v4135, %v3861
          %v4137 = vadd.f32 %v4136, %v3862
          %v4138 = vsel %vm2908, %v3863, 0.0
          %v4139 = vadd.f32 %v4137, %v4138
          %4140 = vadd.xlane.f32.xlu0 %v4139
          %v4141 = vpop.xlane.xlu0 %4140
          %v4142 = vadd.f32 %v3864, %v3865
          %v4143 = vadd.f32 %v4142, %v3866
          %v4144 = vadd.f32 %v4143, %v3867
          %v4145 = vadd.f32 %v4144, %v3868
          %v4146 = vadd.f32 %v4145, %v3869
          %v4147 = vsel %vm2908, %v3870, 0.0
          %v4148 = vadd.f32 %v4146, %v4147
          %4149 = vadd.xlane.f32.xlu0 %v4148
          %v4150 = vpop.xlane.xlu0 %4149
          %v4151 = vadd.f32 %v3871, %v3872
          %v4152 = vadd.f32 %v4151, %v3873
          %v4153 = vadd.f32 %v4152, %v3874
          %v4154 = vadd.f32 %v4153, %v3875
          %v4155 = vadd.f32 %v4154, %v3876
          %v4156 = vsel %vm2908, %v3877, 0.0
          %v4157 = vadd.f32 %v4155, %v4156
          %4158 = vadd.xlane.f32.xlu0 %v4157
          %v4159 = vpop.xlane.xlu0 %4158
          %v4160 = vadd.f32 %v3878, %v3879
          %v4161 = vadd.f32 %v4160, %v3880
          %v4162 = vadd.f32 %v4161, %v3881
          %v4163 = vadd.f32 %v4162, %v3882
          %v4164 = vadd.f32 %v4163, %v3883
          %v4165 = vsel %vm2908, %v3884, 0.0
          %v4166 = vadd.f32 %v4164, %v4165
          %4167 = vadd.xlane.f32.xlu0 %v4166
          %v4168 = vpop.xlane.xlu0 %4167
          %v4169 = vadd.f32 %v3885, %v3886
          %v4170 = vadd.f32 %v4169, %v3887
          %v4171 = vadd.f32 %v4170, %v3888
          %v4172 = vadd.f32 %v4171, %v3889
          %v4173 = vadd.f32 %v4172, %v3890
          %v4174 = vsel %vm2908, %v3891, 0.0
          %v4175 = vadd.f32 %v4173, %v4174
          %4176 = vadd.xlane.f32.xlu0 %v4175
          %v4177 = vpop.xlane.xlu0 %4176
          %v4178 = vadd.f32 %v3892, %v3893
          %v4179 = vadd.f32 %v4178, %v3894
          %v4180 = vadd.f32 %v4179, %v3895
          %v4181 = vadd.f32 %v4180, %v3896
          %v4182 = vadd.f32 %v4181, %v3897
          %v4183 = vsel %vm2908, %v3898, 0.0
          %v4184 = vadd.f32 %v4182, %v4183
          %4185 = vadd.xlane.f32.xlu0 %v4184
          %v4186 = vpop.xlane.xlu0 %4185
          %v4187 = vmul.f32 %v3907, 0.0012755102
          %v4188 = vmul.f32 %v3916, 0.0012755102
          %v4189 = vmul.f32 %v3925, 0.0012755102
          %v4190 = vmul.f32 %v3934, 0.0012755102
          %v4191 = vmul.f32 %v3943, 0.0012755102
          %v4192 = vmul.f32 %v3952, 0.0012755102
          %v4193 = vmul.f32 %v3961, 0.0012755102
          %v4194 = vmul.f32 %v3970, 0.0012755102
          %v4195 = vmul.f32 %v3979, 0.0012755102
          %v4196 = vmul.f32 %v3988, 0.0012755102
          %v4197 = vmul.f32 %v3997, 0.0012755102
          %v4198 = vmul.f32 %v4006, 0.0012755102
          %v4199 = vmul.f32 %v4015, 0.0012755102
          %v4200 = vmul.f32 %v4024, 0.0012755102
          %v4201 = vmul.f32 %v4033, 0.0012755102
          %v4202 = vmul.f32 %v4042, 0.0012755102
          %v4203 = vmul.f32 %v4051, 0.0012755102
          %v4204 = vmul.f32 %v4060, 0.0012755102
          %v4205 = vmul.f32 %v4069, 0.0012755102
          %v4206 = vmul.f32 %v4078, 0.0012755102
          %v4207 = vmul.f32 %v4087, 0.0012755102
          %v4208 = vmul.f32 %v4096, 0.0012755102
          %v4209 = vmul.f32 %v4105, 0.0012755102
          %v4210 = vmul.f32 %v4114, 0.0012755102
          %v4211 = vmul.f32 %v4123, 0.0012755102
          %v4212 = vmul.f32 %v4132, 0.0012755102
          %v4213 = vmul.f32 %v4141, 0.0012755102
          %v4214 = vmul.f32 %v4150, 0.0012755102
          %v4215 = vmul.f32 %v4159, 0.0012755102
          %v4216 = vmul.f32 %v4168, 0.0012755102
          %v4217 = vmul.f32 %v4177, 0.0012755102
          %v4218 = vmul.f32 %v4186, 0.0012755102
          %v4219 = vmul.f32 %v3643, %v3643
          %v4220 = vmul.f32 %v3644, %v3644
          %v4221 = vmul.f32 %v3645, %v3645
          %v4222 = vmul.f32 %v3646, %v3646
          %v4223 = vmul.f32 %v3647, %v3647
          %v4224 = vmul.f32 %v3648, %v3648
          %v4225 = vmul.f32 %v3649, %v3649
          %v4226 = vmul.f32 %v3650, %v3650
          %v4227 = vmul.f32 %v3651, %v3651
          %v4228 = vmul.f32 %v3652, %v3652
          %v4229 = vmul.f32 %v3653, %v3653
          %v4230 = vmul.f32 %v3654, %v3654
          %v4231 = vmul.f32 %v3655, %v3655
          %v4232 = vmul.f32 %v3656, %v3656
          %v4233 = vmul.f32 %v3657, %v3657
          %v4234 = vmul.f32 %v3658, %v3658
          %v4235 = vmul.f32 %v3659, %v3659
          %v4236 = vmul.f32 %v3660, %v3660
          %v4237 = vmul.f32 %v3661, %v3661
          %v4238 = vmul.f32 %v3662, %v3662
          %v4239 = vmul.f32 %v3663, %v3663
          %v4240 = vmul.f32 %v3664, %v3664
          %v4241 = vmul.f32 %v3665, %v3665
          %v4242 = vmul.f32 %v3666, %v3666
          %v4243 = vmul.f32 %v3667, %v3667
          %v4244 = vmul.f32 %v3668, %v3668
          %v4245 = vmul.f32 %v3669, %v3669
          %v4246 = vmul.f32 %v3670, %v3670
          %v4247 = vmul.f32 %v3671, %v3671
          %v4248 = vmul.f32 %v3672, %v3672
          %v4249 = vmul.f32 %v3673, %v3673
          %v4250 = vmul.f32 %v3674, %v3674
          %v4251 = vsub.f32 %v4187, %v4219
          %v4252 = vsub.f32 %v4188, %v4220
          %v4253 = vsub.f32 %v4189, %v4221
          %v4254 = vsub.f32 %v4190, %v4222
          %v4255 = vsub.f32 %v4191, %v4223
          %v4256 = vsub.f32 %v4192, %v4224
          %v4257 = vsub.f32 %v4193, %v4225
          %v4258 = vsub.f32 %v4194, %v4226
          %v4259 = vsub.f32 %v4195, %v4227
          %v4260 = vsub.f32 %v4196, %v4228
          %v4261 = vsub.f32 %v4197, %v4229
          %v4262 = vsub.f32 %v4198, %v4230
          %v4263 = vsub.f32 %v4199, %v4231
          %v4264 = vsub.f32 %v4200, %v4232
          %v4265 = vsub.f32 %v4201, %v4233
          %v4266 = vsub.f32 %v4202, %v4234
          %v4267 = vsub.f32 %v4203, %v4235
          %v4268 = vsub.f32 %v4204, %v4236
          %v4269 = vsub.f32 %v4205, %v4237
          %v4270 = vsub.f32 %v4206, %v4238
          %v4271 = vsub.f32 %v4207, %v4239
          %v4272 = vsub.f32 %v4208, %v4240
          %v4273 = vsub.f32 %v4209, %v4241
          %v4274 = vsub.f32 %v4210, %v4242
          %v4275 = vsub.f32 %v4211, %v4243
          %v4276 = vsub.f32 %v4212, %v4244
          %v4277 = vsub.f32 %v4213, %v4245
          %v4278 = vsub.f32 %v4214, %v4246
          %v4279 = vsub.f32 %v4215, %v4247
          %v4280 = vsub.f32 %v4216, %v4248
          %v4281 = vsub.f32 %v4217, %v4249
          %v4282 = vsub.f32 %v4218, %v4250
          %v4283 = vadd.f32 %v4251, 1e-05
          %v4284 = vadd.f32 %v4252, 1e-05
          %v4285 = vadd.f32 %v4253, 1e-05
          %v4286 = vadd.f32 %v4254, 1e-05
          %v4287 = vadd.f32 %v4255, 1e-05
          %v4288 = vadd.f32 %v4256, 1e-05
          %v4289 = vadd.f32 %v4257, 1e-05
          %v4290 = vadd.f32 %v4258, 1e-05
          %v4291 = vadd.f32 %v4259, 1e-05
          %v4292 = vadd.f32 %v4260, 1e-05
          %v4293 = vadd.f32 %v4261, 1e-05
          %v4294 = vadd.f32 %v4262, 1e-05
          %v4295 = vadd.f32 %v4263, 1e-05
          %v4296 = vadd.f32 %v4264, 1e-05
          %v4297 = vadd.f32 %v4265, 1e-05
          %v4298 = vadd.f32 %v4266, 1e-05
          %v4299 = vadd.f32 %v4267, 1e-05
          %v4300 = vadd.f32 %v4268, 1e-05
          %v4301 = vadd.f32 %v4269, 1e-05
          %v4302 = vadd.f32 %v4270, 1e-05
          %v4303 = vadd.f32 %v4271, 1e-05
          %v4304 = vadd.f32 %v4272, 1e-05
          %v4305 = vadd.f32 %v4273, 1e-05
          %v4306 = vadd.f32 %v4274, 1e-05
          %v4307 = vadd.f32 %v4275, 1e-05
          %v4308 = vadd.f32 %v4276, 1e-05
          %v4309 = vadd.f32 %v4277, 1e-05
          %v4310 = vadd.f32 %v4278, 1e-05
          %v4311 = vadd.f32 %v4279, 1e-05
          %v4312 = vadd.f32 %v4280, 1e-05
          %v4313 = vadd.f32 %v4281, 1e-05
          %v4314 = vadd.f32 %v4282, 1e-05
          %v4315 = vrsqrt.pop %v4283
          %v4316 = vmul.f32 %v4315, %v4283
          %v4317 = vmul.f32 %v4316, %v4315
          %v4318 = vmul.f32 0.5, %v4317
          %v4319 = vsub.f32 1.5, %v4318
          %v4320 = vmul.f32 %v4315, %v4319
          %vm4321 = vweird.f32 %v4283
          %vm4322 = vweird.f32 %v4315
          %vm4323 = vmor %vm4321, %vm4322
          %v4324 = vsel %vm4323, %v4315, %v4320
          %v4325 = vrsqrt.pop %v4284
          %v4326 = vmul.f32 %v4325, %v4284
          %v4327 = vmul.f32 %v4326, %v4325
          %v4328 = vmul.f32 0.5, %v4327
          %v4329 = vsub.f32 1.5, %v4328
          %v4330 = vmul.f32 %v4325, %v4329
          %vm4331 = vweird.f32 %v4284
          %vm4332 = vweird.f32 %v4325
          %vm4333 = vmor %vm4331, %vm4332
          %v4334 = vsel %vm4333, %v4325, %v4330
          %v4335 = vrsqrt.pop %v4285
          %v4336 = vmul.f32 %v4335, %v4285
          %v4337 = vmul.f32 %v4336, %v4335
          %v4338 = vmul.f32 0.5, %v4337
          %v4339 = vsub.f32 1.5, %v4338
          %v4340 = vmul.f32 %v4335, %v4339
          %vm4341 = vweird.f32 %v4285
          %vm4342 = vweird.f32 %v4335
          %vm4343 = vmor %vm4341, %vm4342
          %v4344 = vsel %vm4343, %v4335, %v4340
          %v4345 = vrsqrt.pop %v4286
          %v4346 = vmul.f32 %v4345, %v4286
          %v4347 = vmul.f32 %v4346, %v4345
          %v4348 = vmul.f32 0.5, %v4347
          %v4349 = vsub.f32 1.5, %v4348
          %v4350 = vmul.f32 %v4345, %v4349
          %vm4351 = vweird.f32 %v4286
          %vm4352 = vweird.f32 %v4345
          %vm4353 = vmor %vm4351, %vm4352
          %v4354 = vsel %vm4353, %v4345, %v4350
          %v4355 = vrsqrt.pop %v4287
          %v4356 = vmul.f32 %v4355, %v4287
          %v4357 = vmul.f32 %v4356, %v4355
          %v4358 = vmul.f32 0.5, %v4357
          %v4359 = vsub.f32 1.5, %v4358
          %v4360 = vmul.f32 %v4355, %v4359
          %vm4361 = vweird.f32 %v4287
          %vm4362 = vweird.f32 %v4355
          %vm4363 = vmor %vm4361, %vm4362
          %v4364 = vsel %vm4363, %v4355, %v4360
          %v4365 = vrsqrt.pop %v4288
          %v4366 = vmul.f32 %v4365, %v4288
          %v4367 = vmul.f32 %v4366, %v4365
          %v4368 = vmul.f32 0.5, %v4367
          %v4369 = vsub.f32 1.5, %v4368
          %v4370 = vmul.f32 %v4365, %v4369
          %vm4371 = vweird.f32 %v4288
          %vm4372 = vweird.f32 %v4365
          %vm4373 = vmor %vm4371, %vm4372
          %v4374 = vsel %vm4373, %v4365, %v4370
          %v4375 = vrsqrt.pop %v4289
          %v4376 = vmul.f32 %v4375, %v4289
          %v4377 = vmul.f32 %v4376, %v4375
          %v4378 = vmul.f32 0.5, %v4377
          %v4379 = vsub.f32 1.5, %v4378
          %v4380 = vmul.f32 %v4375, %v4379
          %vm4381 = vweird.f32 %v4289
          %vm4382 = vweird.f32 %v4375
          %vm4383 = vmor %vm4381, %vm4382
          %v4384 = vsel %vm4383, %v4375, %v4380
          %v4385 = vrsqrt.pop %v4290
          %v4386 = vmul.f32 %v4385, %v4290
          %v4387 = vmul.f32 %v4386, %v4385
          %v4388 = vmul.f32 0.5, %v4387
          %v4389 = vsub.f32 1.5, %v4388
          %v4390 = vmul.f32 %v4385, %v4389
          %vm4391 = vweird.f32 %v4290
          %vm4392 = vweird.f32 %v4385
          %vm4393 = vmor %vm4391, %vm4392
          %v4394 = vsel %vm4393, %v4385, %v4390
          %v4395 = vrsqrt.pop %v4291
          %v4396 = vmul.f32 %v4395, %v4291
          %v4397 = vmul.f32 %v4396, %v4395
          %v4398 = vmul.f32 0.5, %v4397
          %v4399 = vsub.f32 1.5, %v4398
          %v4400 = vmul.f32 %v4395, %v4399
          %vm4401 = vweird.f32 %v4291
          %vm4402 = vweird.f32 %v4395
          %vm4403 = vmor %vm4401, %vm4402
          %v4404 = vsel %vm4403, %v4395, %v4400
          %v4405 = vrsqrt.pop %v4292
          %v4406 = vmul.f32 %v4405, %v4292
          %v4407 = vmul.f32 %v4406, %v4405
          %v4408 = vmul.f32 0.5, %v4407
          %v4409 = vsub.f32 1.5, %v4408
          %v4410 = vmul.f32 %v4405, %v4409
          %vm4411 = vweird.f32 %v4292
          %vm4412 = vweird.f32 %v4405
          %vm4413 = vmor %vm4411, %vm4412
          %v4414 = vsel %vm4413, %v4405, %v4410
          %v4415 = vrsqrt.pop %v4293
          %v4416 = vmul.f32 %v4415, %v4293
          %v4417 = vmul.f32 %v4416, %v4415
          %v4418 = vmul.f32 0.5, %v4417
          %v4419 = vsub.f32 1.5, %v4418
          %v4420 = vmul.f32 %v4415, %v4419
          %vm4421 = vweird.f32 %v4293
          %vm4422 = vweird.f32 %v4415
          %vm4423 = vmor %vm4421, %vm4422
          %v4424 = vsel %vm4423, %v4415, %v4420
          %v4425 = vrsqrt.pop %v4294
          %v4426 = vmul.f32 %v4425, %v4294
          %v4427 = vmul.f32 %v4426, %v4425
          %v4428 = vmul.f32 0.5, %v4427
          %v4429 = vsub.f32 1.5, %v4428
          %v4430 = vmul.f32 %v4425, %v4429
          %vm4431 = vweird.f32 %v4294
          %vm4432 = vweird.f32 %v4425
          %vm4433 = vmor %vm4431, %vm4432
          %v4434 = vsel %vm4433, %v4425, %v4430
          %v4435 = vrsqrt.pop %v4295
          %v4436 = vmul.f32 %v4435, %v4295
          %v4437 = vmul.f32 %v4436, %v4435
          %v4438 = vmul.f32 0.5, %v4437
          %v4439 = vsub.f32 1.5, %v4438
          %v4440 = vmul.f32 %v4435, %v4439
          %vm4441 = vweird.f32 %v4295
          %vm4442 = vweird.f32 %v4435
          %vm4443 = vmor %vm4441, %vm4442
          %v4444 = vsel %vm4443, %v4435, %v4440
          %v4445 = vrsqrt.pop %v4296
          %v4446 = vmul.f32 %v4445, %v4296
          %v4447 = vmul.f32 %v4446, %v4445
          %v4448 = vmul.f32 0.5, %v4447
          %v4449 = vsub.f32 1.5, %v4448
          %v4450 = vmul.f32 %v4445, %v4449
          %vm4451 = vweird.f32 %v4296
          %vm4452 = vweird.f32 %v4445
          %vm4453 = vmor %vm4451, %vm4452
          %v4454 = vsel %vm4453, %v4445, %v4450
          %v4455 = vrsqrt.pop %v4297
          %v4456 = vmul.f32 %v4455, %v4297
          %v4457 = vmul.f32 %v4456, %v4455
          %v4458 = vmul.f32 0.5, %v4457
          %v4459 = vsub.f32 1.5, %v4458
          %v4460 = vmul.f32 %v4455, %v4459
          %vm4461 = vweird.f32 %v4297
          %vm4462 = vweird.f32 %v4455
          %vm4463 = vmor %vm4461, %vm4462
          %v4464 = vsel %vm4463, %v4455, %v4460
          %v4465 = vrsqrt.pop %v4298
          %v4466 = vmul.f32 %v4465, %v4298
          %v4467 = vmul.f32 %v4466, %v4465
          %v4468 = vmul.f32 0.5, %v4467
          %v4469 = vsub.f32 1.5, %v4468
          %v4470 = vmul.f32 %v4465, %v4469
          %vm4471 = vweird.f32 %v4298
          %vm4472 = vweird.f32 %v4465
          %vm4473 = vmor %vm4471, %vm4472
          %v4474 = vsel %vm4473, %v4465, %v4470
          %v4475 = vrsqrt.pop %v4299
          %v4476 = vmul.f32 %v4475, %v4299
          %v4477 = vmul.f32 %v4476, %v4475
          %v4478 = vmul.f32 0.5, %v4477
          %v4479 = vsub.f32 1.5, %v4478
          %v4480 = vmul.f32 %v4475, %v4479
          %vm4481 = vweird.f32 %v4299
          %vm4482 = vweird.f32 %v4475
          %vm4483 = vmor %vm4481, %vm4482
          %v4484 = vsel %vm4483, %v4475, %v4480
          %v4485 = vrsqrt.pop %v4300
          %v4486 = vmul.f32 %v4485, %v4300
          %v4487 = vmul.f32 %v4486, %v4485
          %v4488 = vmul.f32 0.5, %v4487
          %v4489 = vsub.f32 1.5, %v4488
          %v4490 = vmul.f32 %v4485, %v4489
          %vm4491 = vweird.f32 %v4300
          %vm4492 = vweird.f32 %v4485
          %vm4493 = vmor %vm4491, %vm4492
          %v4494 = vsel %vm4493, %v4485, %v4490
          %v4495 = vrsqrt.pop %v4301
          %v4496 = vmul.f32 %v4495, %v4301
          %v4497 = vmul.f32 %v4496, %v4495
          %v4498 = vmul.f32 0.5, %v4497
          %v4499 = vsub.f32 1.5, %v4498
          %v4500 = vmul.f32 %v4495, %v4499
          %vm4501 = vweird.f32 %v4301
          %vm4502 = vweird.f32 %v4495
          %vm4503 = vmor %vm4501, %vm4502
          %v4504 = vsel %vm4503, %v4495, %v4500
          %v4505 = vrsqrt.pop %v4302
          %v4506 = vmul.f32 %v4505, %v4302
          %v4507 = vmul.f32 %v4506, %v4505
          %v4508 = vmul.f32 0.5, %v4507
          %v4509 = vsub.f32 1.5, %v4508
          %v4510 = vmul.f32 %v4505, %v4509
          %vm4511 = vweird.f32 %v4302
          %vm4512 = vweird.f32 %v4505
          %vm4513 = vmor %vm4511, %vm4512
          %v4514 = vsel %vm4513, %v4505, %v4510
          %v4515 = vrsqrt.pop %v4303
          %v4516 = vmul.f32 %v4515, %v4303
          %v4517 = vmul.f32 %v4516, %v4515
          %v4518 = vmul.f32 0.5, %v4517
          %v4519 = vsub.f32 1.5, %v4518
          %v4520 = vmul.f32 %v4515, %v4519
          %vm4521 = vweird.f32 %v4303
          %vm4522 = vweird.f32 %v4515
          %vm4523 = vmor %vm4521, %vm4522
          %v4524 = vsel %vm4523, %v4515, %v4520
          %v4525 = vrsqrt.pop %v4304
          %v4526 = vmul.f32 %v4525, %v4304
          %v4527 = vmul.f32 %v4526, %v4525
          %v4528 = vmul.f32 0.5, %v4527
          %v4529 = vsub.f32 1.5, %v4528
          %v4530 = vmul.f32 %v4525, %v4529
          %vm4531 = vweird.f32 %v4304
          %vm4532 = vweird.f32 %v4525
          %vm4533 = vmor %vm4531, %vm4532
          %v4534 = vsel %vm4533, %v4525, %v4530
          %v4535 = vrsqrt.pop %v4305
          %v4536 = vmul.f32 %v4535, %v4305
          %v4537 = vmul.f32 %v4536, %v4535
          %v4538 = vmul.f32 0.5, %v4537
          %v4539 = vsub.f32 1.5, %v4538
          %v4540 = vmul.f32 %v4535, %v4539
          %vm4541 = vweird.f32 %v4305
          %vm4542 = vweird.f32 %v4535
          %vm4543 = vmor %vm4541, %vm4542
          %v4544 = vsel %vm4543, %v4535, %v4540
          %v4545 = vrsqrt.pop %v4306
          %v4546 = vmul.f32 %v4545, %v4306
          %v4547 = vmul.f32 %v4546, %v4545
          %v4548 = vmul.f32 0.5, %v4547
          %v4549 = vsub.f32 1.5, %v4548
          %v4550 = vmul.f32 %v4545, %v4549
          %vm4551 = vweird.f32 %v4306
          %vm4552 = vweird.f32 %v4545
          %vm4553 = vmor %vm4551, %vm4552
          %v4554 = vsel %vm4553, %v4545, %v4550
          %v4555 = vrsqrt.pop %v4307
          %v4556 = vmul.f32 %v4555, %v4307
          %v4557 = vmul.f32 %v4556, %v4555
          %v4558 = vmul.f32 0.5, %v4557
          %v4559 = vsub.f32 1.5, %v4558
          %v4560 = vmul.f32 %v4555, %v4559
          %vm4561 = vweird.f32 %v4307
          %vm4562 = vweird.f32 %v4555
          %vm4563 = vmor %vm4561, %vm4562
          %v4564 = vsel %vm4563, %v4555, %v4560
          %v4565 = vrsqrt.pop %v4308
          %v4566 = vmul.f32 %v4565, %v4308
          %v4567 = vmul.f32 %v4566, %v4565
          %v4568 = vmul.f32 0.5, %v4567
          %v4569 = vsub.f32 1.5, %v4568
          %v4570 = vmul.f32 %v4565, %v4569
          %vm4571 = vweird.f32 %v4308
          %vm4572 = vweird.f32 %v4565
          %vm4573 = vmor %vm4571, %vm4572
          %v4574 = vsel %vm4573, %v4565, %v4570
          %v4575 = vrsqrt.pop %v4309
          %v4576 = vmul.f32 %v4575, %v4309
          %v4577 = vmul.f32 %v4576, %v4575
          %v4578 = vmul.f32 0.5, %v4577
          %v4579 = vsub.f32 1.5, %v4578
          %v4580 = vmul.f32 %v4575, %v4579
          %vm4581 = vweird.f32 %v4309
          %vm4582 = vweird.f32 %v4575
          %vm4583 = vmor %vm4581, %vm4582
          %v4584 = vsel %vm4583, %v4575, %v4580
          %v4585 = vrsqrt.pop %v4310
          %v4586 = vmul.f32 %v4585, %v4310
          %v4587 = vmul.f32 %v4586, %v4585
          %v4588 = vmul.f32 0.5, %v4587
          %v4589 = vsub.f32 1.5, %v4588
          %v4590 = vmul.f32 %v4585, %v4589
          %vm4591 = vweird.f32 %v4310
          %vm4592 = vweird.f32 %v4585
          %vm4593 = vmor %vm4591, %vm4592
          %v4594 = vsel %vm4593, %v4585, %v4590
          %v4595 = vrsqrt.pop %v4311
          %v4596 = vmul.f32 %v4595, %v4311
          %v4597 = vmul.f32 %v4596, %v4595
          %v4598 = vmul.f32 0.5, %v4597
          %v4599 = vsub.f32 1.5, %v4598
          %v4600 = vmul.f32 %v4595, %v4599
          %vm4601 = vweird.f32 %v4311
          %vm4602 = vweird.f32 %v4595
          %vm4603 = vmor %vm4601, %vm4602
          %v4604 = vsel %vm4603, %v4595, %v4600
          %v4605 = vrsqrt.pop %v4312
          %v4606 = vmul.f32 %v4605, %v4312
          %v4607 = vmul.f32 %v4606, %v4605
          %v4608 = vmul.f32 0.5, %v4607
          %v4609 = vsub.f32 1.5, %v4608
          %v4610 = vmul.f32 %v4605, %v4609
          %vm4611 = vweird.f32 %v4312
          %vm4612 = vweird.f32 %v4605
          %vm4613 = vmor %vm4611, %vm4612
          %v4614 = vsel %vm4613, %v4605, %v4610
          %v4615 = vrsqrt.pop %v4313
          %v4616 = vmul.f32 %v4615, %v4313
          %v4617 = vmul.f32 %v4616, %v4615
          %v4618 = vmul.f32 0.5, %v4617
          %v4619 = vsub.f32 1.5, %v4618
          %v4620 = vmul.f32 %v4615, %v4619
          %vm4621 = vweird.f32 %v4313
          %vm4622 = vweird.f32 %v4615
          %vm4623 = vmor %vm4621, %vm4622
          %v4624 = vsel %vm4623, %v4615, %v4620
          %v4625 = vrsqrt.pop %v4314
          %v4626 = vmul.f32 %v4625, %v4314
          %v4627 = vmul.f32 %v4626, %v4625
          %v4628 = vmul.f32 0.5, %v4627
          %v4629 = vsub.f32 1.5, %v4628
          %v4630 = vmul.f32 %v4625, %v4629
          %vm4631 = vweird.f32 %v4314
          %vm4632 = vweird.f32 %v4625
          %vm4633 = vmor %vm4631, %vm4632
          %v4634 = vsel %vm4633, %v4625, %v4630
          %v4635 = vld [vmem:[%s2] sm:$0xff]
          %v4636 = vld [vmem:[%s2 + $0x8] sm:$0xff]
          %v4637 = vld [vmem:[%s2 + $0x10] sm:$0xff]
          %v4638 = vld [vmem:[%s2 + $0x18] sm:$0xff]
          %v4639 = vld [vmem:[%s2 + $0x20] sm:$0xff]
          %v4640 = vld [vmem:[%s2 + $0x28] sm:$0xff]
          %v4641 = vld [vmem:[%s2 + $0x30] sm:$0xff]
          %v4642 = vld [vmem:[%s2 + $0x38] sm:$0xff]
          %v4643 = vld [vmem:[%s2 + $0x40] sm:$0xff]
          %v4644 = vld [vmem:[%s2 + $0x48] sm:$0xff]
          %v4645 = vld [vmem:[%s2 + $0x50] sm:$0xff]
          %v4646 = vld [vmem:[%s2 + $0x58] sm:$0xff]
          %v4647 = vld [vmem:[%s2 + $0x60] sm:$0xff]
          %v4648 = vld [vmem:[%s2 + $0x68] sm:$0xff]
          %v4649 = vld [vmem:[%s2 + $0x70] sm:$0xff]
          %v4650 = vld [vmem:[%s2 + $0x78] sm:$0xff]
          %v4651 = vld [vmem:[%s2 + $0x80] sm:$0xff]
          %v4652 = vld [vmem:[%s2 + $0x88] sm:$0xff]
          %v4653 = vld [vmem:[%s2 + $0x90] sm:$0xff]
          %v4654 = vld [vmem:[%s2 + $0x98] sm:$0xff]
          %v4655 = vld [vmem:[%s2 + $0xa0] sm:$0xff]
          %v4656 = vld [vmem:[%s2 + $0xa8] sm:$0xff]
          %v4657 = vld [vmem:[%s2 + $0xb0] sm:$0xff]
          %v4658 = vld [vmem:[%s2 + $0xb8] sm:$0xff]
          %v4659 = vld [vmem:[%s2 + $0xc0] sm:$0xff]
          %v4660 = vld [vmem:[%s2 + $0xc8] sm:$0xff]
          %v4661 = vld [vmem:[%s2 + $0xd0] sm:$0xff]
          %v4662 = vld [vmem:[%s2 + $0xd8] sm:$0xff]
          %v4663 = vld [vmem:[%s2 + $0xe0] sm:$0xff]
          %v4664 = vld [vmem:[%s2 + $0xe8] sm:$0xff]
          %v4665 = vld [vmem:[%s2 + $0xf0] sm:$0xff]
          %v4666 = vld [vmem:[%s2 + $0xf8] sm:$0xff]
          %v4667 = vmul.f32 %v4324, %v4635
          %v4668 = vmul.f32 %v4334, %v4636
          %v4669 = vmul.f32 %v4344, %v4637
          %v4670 = vmul.f32 %v4354, %v4638
          %v4671 = vmul.f32 %v4364, %v4639
          %v4672 = vmul.f32 %v4374, %v4640
          %v4673 = vmul.f32 %v4384, %v4641
          %v4674 = vmul.f32 %v4394, %v4642
          %v4675 = vmul.f32 %v4404, %v4643
          %v4676 = vmul.f32 %v4414, %v4644
          %v4677 = vmul.f32 %v4424, %v4645
          %v4678 = vmul.f32 %v4434, %v4646
          %v4679 = vmul.f32 %v4444, %v4647
          %v4680 = vmul.f32 %v4454, %v4648
          %v4681 = vmul.f32 %v4464, %v4649
          %v4682 = vmul.f32 %v4474, %v4650
          %v4683 = vmul.f32 %v4484, %v4651
          %v4684 = vmul.f32 %v4494, %v4652
          %v4685 = vmul.f32 %v4504, %v4653
          %v4686 = vmul.f32 %v4514, %v4654
          %v4687 = vmul.f32 %v4524, %v4655
          %v4688 = vmul.f32 %v4534, %v4656
          %v4689 = vmul.f32 %v4544, %v4657
          %v4690 = vmul.f32 %v4554, %v4658
          %v4691 = vmul.f32 %v4564, %v4659
          %v4692 = vmul.f32 %v4574, %v4660
          %v4693 = vmul.f32 %v4584, %v4661
          %v4694 = vmul.f32 %v4594, %v4662
          %v4695 = vmul.f32 %v4604, %v4663
          %v4696 = vmul.f32 %v4614, %v4664
          %v4697 = vmul.f32 %v4624, %v4665
          %v4698 = vmul.f32 %v4634, %v4666
          %v4699 = vsub.f32 %v3131, %v3643
          %v4700 = vsub.f32 %v3132, %v3643
          %v4701 = vsub.f32 %v3133, %v3643
          %v4702 = vsub.f32 %v3134, %v3643
          %v4703 = vsub.f32 %v3135, %v3643
          %v4704 = vsub.f32 %v3136, %v3643
          %v4705 = vsub.f32 %v3137, %v3643
          %v4706 = vsub.f32 %v3138, %v3644
          %v4707 = vsub.f32 %v3139, %v3644
          %v4708 = vsub.f32 %v3140, %v3644
          %v4709 = vsub.f32 %v3141, %v3644
          %v4710 = vsub.f32 %v3142, %v3644
          %v4711 = vsub.f32 %v3143, %v3644
          %v4712 = vsub.f32 %v3144, %v3644
          %v4713 = vsub.f32 %v3145, %v3645
          %v4714 = vsub.f32 %v3146, %v3645
          %v4715 = vsub.f32 %v3147, %v3645
          %v4716 = vsub.f32 %v3148, %v3645
          %v4717 = vsub.f32 %v3149, %v3645
          %v4718 = vsub.f32 %v3150, %v3645
          %v4719 = vsub.f32 %v3151, %v3645
          %v4720 = vsub.f32 %v3152, %v3646
          %v4721 = vsub.f32 %v3153, %v3646
          %v4722 = vsub.f32 %v3154, %v3646
          %v4723 = vsub.f32 %v3155, %v3646
          %v4724 = vsub.f32 %v3156, %v3646
          %v4725 = vsub.f32 %v3157, %v3646
          %v4726 = vsub.f32 %v3158, %v3646
          %v4727 = vsub.f32 %v3159, %v3647
          %v4728 = vsub.f32 %v3160, %v3647
          %v4729 = vsub.f32 %v3161, %v3647
          %v4730 = vsub.f32 %v3162, %v3647
          %v4731 = vsub.f32 %v3163, %v3647
          %v4732 = vsub.f32 %v3164, %v3647
          %v4733 = vsub.f32 %v3165, %v3647
          %v4734 = vsub.f32 %v3166, %v3648
          %v4735 = vsub.f32 %v3167, %v3648
          %v4736 = vsub.f32 %v3168, %v3648
          %v4737 = vsub.f32 %v3169, %v3648
          %v4738 = vsub.f32 %v3170, %v3648
          %v4739 = vsub.f32 %v3171, %v3648
          %v4740 = vsub.f32 %v3172, %v3648
          %v4741 = vsub.f32 %v3173, %v3649
          %v4742 = vsub.f32 %v3174, %v3649
          %v4743 = vsub.f32 %v3175, %v3649
          %v4744 = vsub.f32 %v3176, %v3649
          %v4745 = vsub.f32 %v3177, %v3649
          %v4746 = vsub.f32 %v3178, %v3649
          %v4747 = vsub.f32 %v3179, %v3649
          %v4748 = vsub.f32 %v3180, %v3650
          %v4749 = vsub.f32 %v3181, %v3650
          %v4750 = vsub.f32 %v3182, %v3650
          %v4751 = vsub.f32 %v3183, %v3650
          %v4752 = vsub.f32 %v3184, %v3650
          %v4753 = vsub.f32 %v3185, %v3650
          %v4754 = vsub.f32 %v3186, %v3650
          %v4755 = vsub.f32 %v3187, %v3651
          %v4756 = vsub.f32 %v3188, %v3651
          %v4757 = vsub.f32 %v3189, %v3651
          %v4758 = vsub.f32 %v3190, %v3651
          %v4759 = vsub.f32 %v3191, %v3651
          %v4760 = vsub.f32 %v3192, %v3651
          %v4761 = vsub.f32 %v3193, %v3651
          %v4762 = vsub.f32 %v3194, %v3652
          %v4763 = vsub.f32 %v3195, %v3652
          %v4764 = vsub.f32 %v3196, %v3652
          %v4765 = vsub.f32 %v3197, %v3652
          %v4766 = vsub.f32 %v3198, %v3652
          %v4767 = vsub.f32 %v3199, %v3652
          %v4768 = vsub.f32 %v3200, %v3652
          %v4769 = vsub.f32 %v3201, %v3653
          %v4770 = vsub.f32 %v3202, %v3653
          %v4771 = vsub.f32 %v3203, %v3653
          %v4772 = vsub.f32 %v3204, %v3653
          %v4773 = vsub.f32 %v3205, %v3653
          %v4774 = vsub.f32 %v3206, %v3653
          %v4775 = vsub.f32 %v3207, %v3653
          %v4776 = vsub.f32 %v3208, %v3654
          %v4777 = vsub.f32 %v3209, %v3654
          %v4778 = vsub.f32 %v3210, %v3654
          %v4779 = vsub.f32 %v3211, %v3654
          %v4780 = vsub.f32 %v3212, %v3654
          %v4781 = vsub.f32 %v3213, %v3654
          %v4782 = vsub.f32 %v3214, %v3654
          %v4783 = vsub.f32 %v3215, %v3655
          %v4784 = vsub.f32 %v3216, %v3655
          %v4785 = vsub.f32 %v3217, %v3655
          %v4786 = vsub.f32 %v3218, %v3655
          %v4787 = vsub.f32 %v3219, %v3655
          %v4788 = vsub.f32 %v3220, %v3655
          %v4789 = vsub.f32 %v3221, %v3655
          %v4790 = vsub.f32 %v3222, %v3656
          %v4791 = vsub.f32 %v3223, %v3656
          %v4792 = vsub.f32 %v3224, %v3656
          %v4793 = vsub.f32 %v3225, %v3656
          %v4794 = vsub.f32 %v3226, %v3656
          %v4795 = vsub.f32 %v3227, %v3656
          %v4796 = vsub.f32 %v3228, %v3656
          %v4797 = vsub.f32 %v3229, %v3657
          %v4798 = vsub.f32 %v3230, %v3657
          %v4799 = vsub.f32 %v3231, %v3657
          %v4800 = vsub.f32 %v3232, %v3657
          %v4801 = vsub.f32 %v3233, %v3657
          %v4802 = vsub.f32 %v3234, %v3657
          %v4803 = vsub.f32 %v3235, %v3657
          %v4804 = vsub.f32 %v3236, %v3658
          %v4805 = vsub.f32 %v3237, %v3658
          %v4806 = vsub.f32 %v3238, %v3658
          %v4807 = vsub.f32 %v3239, %v3658
          %v4808 = vsub.f32 %v3240, %v3658
          %v4809 = vsub.f32 %v3241, %v3658
          %v4810 = vsub.f32 %v3242, %v3658
          %v4811 = vsub.f32 %v3243, %v3659
          %v4812 = vsub.f32 %v3244, %v3659
          %v4813 = vsub.f32 %v3245, %v3659
          %v4814 = vsub.f32 %v3246, %v3659
          %v4815 = vsub.f32 %v3247, %v3659
          %v4816 = vsub.f32 %v3248, %v3659
          %v4817 = vsub.f32 %v3249, %v3659
          %v4818 = vsub.f32 %v3250, %v3660
          %v4819 = vsub.f32 %v3251, %v3660
          %v4820 = vsub.f32 %v3252, %v3660
          %v4821 = vsub.f32 %v3253, %v3660
          %v4822 = vsub.f32 %v3254, %v3660
          %v4823 = vsub.f32 %v3255, %v3660
          %v4824 = vsub.f32 %v3256, %v3660
          %v4825 = vsub.f32 %v3257, %v3661
          %v4826 = vsub.f32 %v3258, %v3661
          %v4827 = vsub.f32 %v3259, %v3661
          %v4828 = vsub.f32 %v3260, %v3661
          %v4829 = vsub.f32 %v3261, %v3661
          %v4830 = vsub.f32 %v3262, %v3661
          %v4831 = vsub.f32 %v3263, %v3661
          %v4832 = vsub.f32 %v3264, %v3662
          %v4833 = vsub.f32 %v3265, %v3662
          %v4834 = vsub.f32 %v3266, %v3662
          %v4835 = vsub.f32 %v3267, %v3662
          %v4836 = vsub.f32 %v3268, %v3662
          %v4837 = vsub.f32 %v3269, %v3662
          %v4838 = vsub.f32 %v3270, %v3662
          %v4839 = vsub.f32 %v3271, %v3663
          %v4840 = vsub.f32 %v3272, %v3663
          %v4841 = vsub.f32 %v3273, %v3663
          %v4842 = vsub.f32 %v3274, %v3663
          %v4843 = vsub.f32 %v3275, %v3663
          %v4844 = vsub.f32 %v3276, %v3663
          %v4845 = vsub.f32 %v3277, %v3663
          %v4846 = vsub.f32 %v3278, %v3664
          %v4847 = vsub.f32 %v3279, %v3664
          %v4848 = vsub.f32 %v3280, %v3664
          %v4849 = vsub.f32 %v3281, %v3664
          %v4850 = vsub.f32 %v3282, %v3664
          %v4851 = vsub.f32 %v3283, %v3664
          %v4852 = vsub.f32 %v3284, %v3664
          %v4853 = vsub.f32 %v3285, %v3665
          %v4854 = vsub.f32 %v3286, %v3665
          %v4855 = vsub.f32 %v3287, %v3665
          %v4856 = vsub.f32 %v3288, %v3665
          %v4857 = vsub.f32 %v3289, %v3665
          %v4858 = vsub.f32 %v3290, %v3665
          %v4859 = vsub.f32 %v3291, %v3665
          %v4860 = vsub.f32 %v3292, %v3666
          %v4861 = vsub.f32 %v3293, %v3666
          %v4862 = vsub.f32 %v3294, %v3666
          %v4863 = vsub.f32 %v3295, %v3666
          %v4864 = vsub.f32 %v3296, %v3666
          %v4865 = vsub.f32 %v3297, %v3666
          %v4866 = vsub.f32 %v3298, %v3666
          %v4867 = vsub.f32 %v3299, %v3667
          %v4868 = vsub.f32 %v3300, %v3667
          %v4869 = vsub.f32 %v3301, %v3667
          %v4870 = vsub.f32 %v3302, %v3667
          %v4871 = vsub.f32 %v3303, %v3667
          %v4872 = vsub.f32 %v3304, %v3667
          %v4873 = vsub.f32 %v3305, %v3667
          %v4874 = vsub.f32 %v3306, %v3668
          %v4875 = vsub.f32 %v3307, %v3668
          %v4876 = vsub.f32 %v3308, %v3668
          %v4877 = vsub.f32 %v3309, %v3668
          %v4878 = vsub.f32 %v3310, %v3668
          %v4879 = vsub.f32 %v3311, %v3668
          %v4880 = vsub.f32 %v3312, %v3668
          %v4881 = vsub.f32 %v3313, %v3669
          %v4882 = vsub.f32 %v3314, %v3669
          %v4883 = vsub.f32 %v3315, %v3669
          %v4884 = vsub.f32 %v3316, %v3669
          %v4885 = vsub.f32 %v3317, %v3669
          %v4886 = vsub.f32 %v3318, %v3669
          %v4887 = vsub.f32 %v3319, %v3669
          %v4888 = vsub.f32 %v3320, %v3670
          %v4889 = vsub.f32 %v3321, %v3670
          %v4890 = vsub.f32 %v3322, %v3670
          %v4891 = vsub.f32 %v3323, %v3670
          %v4892 = vsub.f32 %v3324, %v3670
          %v4893 = vsub.f32 %v3325, %v3670
          %v4894 = vsub.f32 %v3326, %v3670
          %v4895 = vsub.f32 %v3327, %v3671
          %v4896 = vsub.f32 %v3328, %v3671
          %v4897 = vsub.f32 %v3329, %v3671
          %v4898 = vsub.f32 %v3330, %v3671
          %v4899 = vsub.f32 %v3331, %v3671
          %v4900 = vsub.f32 %v3332, %v3671
          %v4901 = vsub.f32 %v3333, %v3671
          %v4902 = vsub.f32 %v3334, %v3672
          %v4903 = vsub.f32 %v3335, %v3672
          %v4904 = vsub.f32 %v3336, %v3672
          %v4905 = vsub.f32 %v3337, %v3672
          %v4906 = vsub.f32 %v3338, %v3672
          %v4907 = vsub.f32 %v3339, %v3672
          %v4908 = vsub.f32 %v3340, %v3672
          %v4909 = vsub.f32 %v3341, %v3673
          %v4910 = vsub.f32 %v3342, %v3673
          %v4911 = vsub.f32 %v3343, %v3673
          %v4912 = vsub.f32 %v3344, %v3673
          %v4913 = vsub.f32 %v3345, %v3673
          %v4914 = vsub.f32 %v3346, %v3673
          %v4915 = vsub.f32 %v3347, %v3673
          %v4916 = vsub.f32 %v3348, %v3674
          %v4917 = vsub.f32 %v3349, %v3674
          %v4918 = vsub.f32 %v3350, %v3674
          %v4919 = vsub.f32 %v3351, %v3674
          %v4920 = vsub.f32 %v3352, %v3674
          %v4921 = vsub.f32 %v3353, %v3674
          %v4922 = vsub.f32 %v3354, %v3674
          %4924 = vset.pattern.permute.xlu0 0
          %4925 = vperm.xlu0 %4924, %v4667
          %v4926 = vpop.permute.xlu0 %4925
          %4929 = vset.pattern.permute.xlu0 0
          %4930 = vperm.xlu0 %4929, %v4668
          %v4931 = vpop.permute.xlu0 %4930
          %4934 = vset.pattern.permute.xlu0 0
          %4935 = vperm.xlu0 %4934, %v4669
          %v4936 = vpop.permute.xlu0 %4935
          %4939 = vset.pattern.permute.xlu0 0
          %4940 = vperm.xlu0 %4939, %v4670
          %v4941 = vpop.permute.xlu0 %4940
          %4944 = vset.pattern.permute.xlu0 0
          %4945 = vperm.xlu0 %4944, %v4671
          %v4946 = vpop.permute.xlu0 %4945
          %4949 = vset.pattern.permute.xlu0 0
          %4950 = vperm.xlu0 %4949, %v4672
          %v4951 = vpop.permute.xlu0 %4950
          %4954 = vset.pattern.permute.xlu0 0
          %4955 = vperm.xlu0 %4954, %v4673
          %v4956 = vpop.permute.xlu0 %4955
          %4959 = vset.pattern.permute.xlu0 0
          %4960 = vperm.xlu0 %4959, %v4674
          %v4961 = vpop.permute.xlu0 %4960
          %4964 = vset.pattern.permute.xlu0 0
          %4965 = vperm.xlu0 %4964, %v4675
          %v4966 = vpop.permute.xlu0 %4965
          %4969 = vset.pattern.permute.xlu0 0
          %4970 = vperm.xlu0 %4969, %v4676
          %v4971 = vpop.permute.xlu0 %4970
          %4974 = vset.pattern.permute.xlu0 0
          %4975 = vperm.xlu0 %4974, %v4677
          %v4976 = vpop.permute.xlu0 %4975
          %4979 = vset.pattern.permute.xlu0 0
          %4980 = vperm.xlu0 %4979, %v4678
          %v4981 = vpop.permute.xlu0 %4980
          %4984 = vset.pattern.permute.xlu0 0
          %4985 = vperm.xlu0 %4984, %v4679
          %v4986 = vpop.permute.xlu0 %4985
          %4989 = vset.pattern.permute.xlu0 0
          %4990 = vperm.xlu0 %4989, %v4680
          %v4991 = vpop.permute.xlu0 %4990
          %4994 = vset.pattern.permute.xlu0 0
          %4995 = vperm.xlu0 %4994, %v4681
          %v4996 = vpop.permute.xlu0 %4995
          %4999 = vset.pattern.permute.xlu0 0
          %5000 = vperm.xlu0 %4999, %v4682
          %v5001 = vpop.permute.xlu0 %5000
          %5004 = vset.pattern.permute.xlu0 0
          %5005 = vperm.xlu0 %5004, %v4683
          %v5006 = vpop.permute.xlu0 %5005
          %5009 = vset.pattern.permute.xlu0 0
          %5010 = vperm.xlu0 %5009, %v4684
          %v5011 = vpop.permute.xlu0 %5010
          %5014 = vset.pattern.permute.xlu0 0
          %5015 = vperm.xlu0 %5014, %v4685
          %v5016 = vpop.permute.xlu0 %5015
          %5019 = vset.pattern.permute.xlu0 0
          %5020 = vperm.xlu0 %5019, %v4686
          %v5021 = vpop.permute.xlu0 %5020
          %5024 = vset.pattern.permute.xlu0 0
          %5025 = vperm.xlu0 %5024, %v4687
          %v5026 = vpop.permute.xlu0 %5025
          %5029 = vset.pattern.permute.xlu0 0
          %5030 = vperm.xlu0 %5029, %v4688
          %v5031 = vpop.permute.xlu0 %5030
          %5034 = vset.pattern.permute.xlu0 0
          %5035 = vperm.xlu0 %5034, %v4689
          %v5036 = vpop.permute.xlu0 %5035
          %5039 = vset.pattern.permute.xlu0 0
          %5040 = vperm.xlu0 %5039, %v4690
          %v5041 = vpop.permute.xlu0 %5040
          %5044 = vset.pattern.permute.xlu0 0
          %5045 = vperm.xlu0 %5044, %v4691
          %v5046 = vpop.permute.xlu0 %5045
          %5049 = vset.pattern.permute.xlu0 0
          %5050 = vperm.xlu0 %5049, %v4692
          %v5051 = vpop.permute.xlu0 %5050
          %5054 = vset.pattern.permute.xlu0 0
          %5055 = vperm.xlu0 %5054, %v4693
          %v5056 = vpop.permute.xlu0 %5055
          %5059 = vset.pattern.permute.xlu0 0
          %5060 = vperm.xlu0 %5059, %v4694
          %v5061 = vpop.permute.xlu0 %5060
          %5064 = vset.pattern.permute.xlu0 0
          %5065 = vperm.xlu0 %5064, %v4695
          %v5066 = vpop.permute.xlu0 %5065
          %5069 = vset.pattern.permute.xlu0 0
          %5070 = vperm.xlu0 %5069, %v4696
          %v5071 = vpop.permute.xlu0 %5070
          %5074 = vset.pattern.permute.xlu0 0
          %5075 = vperm.xlu0 %5074, %v4697
          %v5076 = vpop.permute.xlu0 %5075
          %5079 = vset.pattern.permute.xlu0 0
          %5080 = vperm.xlu0 %5079, %v4698
          %v5081 = vpop.permute.xlu0 %5080
          %v5083 = vmul.f32 %v4699, %v4926
          %v5084 = vmul.f32 %v4700, %v4926
          %v5085 = vmul.f32 %v4701, %v4926
          %v5086 = vmul.f32 %v4702, %v4926
          %v5087 = vmul.f32 %v4703, %v4926
          %v5088 = vmul.f32 %v4704, %v4926
          %v5089 = vmul.f32 %v4705, %v4926
          %v5090 = vmul.f32 %v4706, %v4931
          %v5091 = vmul.f32 %v4707, %v4931
          %v5092 = vmul.f32 %v4708, %v4931
          %v5093 = vmul.f32 %v4709, %v4931
          %v5094 = vmul.f32 %v4710, %v4931
          %v5095 = vmul.f32 %v4711, %v4931
          %v5096 = vmul.f32 %v4712, %v4931
          %v5097 = vmul.f32 %v4713, %v4936
          %v5098 = vmul.f32 %v4714, %v4936
          %v5099 = vmul.f32 %v4715, %v4936
          %v5100 = vmul.f32 %v4716, %v4936
          %v5101 = vmul.f32 %v4717, %v4936
          %v5102 = vmul.f32 %v4718, %v4936
          %v5103 = vmul.f32 %v4719, %v4936
          %v5104 = vmul.f32 %v4720, %v4941
          %v5105 = vmul.f32 %v4721, %v4941
          %v5106 = vmul.f32 %v4722, %v4941
          %v5107 = vmul.f32 %v4723, %v4941
          %v5108 = vmul.f32 %v4724, %v4941
          %v5109 = vmul.f32 %v4725, %v4941
          %v5110 = vmul.f32 %v4726, %v4941
          %v5111 = vmul.f32 %v4727, %v4946
          %v5112 = vmul.f32 %v4728, %v4946
          %v5113 = vmul.f32 %v4729, %v4946
          %v5114 = vmul.f32 %v4730, %v4946
          %v5115 = vmul.f32 %v4731, %v4946
          %v5116 = vmul.f32 %v4732, %v4946
          %v5117 = vmul.f32 %v4733, %v4946
          %v5118 = vmul.f32 %v4734, %v4951
          %v5119 = vmul.f32 %v4735, %v4951
          %v5120 = vmul.f32 %v4736, %v4951
          %v5121 = vmul.f32 %v4737, %v4951
          %v5122 = vmul.f32 %v4738, %v4951
          %v5123 = vmul.f32 %v4739, %v4951
          %v5124 = vmul.f32 %v4740, %v4951
          %v5125 = vmul.f32 %v4741, %v4956
          %v5126 = vmul.f32 %v4742, %v4956
          %v5127 = vmul.f32 %v4743, %v4956
          %v5128 = vmul.f32 %v4744, %v4956
          %v5129 = vmul.f32 %v4745, %v4956
          %v5130 = vmul.f32 %v4746, %v4956
          %v5131 = vmul.f32 %v4747, %v4956
          %v5132 = vmul.f32 %v4748, %v4961
          %v5133 = vmul.f32 %v4749, %v4961
          %v5134 = vmul.f32 %v4750, %v4961
          %v5135 = vmul.f32 %v4751, %v4961
          %v5136 = vmul.f32 %v4752, %v4961
          %v5137 = vmul.f32 %v4753, %v4961
          %v5138 = vmul.f32 %v4754, %v4961
          %v5139 = vmul.f32 %v4755, %v4966
          %v5140 = vmul.f32 %v4756, %v4966
          %v5141 = vmul.f32 %v4757, %v4966
          %v5142 = vmul.f32 %v4758, %v4966
          %v5143 = vmul.f32 %v4759, %v4966
          %v5144 = vmul.f32 %v4760, %v4966
          %v5145 = vmul.f32 %v4761, %v4966
          %v5146 = vmul.f32 %v4762, %v4971
          %v5147 = vmul.f32 %v4763, %v4971
          %v5148 = vmul.f32 %v4764, %v4971
          %v5149 = vmul.f32 %v4765, %v4971
          %v5150 = vmul.f32 %v4766, %v4971
          %v5151 = vmul.f32 %v4767, %v4971
          %v5152 = vmul.f32 %v4768, %v4971
          %v5153 = vmul.f32 %v4769, %v4976
          %v5154 = vmul.f32 %v4770, %v4976
          %v5155 = vmul.f32 %v4771, %v4976
          %v5156 = vmul.f32 %v4772, %v4976
          %v5157 = vmul.f32 %v4773, %v4976
          %v5158 = vmul.f32 %v4774, %v4976
          %v5159 = vmul.f32 %v4775, %v4976
          %v5160 = vmul.f32 %v4776, %v4981
          %v5161 = vmul.f32 %v4777, %v4981
          %v5162 = vmul.f32 %v4778, %v4981
          %v5163 = vmul.f32 %v4779, %v4981
          %v5164 = vmul.f32 %v4780, %v4981
          %v5165 = vmul.f32 %v4781, %v4981
          %v5166 = vmul.f32 %v4782, %v4981
          %v5167 = vmul.f32 %v4783, %v4986
          %v5168 = vmul.f32 %v4784, %v4986
          %v5169 = vmul.f32 %v4785, %v4986
          %v5170 = vmul.f32 %v4786, %v4986
          %v5171 = vmul.f32 %v4787, %v4986
          %v5172 = vmul.f32 %v4788, %v4986
          %v5173 = vmul.f32 %v4789, %v4986
          %v5174 = vmul.f32 %v4790, %v4991
          %v5175 = vmul.f32 %v4791, %v4991
          %v5176 = vmul.f32 %v4792, %v4991
          %v5177 = vmul.f32 %v4793, %v4991
          %v5178 = vmul.f32 %v4794, %v4991
          %v5179 = vmul.f32 %v4795, %v4991
          %v5180 = vmul.f32 %v4796, %v4991
          %v5181 = vmul.f32 %v4797, %v4996
          %v5182 = vmul.f32 %v4798, %v4996
          %v5183 = vmul.f32 %v4799, %v4996
          %v5184 = vmul.f32 %v4800, %v4996
          %v5185 = vmul.f32 %v4801, %v4996
          %v5186 = vmul.f32 %v4802, %v4996
          %v5187 = vmul.f32 %v4803, %v4996
          %v5188 = vmul.f32 %v4804, %v5001
          %v5189 = vmul.f32 %v4805, %v5001
          %v5190 = vmul.f32 %v4806, %v5001
          %v5191 = vmul.f32 %v4807, %v5001
          %v5192 = vmul.f32 %v4808, %v5001
          %v5193 = vmul.f32 %v4809, %v5001
          %v5194 = vmul.f32 %v4810, %v5001
          %v5195 = vmul.f32 %v4811, %v5006
          %v5196 = vmul.f32 %v4812, %v5006
          %v5197 = vmul.f32 %v4813, %v5006
          %v5198 = vmul.f32 %v4814, %v5006
          %v5199 = vmul.f32 %v4815, %v5006
          %v5200 = vmul.f32 %v4816, %v5006
          %v5201 = vmul.f32 %v4817, %v5006
          %v5202 = vmul.f32 %v4818, %v5011
          %v5203 = vmul.f32 %v4819, %v5011
          %v5204 = vmul.f32 %v4820, %v5011
          %v5205 = vmul.f32 %v4821, %v5011
          %v5206 = vmul.f32 %v4822, %v5011
          %v5207 = vmul.f32 %v4823, %v5011
          %v5208 = vmul.f32 %v4824, %v5011
          %v5209 = vmul.f32 %v4825, %v5016
          %v5210 = vmul.f32 %v4826, %v5016
          %v5211 = vmul.f32 %v4827, %v5016
          %v5212 = vmul.f32 %v4828, %v5016
          %v5213 = vmul.f32 %v4829, %v5016
          %v5214 = vmul.f32 %v4830, %v5016
          %v5215 = vmul.f32 %v4831, %v5016
          %v5216 = vmul.f32 %v4832, %v5021
          %v5217 = vmul.f32 %v4833, %v5021
          %v5218 = vmul.f32 %v4834, %v5021
          %v5219 = vmul.f32 %v4835, %v5021
          %v5220 = vmul.f32 %v4836, %v5021
          %v5221 = vmul.f32 %v4837, %v5021
          %v5222 = vmul.f32 %v4838, %v5021
          %v5223 = vmul.f32 %v4839, %v5026
          %v5224 = vmul.f32 %v4840, %v5026
          %v5225 = vmul.f32 %v4841, %v5026
          %v5226 = vmul.f32 %v4842, %v5026
          %v5227 = vmul.f32 %v4843, %v5026
          %v5228 = vmul.f32 %v4844, %v5026
          %v5229 = vmul.f32 %v4845, %v5026
          %v5230 = vmul.f32 %v4846, %v5031
          %v5231 = vmul.f32 %v4847, %v5031
          %v5232 = vmul.f32 %v4848, %v5031
          %v5233 = vmul.f32 %v4849, %v5031
          %v5234 = vmul.f32 %v4850, %v5031
          %v5235 = vmul.f32 %v4851, %v5031
          %v5236 = vmul.f32 %v4852, %v5031
          %v5237 = vmul.f32 %v4853, %v5036
          %v5238 = vmul.f32 %v4854, %v5036
          %v5239 = vmul.f32 %v4855, %v5036
          %v5240 = vmul.f32 %v4856, %v5036
          %v5241 = vmul.f32 %v4857, %v5036
          %v5242 = vmul.f32 %v4858, %v5036
          %v5243 = vmul.f32 %v4859, %v5036
          %v5244 = vmul.f32 %v4860, %v5041
          %v5245 = vmul.f32 %v4861, %v5041
          %v5246 = vmul.f32 %v4862, %v5041
          %v5247 = vmul.f32 %v4863, %v5041
          %v5248 = vmul.f32 %v4864, %v5041
          %v5249 = vmul.f32 %v4865, %v5041
          %v5250 = vmul.f32 %v4866, %v5041
          %v5251 = vmul.f32 %v4867, %v5046
          %v5252 = vmul.f32 %v4868, %v5046
          %v5253 = vmul.f32 %v4869, %v5046
          %v5254 = vmul.f32 %v4870, %v5046
          %v5255 = vmul.f32 %v4871, %v5046
          %v5256 = vmul.f32 %v4872, %v5046
          %v5257 = vmul.f32 %v4873, %v5046
          %v5258 = vmul.f32 %v4874, %v5051
          %v5259 = vmul.f32 %v4875, %v5051
          %v5260 = vmul.f32 %v4876, %v5051
          %v5261 = vmul.f32 %v4877, %v5051
          %v5262 = vmul.f32 %v4878, %v5051
          %v5263 = vmul.f32 %v4879, %v5051
          %v5264 = vmul.f32 %v4880, %v5051
          %v5265 = vmul.f32 %v4881, %v5056
          %v5266 = vmul.f32 %v4882, %v5056
          %v5267 = vmul.f32 %v4883, %v5056
          %v5268 = vmul.f32 %v4884, %v5056
          %v5269 = vmul.f32 %v4885, %v5056
          %v5270 = vmul.f32 %v4886, %v5056
          %v5271 = vmul.f32 %v4887, %v5056
          %v5272 = vmul.f32 %v4888, %v5061
          %v5273 = vmul.f32 %v4889, %v5061
          %v5274 = vmul.f32 %v4890, %v5061
          %v5275 = vmul.f32 %v4891, %v5061
          %v5276 = vmul.f32 %v4892, %v5061
          %v5277 = vmul.f32 %v4893, %v5061
          %v5278 = vmul.f32 %v4894, %v5061
          %v5279 = vmul.f32 %v4895, %v5066
          %v5280 = vmul.f32 %v4896, %v5066
          %v5281 = vmul.f32 %v4897, %v5066
          %v5282 = vmul.f32 %v4898, %v5066
          %v5283 = vmul.f32 %v4899, %v5066
          %v5284 = vmul.f32 %v4900, %v5066
          %v5285 = vmul.f32 %v4901, %v5066
          %v5286 = vmul.f32 %v4902, %v5071
          %v5287 = vmul.f32 %v4903, %v5071
          %v5288 = vmul.f32 %v4904, %v5071
          %v5289 = vmul.f32 %v4905, %v5071
          %v5290 = vmul.f32 %v4906, %v5071
          %v5291 = vmul.f32 %v4907, %v5071
          %v5292 = vmul.f32 %v4908, %v5071
          %v5293 = vmul.f32 %v4909, %v5076
          %v5294 = vmul.f32 %v4910, %v5076
          %v5295 = vmul.f32 %v4911, %v5076
          %v5296 = vmul.f32 %v4912, %v5076
          %v5297 = vmul.f32 %v4913, %v5076
          %v5298 = vmul.f32 %v4914, %v5076
          %v5299 = vmul.f32 %v4915, %v5076
          %v5300 = vmul.f32 %v4916, %v5081
          %v5301 = vmul.f32 %v4917, %v5081
          %v5302 = vmul.f32 %v4918, %v5081
          %v5303 = vmul.f32 %v4919, %v5081
          %v5304 = vmul.f32 %v4920, %v5081
          %v5305 = vmul.f32 %v4921, %v5081
          %v5306 = vmul.f32 %v4922, %v5081
          %v5307 = vld [vmem:[%s3] sm:$0xff]
          %v5308 = vld [vmem:[%s3 + $0x8] sm:$0xff]
          %v5309 = vld [vmem:[%s3 + $0x10] sm:$0xff]
          %v5310 = vld [vmem:[%s3 + $0x18] sm:$0xff]
          %v5311 = vld [vmem:[%s3 + $0x20] sm:$0xff]
          %v5312 = vld [vmem:[%s3 + $0x28] sm:$0xff]
          %v5313 = vld [vmem:[%s3 + $0x30] sm:$0xff]
          %v5314 = vld [vmem:[%s3 + $0x38] sm:$0xff]
          %v5315 = vld [vmem:[%s3 + $0x40] sm:$0xff]
          %v5316 = vld [vmem:[%s3 + $0x48] sm:$0xff]
          %v5317 = vld [vmem:[%s3 + $0x50] sm:$0xff]
          %v5318 = vld [vmem:[%s3 + $0x58] sm:$0xff]
          %v5319 = vld [vmem:[%s3 + $0x60] sm:$0xff]
          %v5320 = vld [vmem:[%s3 + $0x68] sm:$0xff]
          %v5321 = vld [vmem:[%s3 + $0x70] sm:$0xff]
          %v5322 = vld [vmem:[%s3 + $0x78] sm:$0xff]
          %v5323 = vld [vmem:[%s3 + $0x80] sm:$0xff]
          %v5324 = vld [vmem:[%s3 + $0x88] sm:$0xff]
          %v5325 = vld [vmem:[%s3 + $0x90] sm:$0xff]
          %v5326 = vld [vmem:[%s3 + $0x98] sm:$0xff]
          %v5327 = vld [vmem:[%s3 + $0xa0] sm:$0xff]
          %v5328 = vld [vmem:[%s3 + $0xa8] sm:$0xff]
          %v5329 = vld [vmem:[%s3 + $0xb0] sm:$0xff]
          %v5330 = vld [vmem:[%s3 + $0xb8] sm:$0xff]
          %v5331 = vld [vmem:[%s3 + $0xc0] sm:$0xff]
          %v5332 = vld [vmem:[%s3 + $0xc8] sm:$0xff]
          %v5333 = vld [vmem:[%s3 + $0xd0] sm:$0xff]
          %v5334 = vld [vmem:[%s3 + $0xd8] sm:$0xff]
          %v5335 = vld [vmem:[%s3 + $0xe0] sm:$0xff]
          %v5336 = vld [vmem:[%s3 + $0xe8] sm:$0xff]
          %v5337 = vld [vmem:[%s3 + $0xf0] sm:$0xff]
          %v5338 = vld [vmem:[%s3 + $0xf8] sm:$0xff]
          %5340 = vset.pattern.permute.xlu0 0
          %5341 = vperm.xlu0 %5340, %v5307
          %v5342 = vpop.permute.xlu0 %5341
          %5345 = vset.pattern.permute.xlu0 0
          %5346 = vperm.xlu0 %5345, %v5308
          %v5347 = vpop.permute.xlu0 %5346
          %5350 = vset.pattern.permute.xlu0 0
          %5351 = vperm.xlu0 %5350, %v5309
          %v5352 = vpop.permute.xlu0 %5351
          %5355 = vset.pattern.permute.xlu0 0
          %5356 = vperm.xlu0 %5355, %v5310
          %v5357 = vpop.permute.xlu0 %5356
          %5360 = vset.pattern.permute.xlu0 0
          %5361 = vperm.xlu0 %5360, %v5311
          %v5362 = vpop.permute.xlu0 %5361
          %5365 = vset.pattern.permute.xlu0 0
          %5366 = vperm.xlu0 %5365, %v5312
          %v5367 = vpop.permute.xlu0 %5366
          %5370 = vset.pattern.permute.xlu0 0
          %5371 = vperm.xlu0 %5370, %v5313
          %v5372 = vpop.permute.xlu0 %5371
          %5375 = vset.pattern.permute.xlu0 0
          %5376 = vperm.xlu0 %5375, %v5314
          %v5377 = vpop.permute.xlu0 %5376
          %5380 = vset.pattern.permute.xlu0 0
          %5381 = vperm.xlu0 %5380, %v5315
          %v5382 = vpop.permute.xlu0 %5381
          %5385 = vset.pattern.permute.xlu0 0
          %5386 = vperm.xlu0 %5385, %v5316
          %v5387 = vpop.permute.xlu0 %5386
          %5390 = vset.pattern.permute.xlu0 0
          %5391 = vperm.xlu0 %5390, %v5317
          %v5392 = vpop.permute.xlu0 %5391
          %5395 = vset.pattern.permute.xlu0 0
          %5396 = vperm.xlu0 %5395, %v5318
          %v5397 = vpop.permute.xlu0 %5396
          %5400 = vset.pattern.permute.xlu0 0
          %5401 = vperm.xlu0 %5400, %v5319
          %v5402 = vpop.permute.xlu0 %5401
          %5405 = vset.pattern.permute.xlu0 0
          %5406 = vperm.xlu0 %5405, %v5320
          %v5407 = vpop.permute.xlu0 %5406
          %5410 = vset.pattern.permute.xlu0 0
          %5411 = vperm.xlu0 %5410, %v5321
          %v5412 = vpop.permute.xlu0 %5411
          %5415 = vset.pattern.permute.xlu0 0
          %5416 = vperm.xlu0 %5415, %v5322
          %v5417 = vpop.permute.xlu0 %5416
          %5420 = vset.pattern.permute.xlu0 0
          %5421 = vperm.xlu0 %5420, %v5323
          %v5422 = vpop.permute.xlu0 %5421
          %5425 = vset.pattern.permute.xlu0 0
          %5426 = vperm.xlu0 %5425, %v5324
          %v5427 = vpop.permute.xlu0 %5426
          %5430 = vset.pattern.permute.xlu0 0
          %5431 = vperm.xlu0 %5430, %v5325
          %v5432 = vpop.permute.xlu0 %5431
          %5435 = vset.pattern.permute.xlu0 0
          %5436 = vperm.xlu0 %5435, %v5326
          %v5437 = vpop.permute.xlu0 %5436
          %5440 = vset.pattern.permute.xlu0 0
          %5441 = vperm.xlu0 %5440, %v5327
          %v5442 = vpop.permute.xlu0 %5441
          %5445 = vset.pattern.permute.xlu0 0
          %5446 = vperm.xlu0 %5445, %v5328
          %v5447 = vpop.permute.xlu0 %5446
          %5450 = vset.pattern.permute.xlu0 0
          %5451 = vperm.xlu0 %5450, %v5329
          %v5452 = vpop.permute.xlu0 %5451
          %5455 = vset.pattern.permute.xlu0 0
          %5456 = vperm.xlu0 %5455, %v5330
          %v5457 = vpop.permute.xlu0 %5456
          %5460 = vset.pattern.permute.xlu0 0
          %5461 = vperm.xlu0 %5460, %v5331
          %v5462 = vpop.permute.xlu0 %5461
          %5465 = vset.pattern.permute.xlu0 0
          %5466 = vperm.xlu0 %5465, %v5332
          %v5467 = vpop.permute.xlu0 %5466
          %5470 = vset.pattern.permute.xlu0 0
          %5471 = vperm.xlu0 %5470, %v5333
          %v5472 = vpop.permute.xlu0 %5471
          %5475 = vset.pattern.permute.xlu0 0
          %5476 = vperm.xlu0 %5475, %v5334
          %v5477 = vpop.permute.xlu0 %5476
          %5480 = vset.pattern.permute.xlu0 0
          %5481 = vperm.xlu0 %5480, %v5335
          %v5482 = vpop.permute.xlu0 %5481
          %5485 = vset.pattern.permute.xlu0 0
          %5486 = vperm.xlu0 %5485, %v5336
          %v5487 = vpop.permute.xlu0 %5486
          %5490 = vset.pattern.permute.xlu0 0
          %5491 = vperm.xlu0 %5490, %v5337
          %v5492 = vpop.permute.xlu0 %5491
          %5495 = vset.pattern.permute.xlu0 0
          %5496 = vperm.xlu0 %5495, %v5338
          %v5497 = vpop.permute.xlu0 %5496
          %v5499 = vadd.f32 %v5083, %v5342
          %v5500 = vadd.f32 %v5084, %v5342
          %v5501 = vadd.f32 %v5085, %v5342
          %v5502 = vadd.f32 %v5086, %v5342
          %v5503 = vadd.f32 %v5087, %v5342
          %v5504 = vadd.f32 %v5088, %v5342
          %v5505 = vadd.f32 %v5089, %v5342
          %v5506 = vadd.f32 %v5090, %v5347
          %v5507 = vadd.f32 %v5091, %v5347
          %v5508 = vadd.f32 %v5092, %v5347
          %v5509 = vadd.f32 %v5093, %v5347
          %v5510 = vadd.f32 %v5094, %v5347
          %v5511 = vadd.f32 %v5095, %v5347
          %v5512 = vadd.f32 %v5096, %v5347
          %v5513 = vadd.f32 %v5097, %v5352
          %v5514 = vadd.f32 %v5098, %v5352
          %v5515 = vadd.f32 %v5099, %v5352
          %v5516 = vadd.f32 %v5100, %v5352
          %v5517 = vadd.f32 %v5101, %v5352
          %v5518 = vadd.f32 %v5102, %v5352
          %v5519 = vadd.f32 %v5103, %v5352
          %v5520 = vadd.f32 %v5104, %v5357
          %v5521 = vadd.f32 %v5105, %v5357
          %v5522 = vadd.f32 %v5106, %v5357
          %v5523 = vadd.f32 %v5107, %v5357
          %v5524 = vadd.f32 %v5108, %v5357
          %v5525 = vadd.f32 %v5109, %v5357
          %v5526 = vadd.f32 %v5110, %v5357
          %v5527 = vadd.f32 %v5111, %v5362
          %v5528 = vadd.f32 %v5112, %v5362
          %v5529 = vadd.f32 %v5113, %v5362
          %v5530 = vadd.f32 %v5114, %v5362
          %v5531 = vadd.f32 %v5115, %v5362
          %v5532 = vadd.f32 %v5116, %v5362
          %v5533 = vadd.f32 %v5117, %v5362
          %v5534 = vadd.f32 %v5118, %v5367
          %v5535 = vadd.f32 %v5119, %v5367
          %v5536 = vadd.f32 %v5120, %v5367
          %v5537 = vadd.f32 %v5121, %v5367
          %v5538 = vadd.f32 %v5122, %v5367
          %v5539 = vadd.f32 %v5123, %v5367
          %v5540 = vadd.f32 %v5124, %v5367
          %v5541 = vadd.f32 %v5125, %v5372
          %v5542 = vadd.f32 %v5126, %v5372
          %v5543 = vadd.f32 %v5127, %v5372
          %v5544 = vadd.f32 %v5128, %v5372
          %v5545 = vadd.f32 %v5129, %v5372
          %v5546 = vadd.f32 %v5130, %v5372
          %v5547 = vadd.f32 %v5131, %v5372
          %v5548 = vadd.f32 %v5132, %v5377
          %v5549 = vadd.f32 %v5133, %v5377
          %v5550 = vadd.f32 %v5134, %v5377
          %v5551 = vadd.f32 %v5135, %v5377
          %v5552 = vadd.f32 %v5136, %v5377
          %v5553 = vadd.f32 %v5137, %v5377
          %v5554 = vadd.f32 %v5138, %v5377
          %v5555 = vadd.f32 %v5139, %v5382
          %v5556 = vadd.f32 %v5140, %v5382
          %v5557 = vadd.f32 %v5141, %v5382
          %v5558 = vadd.f32 %v5142, %v5382
          %v5559 = vadd.f32 %v5143, %v5382
          %v5560 = vadd.f32 %v5144, %v5382
          %v5561 = vadd.f32 %v5145, %v5382
          %v5562 = vadd.f32 %v5146, %v5387
          %v5563 = vadd.f32 %v5147, %v5387
          %v5564 = vadd.f32 %v5148, %v5387
          %v5565 = vadd.f32 %v5149, %v5387
          %v5566 = vadd.f32 %v5150, %v5387
          %v5567 = vadd.f32 %v5151, %v5387
          %v5568 = vadd.f32 %v5152, %v5387
          %v5569 = vadd.f32 %v5153, %v5392
          %v5570 = vadd.f32 %v5154, %v5392
          %v5571 = vadd.f32 %v5155, %v5392
          %v5572 = vadd.f32 %v5156, %v5392
          %v5573 = vadd.f32 %v5157, %v5392
          %v5574 = vadd.f32 %v5158, %v5392
          %v5575 = vadd.f32 %v5159, %v5392
          %v5576 = vadd.f32 %v5160, %v5397
          %v5577 = vadd.f32 %v5161, %v5397
          %v5578 = vadd.f32 %v5162, %v5397
          %v5579 = vadd.f32 %v5163, %v5397
          %v5580 = vadd.f32 %v5164, %v5397
          %v5581 = vadd.f32 %v5165, %v5397
          %v5582 = vadd.f32 %v5166, %v5397
          %v5583 = vadd.f32 %v5167, %v5402
          %v5584 = vadd.f32 %v5168, %v5402
          %v5585 = vadd.f32 %v5169, %v5402
          %v5586 = vadd.f32 %v5170, %v5402
          %v5587 = vadd.f32 %v5171, %v5402
          %v5588 = vadd.f32 %v5172, %v5402
          %v5589 = vadd.f32 %v5173, %v5402
          %v5590 = vadd.f32 %v5174, %v5407
          %v5591 = vadd.f32 %v5175, %v5407
          %v5592 = vadd.f32 %v5176, %v5407
          %v5593 = vadd.f32 %v5177, %v5407
          %v5594 = vadd.f32 %v5178, %v5407
          %v5595 = vadd.f32 %v5179, %v5407
          %v5596 = vadd.f32 %v5180, %v5407
          %v5597 = vadd.f32 %v5181, %v5412
          %v5598 = vadd.f32 %v5182, %v5412
          %v5599 = vadd.f32 %v5183, %v5412
          %v5600 = vadd.f32 %v5184, %v5412
          %v5601 = vadd.f32 %v5185, %v5412
          %v5602 = vadd.f32 %v5186, %v5412
          %v5603 = vadd.f32 %v5187, %v5412
          %v5604 = vadd.f32 %v5188, %v5417
          %v5605 = vadd.f32 %v5189, %v5417
          %v5606 = vadd.f32 %v5190, %v5417
          %v5607 = vadd.f32 %v5191, %v5417
          %v5608 = vadd.f32 %v5192, %v5417
          %v5609 = vadd.f32 %v5193, %v5417
          %v5610 = vadd.f32 %v5194, %v5417
          %v5611 = vadd.f32 %v5195, %v5422
          %v5612 = vadd.f32 %v5196, %v5422
          %v5613 = vadd.f32 %v5197, %v5422
          %v5614 = vadd.f32 %v5198, %v5422
          %v5615 = vadd.f32 %v5199, %v5422
          %v5616 = vadd.f32 %v5200, %v5422
          %v5617 = vadd.f32 %v5201, %v5422
          %v5618 = vadd.f32 %v5202, %v5427
          %v5619 = vadd.f32 %v5203, %v5427
          %v5620 = vadd.f32 %v5204, %v5427
          %v5621 = vadd.f32 %v5205, %v5427
          %v5622 = vadd.f32 %v5206, %v5427
          %v5623 = vadd.f32 %v5207, %v5427
          %v5624 = vadd.f32 %v5208, %v5427
          %v5625 = vadd.f32 %v5209, %v5432
          %v5626 = vadd.f32 %v5210, %v5432
          %v5627 = vadd.f32 %v5211, %v5432
          %v5628 = vadd.f32 %v5212, %v5432
          %v5629 = vadd.f32 %v5213, %v5432
          %v5630 = vadd.f32 %v5214, %v5432
          %v5631 = vadd.f32 %v5215, %v5432
          %v5632 = vadd.f32 %v5216, %v5437
          %v5633 = vadd.f32 %v5217, %v5437
          %v5634 = vadd.f32 %v5218, %v5437
          %v5635 = vadd.f32 %v5219, %v5437
          %v5636 = vadd.f32 %v5220, %v5437
          %v5637 = vadd.f32 %v5221, %v5437
          %v5638 = vadd.f32 %v5222, %v5437
          %v5639 = vadd.f32 %v5223, %v5442
          %v5640 = vadd.f32 %v5224, %v5442
          %v5641 = vadd.f32 %v5225, %v5442
          %v5642 = vadd.f32 %v5226, %v5442
          %v5643 = vadd.f32 %v5227, %v5442
          %v5644 = vadd.f32 %v5228, %v5442
          %v5645 = vadd.f32 %v5229, %v5442
          %v5646 = vadd.f32 %v5230, %v5447
          %v5647 = vadd.f32 %v5231, %v5447
          %v5648 = vadd.f32 %v5232, %v5447
          %v5649 = vadd.f32 %v5233, %v5447
          %v5650 = vadd.f32 %v5234, %v5447
          %v5651 = vadd.f32 %v5235, %v5447
          %v5652 = vadd.f32 %v5236, %v5447
          %v5653 = vadd.f32 %v5237, %v5452
          %v5654 = vadd.f32 %v5238, %v5452
          %v5655 = vadd.f32 %v5239, %v5452
          %v5656 = vadd.f32 %v5240, %v5452
          %v5657 = vadd.f32 %v5241, %v5452
          %v5658 = vadd.f32 %v5242, %v5452
          %v5659 = vadd.f32 %v5243, %v5452
          %v5660 = vadd.f32 %v5244, %v5457
          %v5661 = vadd.f32 %v5245, %v5457
          %v5662 = vadd.f32 %v5246, %v5457
          %v5663 = vadd.f32 %v5247, %v5457
          %v5664 = vadd.f32 %v5248, %v5457
          %v5665 = vadd.f32 %v5249, %v5457
          %v5666 = vadd.f32 %v5250, %v5457
          %v5667 = vadd.f32 %v5251, %v5462
          %v5668 = vadd.f32 %v5252, %v5462
          %v5669 = vadd.f32 %v5253, %v5462
          %v5670 = vadd.f32 %v5254, %v5462
          %v5671 = vadd.f32 %v5255, %v5462
          %v5672 = vadd.f32 %v5256, %v5462
          %v5673 = vadd.f32 %v5257, %v5462
          %v5674 = vadd.f32 %v5258, %v5467
          %v5675 = vadd.f32 %v5259, %v5467
          %v5676 = vadd.f32 %v5260, %v5467
          %v5677 = vadd.f32 %v5261, %v5467
          %v5678 = vadd.f32 %v5262, %v5467
          %v5679 = vadd.f32 %v5263, %v5467
          %v5680 = vadd.f32 %v5264, %v5467
          %v5681 = vadd.f32 %v5265, %v5472
          %v5682 = vadd.f32 %v5266, %v5472
          %v5683 = vadd.f32 %v5267, %v5472
          %v5684 = vadd.f32 %v5268, %v5472
          %v5685 = vadd.f32 %v5269, %v5472
          %v5686 = vadd.f32 %v5270, %v5472
          %v5687 = vadd.f32 %v5271, %v5472
          %v5688 = vadd.f32 %v5272, %v5477
          %v5689 = vadd.f32 %v5273, %v5477
          %v5690 = vadd.f32 %v5274, %v5477
          %v5691 = vadd.f32 %v5275, %v5477
          %v5692 = vadd.f32 %v5276, %v5477
          %v5693 = vadd.f32 %v5277, %v5477
          %v5694 = vadd.f32 %v5278, %v5477
          %v5695 = vadd.f32 %v5279, %v5482
          %v5696 = vadd.f32 %v5280, %v5482
          %v5697 = vadd.f32 %v5281, %v5482
          %v5698 = vadd.f32 %v5282, %v5482
          %v5699 = vadd.f32 %v5283, %v5482
          %v5700 = vadd.f32 %v5284, %v5482
          %v5701 = vadd.f32 %v5285, %v5482
          %v5702 = vadd.f32 %v5286, %v5487
          %v5703 = vadd.f32 %v5287, %v5487
          %v5704 = vadd.f32 %v5288, %v5487
          %v5705 = vadd.f32 %v5289, %v5487
          %v5706 = vadd.f32 %v5290, %v5487
          %v5707 = vadd.f32 %v5291, %v5487
          %v5708 = vadd.f32 %v5292, %v5487
          %v5709 = vadd.f32 %v5293, %v5492
          %v5710 = vadd.f32 %v5294, %v5492
          %v5711 = vadd.f32 %v5295, %v5492
          %v5712 = vadd.f32 %v5296, %v5492
          %v5713 = vadd.f32 %v5297, %v5492
          %v5714 = vadd.f32 %v5298, %v5492
          %v5715 = vadd.f32 %v5299, %v5492
          %v5716 = vadd.f32 %v5300, %v5497
          %v5717 = vadd.f32 %v5301, %v5497
          %v5718 = vadd.f32 %v5302, %v5497
          %v5719 = vadd.f32 %v5303, %v5497
          %v5720 = vadd.f32 %v5304, %v5497
          %v5721 = vadd.f32 %v5305, %v5497
          %v5722 = vadd.f32 %v5306, %v5497
          %5723 = vst [vmem:[%s4] sm:$0xff] %v5499
          %5724 = vst [vmem:[%s4 + $0x8] sm:$0xff] %v5500
          %5725 = vst [vmem:[%s4 + $0x10] sm:$0xff] %v5501
          %5726 = vst [vmem:[%s4 + $0x18] sm:$0xff] %v5502
          %5727 = vst [vmem:[%s4 + $0x20] sm:$0xff] %v5503
          %5728 = vst [vmem:[%s4 + $0x28] sm:$0xff] %v5504
          %5729 = vst.msk [vmem:[%s4 + $0x30] sm:$0xff] %vm2908, %v5505
          %5730 = vst [vmem:[%s4 + $0x38] sm:$0xff] %v5506
          %5731 = vst [vmem:[%s4 + $0x40] sm:$0xff] %v5507
          %5732 = vst [vmem:[%s4 + $0x48] sm:$0xff] %v5508
          %5733 = vst [vmem:[%s4 + $0x50] sm:$0xff] %v5509
          %5734 = vst [vmem:[%s4 + $0x58] sm:$0xff] %v5510
          %5735 = vst [vmem:[%s4 + $0x60] sm:$0xff] %v5511
          %5736 = vst.msk [vmem:[%s4 + $0x68] sm:$0xff] %vm2908, %v5512
          %5737 = vst [vmem:[%s4 + $0x70] sm:$0xff] %v5513
          %5738 = vst [vmem:[%s4 + $0x78] sm:$0xff] %v5514
          %5739 = vst [vmem:[%s4 + $0x80] sm:$0xff] %v5515
          %5740 = vst [vmem:[%s4 + $0x88] sm:$0xff] %v5516
          %5741 = vst [vmem:[%s4 + $0x90] sm:$0xff] %v5517
          %5742 = vst [vmem:[%s4 + $0x98] sm:$0xff] %v5518
          %5743 = vst.msk [vmem:[%s4 + $0xa0] sm:$0xff] %vm2908, %v5519
          %5744 = vst [vmem:[%s4 + $0xa8] sm:$0xff] %v5520
          %5745 = vst [vmem:[%s4 + $0xb0] sm:$0xff] %v5521
          %5746 = vst [vmem:[%s4 + $0xb8] sm:$0xff] %v5522
          %5747 = vst [vmem:[%s4 + $0xc0] sm:$0xff] %v5523
          %5748 = vst [vmem:[%s4 + $0xc8] sm:$0xff] %v5524
          %5749 = vst [vmem:[%s4 + $0xd0] sm:$0xff] %v5525
          %5750 = vst.msk [vmem:[%s4 + $0xd8] sm:$0xff] %vm2908, %v5526
          %5751 = vst [vmem:[%s4 + $0xe0] sm:$0xff] %v5527
          %5752 = vst [vmem:[%s4 + $0xe8] sm:$0xff] %v5528
          %5753 = vst [vmem:[%s4 + $0xf0] sm:$0xff] %v5529
          %5754 = vst [vmem:[%s4 + $0xf8] sm:$0xff] %v5530
          %5755 = vst [vmem:[%s4 + $0x100] sm:$0xff] %v5531
          %5756 = vst [vmem:[%s4 + $0x108] sm:$0xff] %v5532
          %5757 = vst.msk [vmem:[%s4 + $0x110] sm:$0xff] %vm2908, %v5533
          %5758 = vst [vmem:[%s4 + $0x118] sm:$0xff] %v5534
          %5759 = vst [vmem:[%s4 + $0x120] sm:$0xff] %v5535
          %5760 = vst [vmem:[%s4 + $0x128] sm:$0xff] %v5536
          %5761 = vst [vmem:[%s4 + $0x130] sm:$0xff] %v5537
          %5762 = vst [vmem:[%s4 + $0x138] sm:$0xff] %v5538
          %5763 = vst [vmem:[%s4 + $0x140] sm:$0xff] %v5539
          %5764 = vst.msk [vmem:[%s4 + $0x148] sm:$0xff] %vm2908, %v5540
          %5765 = vst [vmem:[%s4 + $0x150] sm:$0xff] %v5541
          %5766 = vst [vmem:[%s4 + $0x158] sm:$0xff] %v5542
          %5767 = vst [vmem:[%s4 + $0x160] sm:$0xff] %v5543
          %5768 = vst [vmem:[%s4 + $0x168] sm:$0xff] %v5544
          %5769 = vst [vmem:[%s4 + $0x170] sm:$0xff] %v5545
          %5770 = vst [vmem:[%s4 + $0x178] sm:$0xff] %v5546
          %5771 = vst.msk [vmem:[%s4 + $0x180] sm:$0xff] %vm2908, %v5547
          %5772 = vst [vmem:[%s4 + $0x188] sm:$0xff] %v5548
          %5773 = vst [vmem:[%s4 + $0x190] sm:$0xff] %v5549
          %5774 = vst [vmem:[%s4 + $0x198] sm:$0xff] %v5550
          %5775 = vst [vmem:[%s4 + $0x1a0] sm:$0xff] %v5551
          %5776 = vst [vmem:[%s4 + $0x1a8] sm:$0xff] %v5552
          %5777 = vst [vmem:[%s4 + $0x1b0] sm:$0xff] %v5553
          %5778 = vst.msk [vmem:[%s4 + $0x1b8] sm:$0xff] %vm2908, %v5554
          %5779 = vst [vmem:[%s4 + $0x1c0] sm:$0xff] %v5555
          %5780 = vst [vmem:[%s4 + $0x1c8] sm:$0xff] %v5556
          %5781 = vst [vmem:[%s4 + $0x1d0] sm:$0xff] %v5557
          %5782 = vst [vmem:[%s4 + $0x1d8] sm:$0xff] %v5558
          %5783 = vst [vmem:[%s4 + $0x1e0] sm:$0xff] %v5559
          %5784 = vst [vmem:[%s4 + $0x1e8] sm:$0xff] %v5560
          %5785 = vst.msk [vmem:[%s4 + $0x1f0] sm:$0xff] %vm2908, %v5561
          %5786 = vst [vmem:[%s4 + $0x1f8] sm:$0xff] %v5562
          %5787 = vst [vmem:[%s4 + $0x200] sm:$0xff] %v5563
          %5788 = vst [vmem:[%s4 + $0x208] sm:$0xff] %v5564
          %5789 = vst [vmem:[%s4 + $0x210] sm:$0xff] %v5565
          %5790 = vst [vmem:[%s4 + $0x218] sm:$0xff] %v5566
          %5791 = vst [vmem:[%s4 + $0x220] sm:$0xff] %v5567
          %5792 = vst.msk [vmem:[%s4 + $0x228] sm:$0xff] %vm2908, %v5568
          %5793 = vst [vmem:[%s4 + $0x230] sm:$0xff] %v5569
          %5794 = vst [vmem:[%s4 + $0x238] sm:$0xff] %v5570
          %5795 = vst [vmem:[%s4 + $0x240] sm:$0xff] %v5571
          %5796 = vst [vmem:[%s4 + $0x248] sm:$0xff] %v5572
          %5797 = vst [vmem:[%s4 + $0x250] sm:$0xff] %v5573
          %5798 = vst [vmem:[%s4 + $0x258] sm:$0xff] %v5574
          %5799 = vst.msk [vmem:[%s4 + $0x260] sm:$0xff] %vm2908, %v5575
          %5800 = vst [vmem:[%s4 + $0x268] sm:$0xff] %v5576
          %5801 = vst [vmem:[%s4 + $0x270] sm:$0xff] %v5577
          %5802 = vst [vmem:[%s4 + $0x278] sm:$0xff] %v5578
          %5803 = vst [vmem:[%s4 + $0x280] sm:$0xff] %v5579
          %5804 = vst [vmem:[%s4 + $0x288] sm:$0xff] %v5580
          %5805 = vst [vmem:[%s4 + $0x290] sm:$0xff] %v5581
          %5806 = vst.msk [vmem:[%s4 + $0x298] sm:$0xff] %vm2908, %v5582
          %5807 = vst [vmem:[%s4 + $0x2a0] sm:$0xff] %v5583
          %5808 = vst [vmem:[%s4 + $0x2a8] sm:$0xff] %v5584
          %5809 = vst [vmem:[%s4 + $0x2b0] sm:$0xff] %v5585
          %5810 = vst [vmem:[%s4 + $0x2b8] sm:$0xff] %v5586
          %5811 = vst [vmem:[%s4 + $0x2c0] sm:$0xff] %v5587
          %5812 = vst [vmem:[%s4 + $0x2c8] sm:$0xff] %v5588
          %5813 = vst.msk [vmem:[%s4 + $0x2d0] sm:$0xff] %vm2908, %v5589
          %5814 = vst [vmem:[%s4 + $0x2d8] sm:$0xff] %v5590
          %5815 = vst [vmem:[%s4 + $0x2e0] sm:$0xff] %v5591
          %5816 = vst [vmem:[%s4 + $0x2e8] sm:$0xff] %v5592
          %5817 = vst [vmem:[%s4 + $0x2f0] sm:$0xff] %v5593
          %5818 = vst [vmem:[%s4 + $0x2f8] sm:$0xff] %v5594
          %5819 = vst [vmem:[%s4 + $0x300] sm:$0xff] %v5595
          %5820 = vst.msk [vmem:[%s4 + $0x308] sm:$0xff] %vm2908, %v5596
          %5821 = vst [vmem:[%s4 + $0x310] sm:$0xff] %v5597
          %5822 = vst [vmem:[%s4 + $0x318] sm:$0xff] %v5598
          %5823 = vst [vmem:[%s4 + $0x320] sm:$0xff] %v5599
          %5824 = vst [vmem:[%s4 + $0x328] sm:$0xff] %v5600
          %5825 = vst [vmem:[%s4 + $0x330] sm:$0xff] %v5601
          %5826 = vst [vmem:[%s4 + $0x338] sm:$0xff] %v5602
          %5827 = vst.msk [vmem:[%s4 + $0x340] sm:$0xff] %vm2908, %v5603
          %5828 = vst [vmem:[%s4 + $0x348] sm:$0xff] %v5604
          %5829 = vst [vmem:[%s4 + $0x350] sm:$0xff] %v5605
          %5830 = vst [vmem:[%s4 + $0x358] sm:$0xff] %v5606
          %5831 = vst [vmem:[%s4 + $0x360] sm:$0xff] %v5607
          %5832 = vst [vmem:[%s4 + $0x368] sm:$0xff] %v5608
          %5833 = vst [vmem:[%s4 + $0x370] sm:$0xff] %v5609
          %5834 = vst.msk [vmem:[%s4 + $0x378] sm:$0xff] %vm2908, %v5610
          %5835 = vst [vmem:[%s4 + $0x380] sm:$0xff] %v5611
          %5836 = vst [vmem:[%s4 + $0x388] sm:$0xff] %v5612
          %5837 = vst [vmem:[%s4 + $0x390] sm:$0xff] %v5613
          %5838 = vst [vmem:[%s4 + $0x398] sm:$0xff] %v5614
          %5839 = vst [vmem:[%s4 + $0x3a0] sm:$0xff] %v5615
          %5840 = vst [vmem:[%s4 + $0x3a8] sm:$0xff] %v5616
          %5841 = vst.msk [vmem:[%s4 + $0x3b0] sm:$0xff] %vm2908, %v5617
          %5842 = vst [vmem:[%s4 + $0x3b8] sm:$0xff] %v5618
          %5843 = vst [vmem:[%s4 + $0x3c0] sm:$0xff] %v5619
          %5844 = vst [vmem:[%s4 + $0x3c8] sm:$0xff] %v5620
          %5845 = vst [vmem:[%s4 + $0x3d0] sm:$0xff] %v5621
          %5846 = vst [vmem:[%s4 + $0x3d8] sm:$0xff] %v5622
          %5847 = vst [vmem:[%s4 + $0x3e0] sm:$0xff] %v5623
          %5848 = vst.msk [vmem:[%s4 + $0x3e8] sm:$0xff] %vm2908, %v5624
          %5849 = vst [vmem:[%s4 + $0x3f0] sm:$0xff] %v5625
          %5850 = vst [vmem:[%s4 + $0x3f8] sm:$0xff] %v5626
          %5851 = vst [vmem:[%s4 + $0x400] sm:$0xff] %v5627
          %5852 = vst [vmem:[%s4 + $0x408] sm:$0xff] %v5628
          %5853 = vst [vmem:[%s4 + $0x410] sm:$0xff] %v5629
          %5854 = vst [vmem:[%s4 + $0x418] sm:$0xff] %v5630
          %5855 = vst.msk [vmem:[%s4 + $0x420] sm:$0xff] %vm2908, %v5631
          %5856 = vst [vmem:[%s4 + $0x428] sm:$0xff] %v5632
          %5857 = vst [vmem:[%s4 + $0x430] sm:$0xff] %v5633
          %5858 = vst [vmem:[%s4 + $0x438] sm:$0xff] %v5634
          %5859 = vst [vmem:[%s4 + $0x440] sm:$0xff] %v5635
          %5860 = vst [vmem:[%s4 + $0x448] sm:$0xff] %v5636
          %5861 = vst [vmem:[%s4 + $0x450] sm:$0xff] %v5637
          %5862 = vst.msk [vmem:[%s4 + $0x458] sm:$0xff] %vm2908, %v5638
          %5863 = vst [vmem:[%s4 + $0x460] sm:$0xff] %v5639
          %5864 = vst [vmem:[%s4 + $0x468] sm:$0xff] %v5640
          %5865 = vst [vmem:[%s4 + $0x470] sm:$0xff] %v5641
          %5866 = vst [vmem:[%s4 + $0x478] sm:$0xff] %v5642
          %5867 = vst [vmem:[%s4 + $0x480] sm:$0xff] %v5643
          %5868 = vst [vmem:[%s4 + $0x488] sm:$0xff] %v5644
          %5869 = vst.msk [vmem:[%s4 + $0x490] sm:$0xff] %vm2908, %v5645
          %5870 = vst [vmem:[%s4 + $0x498] sm:$0xff] %v5646
          %5871 = vst [vmem:[%s4 + $0x4a0] sm:$0xff] %v5647
          %5872 = vst [vmem:[%s4 + $0x4a8] sm:$0xff] %v5648
          %5873 = vst [vmem:[%s4 + $0x4b0] sm:$0xff] %v5649
          %5874 = vst [vmem:[%s4 + $0x4b8] sm:$0xff] %v5650
          %5875 = vst [vmem:[%s4 + $0x4c0] sm:$0xff] %v5651
          %5876 = vst.msk [vmem:[%s4 + $0x4c8] sm:$0xff] %vm2908, %v5652
          %5877 = vst [vmem:[%s4 + $0x4d0] sm:$0xff] %v5653
          %5878 = vst [vmem:[%s4 + $0x4d8] sm:$0xff] %v5654
          %5879 = vst [vmem:[%s4 + $0x4e0] sm:$0xff] %v5655
          %5880 = vst [vmem:[%s4 + $0x4e8] sm:$0xff] %v5656
          %5881 = vst [vmem:[%s4 + $0x4f0] sm:$0xff] %v5657
          %5882 = vst [vmem:[%s4 + $0x4f8] sm:$0xff] %v5658
          %5883 = vst.msk [vmem:[%s4 + $0x500] sm:$0xff] %vm2908, %v5659
          %5884 = vst [vmem:[%s4 + $0x508] sm:$0xff] %v5660
          %5885 = vst [vmem:[%s4 + $0x510] sm:$0xff] %v5661
          %5886 = vst [vmem:[%s4 + $0x518] sm:$0xff] %v5662
          %5887 = vst [vmem:[%s4 + $0x520] sm:$0xff] %v5663
          %5888 = vst [vmem:[%s4 + $0x528] sm:$0xff] %v5664
          %5889 = vst [vmem:[%s4 + $0x530] sm:$0xff] %v5665
          %5890 = vst.msk [vmem:[%s4 + $0x538] sm:$0xff] %vm2908, %v5666
          %5891 = vst [vmem:[%s4 + $0x540] sm:$0xff] %v5667
          %5892 = vst [vmem:[%s4 + $0x548] sm:$0xff] %v5668
          %5893 = vst [vmem:[%s4 + $0x550] sm:$0xff] %v5669
          %5894 = vst [vmem:[%s4 + $0x558] sm:$0xff] %v5670
          %5895 = vst [vmem:[%s4 + $0x560] sm:$0xff] %v5671
          %5896 = vst [vmem:[%s4 + $0x568] sm:$0xff] %v5672
          %5897 = vst.msk [vmem:[%s4 + $0x570] sm:$0xff] %vm2908, %v5673
          %5898 = vst [vmem:[%s4 + $0x578] sm:$0xff] %v5674
          %5899 = vst [vmem:[%s4 + $0x580] sm:$0xff] %v5675
          %5900 = vst [vmem:[%s4 + $0x588] sm:$0xff] %v5676
          %5901 = vst [vmem:[%s4 + $0x590] sm:$0xff] %v5677
          %5902 = vst [vmem:[%s4 + $0x598] sm:$0xff] %v5678
          %5903 = vst [vmem:[%s4 + $0x5a0] sm:$0xff] %v5679
          %5904 = vst.msk [vmem:[%s4 + $0x5a8] sm:$0xff] %vm2908, %v5680
          %5905 = vst [vmem:[%s4 + $0x5b0] sm:$0xff] %v5681
          %5906 = vst [vmem:[%s4 + $0x5b8] sm:$0xff] %v5682
          %5907 = vst [vmem:[%s4 + $0x5c0] sm:$0xff] %v5683
          %5908 = vst [vmem:[%s4 + $0x5c8] sm:$0xff] %v5684
          %5909 = vst [vmem:[%s4 + $0x5d0] sm:$0xff] %v5685
          %5910 = vst [vmem:[%s4 + $0x5d8] sm:$0xff] %v5686
          %5911 = vst.msk [vmem:[%s4 + $0x5e0] sm:$0xff] %vm2908, %v5687
          %5912 = vst [vmem:[%s4 + $0x5e8] sm:$0xff] %v5688
          %5913 = vst [vmem:[%s4 + $0x5f0] sm:$0xff] %v5689
          %5914 = vst [vmem:[%s4 + $0x5f8] sm:$0xff] %v5690
          %5915 = vst [vmem:[%s4 + $0x600] sm:$0xff] %v5691
          %5916 = vst [vmem:[%s4 + $0x608] sm:$0xff] %v5692
          %5917 = vst [vmem:[%s4 + $0x610] sm:$0xff] %v5693
          %5918 = vst.msk [vmem:[%s4 + $0x618] sm:$0xff] %vm2908, %v5694
          %5919 = vst [vmem:[%s4 + $0x620] sm:$0xff] %v5695
          %5920 = vst [vmem:[%s4 + $0x628] sm:$0xff] %v5696
          %5921 = vst [vmem:[%s4 + $0x630] sm:$0xff] %v5697
          %5922 = vst [vmem:[%s4 + $0x638] sm:$0xff] %v5698
          %5923 = vst [vmem:[%s4 + $0x640] sm:$0xff] %v5699
          %5924 = vst [vmem:[%s4 + $0x648] sm:$0xff] %v5700
          %5925 = vst.msk [vmem:[%s4 + $0x650] sm:$0xff] %vm2908, %v5701
          %5926 = vst [vmem:[%s4 + $0x658] sm:$0xff] %v5702
          %5927 = vst [vmem:[%s4 + $0x660] sm:$0xff] %v5703
          %5928 = vst [vmem:[%s4 + $0x668] sm:$0xff] %v5704
          %5929 = vst [vmem:[%s4 + $0x670] sm:$0xff] %v5705
          %5930 = vst [vmem:[%s4 + $0x678] sm:$0xff] %v5706
          %5931 = vst [vmem:[%s4 + $0x680] sm:$0xff] %v5707
          %5932 = vst.msk [vmem:[%s4 + $0x688] sm:$0xff] %vm2908, %v5708
          %5933 = vst [vmem:[%s4 + $0x690] sm:$0xff] %v5709
          %5934 = vst [vmem:[%s4 + $0x698] sm:$0xff] %v5710
          %5935 = vst [vmem:[%s4 + $0x6a0] sm:$0xff] %v5711
          %5936 = vst [vmem:[%s4 + $0x6a8] sm:$0xff] %v5712
          %5937 = vst [vmem:[%s4 + $0x6b0] sm:$0xff] %v5713
          %5938 = vst [vmem:[%s4 + $0x6b8] sm:$0xff] %v5714
          %5939 = vst.msk [vmem:[%s4 + $0x6c0] sm:$0xff] %vm2908, %v5715
          %5940 = vst [vmem:[%s4 + $0x6c8] sm:$0xff] %v5716
          %5941 = vst [vmem:[%s4 + $0x6d0] sm:$0xff] %v5717
          %5942 = vst [vmem:[%s4 + $0x6d8] sm:$0xff] %v5718
          %5943 = vst [vmem:[%s4 + $0x6e0] sm:$0xff] %v5719
          %5944 = vst [vmem:[%s4 + $0x6e8] sm:$0xff] %v5720
          %5945 = vst [vmem:[%s4 + $0x6f0] sm:$0xff] %v5721
          %5946 = vst.msk [vmem:[%s4 + $0x6f8] sm:$0xff] %vm2908, %v5722
        $region67: #{tpu_custom_call.1} parent=54 // pred_fallthru
          _
        // Predicated region
        $region68: #{tpu_custom_call.1} parent=54 // pred_check
          %p5947 = pneg %p122
        $region69: #{tpu_custom_call.1} parent=54 // pred_check_branch
          %5949 = sbr.rel (%p5947) target = $region71
        $region70: #{tpu_custom_call.1} parent=54 // pred_region
          _
        $region71: #{tpu_custom_call.1} parent=54 // pred_fallthru
          _
        // Predicated region
        $region72: #{tpu_custom_call.1} parent=54 // pred_check
          %p5950 = pneg %p122
        $region73: #{tpu_custom_call.1} parent=54 // pred_check_branch
          %5952 = sbr.rel (%p5950) target = $region75
        $region74: #{tpu_custom_call.1} parent=54 // pred_region
          _
        $region75: #{tpu_custom_call.1} parent=54 // pred_fallthru
          _
      $region55: #{tpu_custom_call.1} parent=5 // pred_fallthru
        _
      %p5953 = scmp.le.s32.totalorder 2, %s10
      // Predicated region
      $region76: #{tpu_custom_call.1} parent=5 // pred_check
        %p5954 = pneg %p5953
      $region77: #{tpu_custom_call.1} parent=5 // pred_check_branch
        %5956 = sbr.rel (%p5954) target = $region79
      $region78: #{tpu_custom_call.1} parent=5 // pred_region
        %s5957 = ssub.s32 %s10, 2
      $region79: #{tpu_custom_call.1} parent=5 // pred_fallthru
        _
    $region6: #{tpu_custom_call.1} parent=1 // loop_footer
      %s14 = sadd.s32 1, %s10
    $region7: #{tpu_custom_call.1} parent=1 // loop_footer_branch
      %9 = sbr.rel target = $region3
    $region8: #{tpu_custom_call.1} parent=1 // loop_exit
      _

</llo_original>
